<compile_context>
chip_gen: v7x
topology: tpu7x:2x2x1
jax: 0.10.0
libtpu: 0.0.40
codegen_flags: <defaults>
</compile_context>

<pallas_src>
import functools

import jax
import jax.numpy as jnp
from jax import lax
from jax.experimental import pallas as pl
from jax.experimental.pallas import tpu as pltpu


# ----------------------------------------------------------------------------
# Tiling configuration
# ----------------------------------------------------------------------------
_MIN_M_PALLAS = 256       # below this per-call overhead dominates -> XLA path
_TILE_M_TARGET = 1024     # ~HBM-roofline sweet spot for the streaming axis


def _ceil_to(x: int, k: int) -> int:
    return -(-x // k) * k


def _vmem_budget_bytes() -> int:
    """Generation-aware scoped-VMEM budget (v5e/v6e ~77 MiB, v7x ~38 MiB)."""
    try:
        cap = int(pltpu.get_tpu_info().vmem_capacity_bytes)
    except Exception:
        cap = 64 * 1024 * 1024
    return min(int(0.6 * cap), 96 * 1024 * 1024)


def _pick_tile_m(m_wide: int, wp: int, cin: int, cout: int, budget: int):
    """Tile for the flattened padded-grid axis.

    Constraints: multiple of 128, at least one conv halo (wp+1 elems) must fit
    inside a single neighbouring block, double-buffered blocks must fit the
    VMEM budget, and prefer >=2 grid steps when there is enough work so the
    DMA pipeline has something to overlap."""
    t_min = _ceil_to(wp + 2, 128)
    per_col = 2 * (3 * cin * 2 + 4 + cout * 4) + cout * 4
    t_cap = max(t_min, (budget // 2 // per_col) // 128 * 128)
    nt = max(1, -(-m_wide // _TILE_M_TARGET))
    if m_wide >= 2 * t_min:
        nt = max(nt, 2)
    t = _ceil_to(-(-m_wide // nt), 128)
    t = min(max(t, t_min), t_cap)
    nt = -(-m_wide // t)
    return t, nt


# ----------------------------------------------------------------------------
# Fused conv3x3 + BatchNorm + LeakyReLU kernel (two-phase grid)
# ----------------------------------------------------------------------------
def _fused_conv_bn_lrelu_kernel(xl_ref, xm_ref, xr_ref, mask_ref, w_ref,
                                gamma_ref, beta_ref, out_ref,
                                z_ref, sum_ref, ssq_ref, *,
                                deltas, tile_m, inv_count, eps, neg_slope):
    phase = pl.program_id(0)
    i = pl.program_id(1)
    start = pl.multiple_of(i * tile_m, 128)

    @pl.when(jnp.logical_and(phase == 0, i == 0))
    def _init_stats():
        sum_ref[...] = jnp.zeros_like(sum_ref)
        ssq_ref[...] = jnp.zeros_like(ssq_ref)

    @pl.when(phase == 0)
    def _conv_and_stats():
        # 3-block halo window [left | centre | right] along the flattened axis.
        win = jnp.concatenate([xl_ref[...], xm_ref[...], xr_ref[...]], axis=1)
        cout = out_ref.shape[0]
        acc = jnp.zeros((cout, tile_m), jnp.float32)
        for tap, d in enumerate(deltas):                 # 9 static taps
            xw = win[:, tile_m + d:2 * tile_m + d]       # (Cin, tile_m) shift
            acc = acc + jnp.dot(w_ref[tap], xw,
                                preferred_element_type=jnp.float32)
        zm = acc * mask_ref[...]                         # mask invalid columns
        sum_ref[...] += jnp.sum(zm, axis=1, keepdims=True)
        ssq_ref[...] += jnp.sum(zm * zm, axis=1, keepdims=True)
        z_ref[:, pl.ds(start, tile_m)] = acc             # z stays in VMEM

    @pl.when(phase == 1)
    def _bn_lrelu():
        mean = sum_ref[...] * inv_count
        var = jnp.maximum(ssq_ref[...] * inv_count - mean * mean, 0.0)
        scale = gamma_ref[...] * lax.rsqrt(var + eps)
        shift = beta_ref[...] - scale * mean
        y = z_ref[:, pl.ds(start, tile_m)] * scale + shift
        out_ref[...] = jnp.where(y > 0, y, neg_slope * y)


def _conv_bn_lrelu_pallas(x_cf, w9, gamma, beta, budget):
    """x_cf: (Cin, N, H, W) f32; w9: (9, Cout, Cin); returns (Cout, N, H, W)."""
    cin, n, h, w = x_cf.shape
    cout = w9.shape[1]
    hp, wp = h + 2, w + 2
    m_wide = n * hp * wp

    tile_m, nt = _pick_tile_m(m_wide, wp, cin, cout, budget)
    m_pad = nt * tile_m

    # z (and the pipeline buffers) must fit the VMEM budget for the fused path.
    # TODO(synk): add a two-pass Pallas variant (bf16 z round trip through HBM)
    # for very large Cout*M instead of falling back to XLA.
    if cout * m_pad * 4 + 4 * (3 * cin * 2 + 4 + cout * 4) * tile_m > budget:
        return None

    # Zero-pad for the 3x3 "same" conv, flatten, cast to bf16 (intentional
    # precision choice: bf16 MXU inputs, f32 accumulation), pad lanes to tiles.
    xz = jnp.pad(x_cf, ((0, 0), (0, 0), (1, 1), (1, 1)))
    x_flat = xz.reshape(cin, m_wide).astype(jnp.bfloat16)
    if m_pad > m_wide:
        x_flat = jnp.pad(x_flat, ((0, 0), (0, m_pad - m_wide)))

    # Validity mask: 1 on true output positions (yi in [1,H], xi in [1,W]).
    rv = (jnp.arange(hp) >= 1) & (jnp.arange(hp) <= h)
    cv = (jnp.arange(wp) >= 1) & (jnp.arange(wp) <= w)
    mask = (rv[:, None] & cv[None, :]).astype(jnp.float32)
    mask = jnp.tile(mask.reshape(1, hp * wp), (1, n))
    if m_pad > m_wide:
        mask = jnp.pad(mask, ((0, 0), (0, m_pad - m_wide)))

    deltas = tuple((dy - 1) * wp + (dx - 1) for dy in range(3) for dx in range(3))
    kernel = functools.partial(
        _fused_conv_bn_lrelu_kernel, deltas=deltas, tile_m=tile_m,
        inv_count=1.0 / float(n * h * w), eps=1e-5, neg_slope=0.2)

    w9b = w9.astype(jnp.bfloat16)
    g = gamma.reshape(cout, 1).astype(jnp.float32)
    bt = beta.reshape(cout, 1).astype(jnp.float32)

    # Phase 0: the x/mask maps follow i (left/centre/right halo blocks).
    # Phase 1: they collapse to block 0 so no input is re-fetched.
    x_specs = [
        pl.BlockSpec((cin, tile_m),
                     lambda p, i: (0, jnp.maximum(i - 1, 0) * (1 - p))),
        pl.BlockSpec((cin, tile_m), lambda p, i: (0, i * (1 - p))),
        pl.BlockSpec((cin, tile_m),
                     lambda p, i: (0, jnp.minimum(i + 1, nt - 1) * (1 - p))),
    ]
    y = pl.pallas_call(
        kernel,
        grid=(2, nt),
        in_specs=x_specs + [
            pl.BlockSpec((1, tile_m), lambda p, i: (0, i * (1 - p))),
            pl.BlockSpec((9, cout, cin), lambda p, i: (0, 0, 0)),
            pl.BlockSpec((cout, 1), lambda p, i: (0, 0)),
            pl.BlockSpec((cout, 1), lambda p, i: (0, 0)),
        ],
        out_specs=pl.BlockSpec((cout, tile_m), lambda p, i: (0, i * p)),
        out_shape=jax.ShapeDtypeStruct((cout, m_pad), jnp.float32),
        scratch_shapes=[pltpu.VMEM((cout, m_pad), jnp.float32),
                        pltpu.VMEM((cout, 1), jnp.float32),
                        pltpu.VMEM((cout, 1), jnp.float32)],
        compiler_params=pltpu.CompilerParams(
            dimension_semantics=("arbitrary", "arbitrary"),
            vmem_limit_bytes=budget),
        cost_estimate=pl.CostEstimate(
            flops=2 * 9 * cin * cout * m_pad + 4 * cout * m_pad,
            transcendentals=cout,
            bytes_accessed=(3 * cin * 2 + 4) * m_pad + 4 * cout * m_pad),
    )(x_flat, x_flat, x_flat, mask, w9b, g, bt)
    # TODO(synk): sweep pipeline_mode=pl.Buffered(3) on the three x specs if
    # the DMA is still exposed after these structural changes.

    y = y[:, :m_wide].reshape(cout, n, hp, wp)[:, :, 1:1 + h, 1:1 + w]
    return y


# XLA path: independent reference and small-M / no-fit fallback.  It uses the
# same intentional bf16-input / f32-accumulate precision policy as the kernel.
def _conv_bn_lrelu_xla(x_cf, w9, b, gamma, beta):
    cin, n, h, w = x_cf.shape
    cout = w9.shape[1]
    w4 = jnp.transpose(w9.reshape(3, 3, cout, cin), (2, 3, 0, 1))   # OIHW
    xb = x_cf.astype(jnp.bfloat16).astype(jnp.float32)
    wb = w4.astype(jnp.bfloat16).astype(jnp.float32)
    z = lax.conv_general_dilated(jnp.transpose(xb, (1, 0, 2, 3)), wb,
                                 (1, 1), ((1, 1), (1, 1)),
                                 dimension_numbers=("NCHW", "OIHW", "NCHW"),
                                 precision=lax.Precision.HIGHEST)
    z = z + b.reshape(1, cout, 1, 1)
    mean = jnp.mean(z, axis=(0, 2, 3), keepdims=True)
    var = jnp.mean((z - mean) ** 2, axis=(0, 2, 3), keepdims=True)
    y = gamma.reshape(1, cout, 1, 1) * (z - mean) * lax.rsqrt(var + 1e-5) \
        + beta.reshape(1, cout, 1, 1)
    y = jnp.where(y > 0, y, 0.2 * y)
    return jnp.transpose(y, (1, 0, 2, 3))


def _conv_bn_lrelu(x_cf, w9, b, gamma, beta, budget, use_pallas):
    _, n, h, w = x_cf.shape
    if use_pallas and n * h * w >= _MIN_M_PALLAS:
        y = _conv_bn_lrelu_pallas(x_cf, w9, gamma, beta, budget)
        if y is not None:
            return y
    return _conv_bn_lrelu_xla(x_cf, w9, b, gamma, beta)


# ----------------------------------------------------------------------------
# 1x1 output conv (MSDnet.outc)
# ----------------------------------------------------------------------------
def _conv1x1_kernel(x_ref, w_ref, b_ref, o_ref):
    o_ref[...] = jnp.dot(w_ref[...], x_ref[...],
                         preferred_element_type=jnp.float32) + b_ref[...]


def _conv1x1_pallas(lat_nchw, wc, bc, budget):
    n, c, h, w = lat_nchw.shape
    n_out = wc.shape[0]
    m0 = n * h * w
    nt = max(1, -(-m0 // 512))
    if m0 >= 256:
        nt = max(nt, 2)                       # >=2 steps -> megacore-splittable
    t0 = _ceil_to(-(-m0 // nt), 128)
    nt = -(-m0 // t0)
    m0_pad = nt * t0
    x = jnp.transpose(lat_nchw, (1, 0, 2, 3)).reshape(c, m0).astype(jnp.bfloat16)
    if m0_pad > m0:
        x = jnp.pad(x, ((0, 0), (0, m0_pad - m0)))
    y = pl.pallas_call(
        _conv1x1_kernel,
        grid=(nt,),
        in_specs=[pl.BlockSpec((c, t0), lambda i: (0, i)),
                  pl.BlockSpec((n_out, c), lambda i: (0, 0)),
                  pl.BlockSpec((n_out, 1), lambda i: (0, 0))],
        out_specs=pl.BlockSpec((n_out, t0), lambda i: (0, i)),
        out_shape=jax.ShapeDtypeStruct((n_out, m0_pad), jnp.float32),
        compiler_params=pltpu.CompilerParams(
            dimension_semantics=("parallel",), vmem_limit_bytes=budget),
    )(x, wc.astype(jnp.bfloat16), bc.reshape(n_out, 1).astype(jnp.float32))
    y = y[:, :m0].reshape(n_out, n, h, w)
    return jnp.transpose(y, (1, 0, 2, 3))


def _conv1x1_xla(lat_nchw, wc, bc):
    wb = wc.astype(jnp.bfloat16).astype(jnp.float32)
    xb = lat_nchw.astype(jnp.bfloat16).astype(jnp.float32)
    return jnp.einsum("oc,nchw->nohw", wb, xb,
                      precision=lax.Precision.HIGHEST) + bc.reshape(1, -1, 1, 1)


# ----------------------------------------------------------------------------
# Plain-JAX glue matching the PyTorch ops around the conv blocks.
# ----------------------------------------------------------------------------
def _avg_pool_cf(x, f):                  # AvgPool2d(f); sizes divide exactly
    c, n, h, w = x.shape
    return x.reshape(c, n, h // f, f, w // f, f).mean(axis=(3, 5))


def _upsample_bilinear_cf(x, f):         # Upsample(f, 'bilinear', align_corners=True)
    c, n, h, w = x.shape
    ho, wo = h * f, w * f

    def coords(out_n, in_n):
        if out_n == 1:
            return jnp.zeros((out_n,), jnp.float32)
        return jnp.arange(out_n, dtype=jnp.float32) * ((in_n - 1) / (out_n - 1))

    cy, cx = coords(ho, h), coords(wo, w)
    y0 = jnp.clip(jnp.floor(cy).astype(jnp.int32), 0, h - 1)
    y1 = jnp.clip(y0 + 1, 0, h - 1)
    x0 = jnp.clip(jnp.floor(cx).astype(jnp.int32), 0, w - 1)
    x1 = jnp.clip(x0 + 1, 0, w - 1)
    wy = (cy - y0.astype(jnp.float32)).reshape(1, 1, ho, 1)
    wx = (cx - x0.astype(jnp.float32)).reshape(1, 1, 1, wo)

    def gather(yi, xi):
        return jnp.take(jnp.take(x, yi, axis=2), xi, axis=3)

    top = gather(y0, x0) * (1.0 - wx) + gather(y0, x1) * wx
    bot = gather(y1, x0) * (1.0 - wx) + gather(y1, x1) * wx
    return top * (1.0 - wy) + bot * wy


def _get_alignment_padding(shape, n_levels=1, kernel_size=1):
    align_size = kernel_size * 2 ** n_levels
    return sum([(-s % align_size // 2, -s % align_size - -s % align_size // 2)
                for s in reversed(shape)], ())


# ----------------------------------------------------------------------------
# Parameters and forward passes
# ----------------------------------------------------------------------------
def init_msd_params(key, n_ch_in, n_features, n_layers, n_ch_out):
    """Synthetic conv W/b + BN gamma/beta per layer, plus the 1x1 outc conv."""
    block_params = []
    for i in range(n_layers):
        cin = n_ch_in + n_features * i
        key, k1, k2, k3, k4 = jax.random.split(key, 5)
        w = jax.random.normal(k1, (n_features, cin, 3, 3), jnp.float32) \
            * (1.0 / (3.0 * float(cin) ** 0.5))
        b = 0.1 * jax.random.normal(k2, (n_features,), jnp.float32)
        gamma = 1.0 + 0.1 * jax.random.normal(k3, (n_features,), jnp.float32)
        beta = 0.1 * jax.random.normal(k4, (n_features,), jnp.float32)
        # (Cout, Cin, 3, 3) -> (ky, kx, Cout, Cin) -> (9, Cout, Cin):
        # tap index t = ky*3 + kx matches the kernel's `deltas` ordering.
        w9 = jnp.transpose(w, (2, 3, 0, 1)).reshape(9, n_features, cin)
        block_params.append((w9, b, gamma, beta))
    c_total = n_ch_in + n_features * n_layers
    key, k5, k6 = jax.random.split(key, 3)
    wc = jax.random.normal(k5, (n_ch_out, c_total), jnp.float32) \
        * (1.0 / float(c_total) ** 0.5)
    bc = 0.1 * jax.random.normal(k6, (n_ch_out,), jnp.float32)
    return block_params, (wc, bc)


def msd_samp_block_forward(x_nchw, params, dilations, use_pallas=True):
    """MSDSampBlock.forward (the use_dilations=False branch of MSDnet)."""
    n_layers = len(params)
    n, c_in, h, w = x_nchw.shape
    n_features = params[0][0].shape[1]
    c_total = c_in + n_features * n_layers
    budget = _vmem_budget_bytes()

    padding = _get_alignment_padding((h, w), n_levels=max(dilations) - 1,
                                     kernel_size=3)
    pw_l, pw_r, ph_l, ph_r = padding          # ReplicationPad2d order (W, H)

    # Single channel-first latent buffer: each layer writes its feature slice
    # in place instead of O(L^2) concatenations.
    x_cf = jnp.transpose(x_nchw, (1, 0, 2, 3))
    x_cf = jnp.pad(x_cf, ((0, 0), (0, 0), (ph_l, ph_r), (pw_l, pw_r)),
                   mode="edge")
    hp0, wp0 = h + ph_l + ph_r, w + pw_l + pw_r
    latent = jnp.zeros((c_total, n, hp0, wp0), jnp.float32)
    latent = lax.dynamic_update_slice(latent, x_cf, (0, 0, 0, 0))

    c_off = c_in
    for i in range(n_layers):
        f = 2 ** (dilations[i % len(dilations)] - 1)     # _layer_sampling
        w9, b, gamma, beta = params[i]
        inp = latent[:c_off]
        if f > 1:
            inp = _avg_pool_cf(inp, f)
        y = _conv_bn_lrelu(inp, w9, b, gamma, beta, budget, use_pallas)
        if f > 1:
            y = _upsample_bilinear_cf(y, f)
        latent = lax.dynamic_update_slice(latent, y, (c_off, 0, 0, 0))
        c_off += y.shape[0]

    # Faithful to the PyTorch crop (zip(padding[::2], x.shape[2:])): the H
    # crop offset uses padding[0] (W-left) and the W crop uses padding[2]
    # (H-top) -- this index swap exists in the reference code.
    out = latent[:, :, padding[0]:padding[0] + h, padding[2]:padding[2] + w]
    return jnp.transpose(out, (1, 0, 2, 3))               # -> NCHW


def msdnet_forward(x_nchw, block_params, outc_params, dilations, use_pallas=True):
    """MSDnet.forward (use_dilations=False): MSDSampBlock -> 1x1 output conv."""
    # TODO(synk): the use_dilations=True branch (MSDDilBlock, dilated convs
    # with replicate padding) can reuse the same halo-window kernel with
    # per-layer dilation offsets; not implemented here.
    latent = msd_samp_block_forward(x_nchw, block_params, dilations, use_pallas)
    wc, bc = outc_params
    if use_pallas:
        return _conv1x1_pallas(latent, wc, bc, _vmem_budget_bytes())
    return _conv1x1_xla(latent, wc, bc)


if __name__ == "__main__":
    n_ch_in, n_features, n_layers, n_ch_out = 4, 4, 3, 1
    dilations = (1, 2, 3)

    key = jax.random.PRNGKey(0)
    kx, kp = jax.random.split(key)
    x = jax.random.normal(kx, (2, n_ch_in, 16, 16), jnp.float32)
    block_params, outc_params = init_msd_params(kp, n_ch_in, n_features,
                                                n_layers, n_ch_out)

    fwd = jax.jit(lambda xx, bp, op: msdnet_forward(xx, bp, op, dilations, True))
    out = jax.block_until_ready(fwd(x, block_params, outc_params))

    assert out.shape == (2, n_ch_out, 16, 16), out.shape
    assert bool(jnp.all(jnp.isfinite(out)))

    # Independent XLA reference (lax.conv + explicit BatchNorm/LeakyReLU) with
    # the same intentional bf16-input / f32-accumulate precision policy.
    ref_fn = jax.jit(lambda xx, bp, op: msdnet_forward(xx, bp, op, dilations,
                                                       False))
    ref = jax.block_until_ready(ref_fn(x, block_params, outc_params))
    max_err = float(jnp.max(jnp.abs(out - ref)))
    assert bool(jnp.allclose(out, ref, atol=2e-2, rtol=2e-2)), max_err

    print("KERNEL_OK")
</pallas_src>

<mosaic_0001>
module attributes {stable_mosaic.version = 11 : i64} {
  func.func @_fused_conv_bn_lrelu_kernel(%arg0: i32, %arg1: i32, %arg2: memref<4x768xbf16, #tpu.memory_space<vmem>>, %arg3: memref<4x768xbf16, #tpu.memory_space<vmem>>, %arg4: memref<4x768xbf16, #tpu.memory_space<vmem>>, %arg5: memref<1x768xf32, #tpu.memory_space<vmem>>, %arg6: memref<9x4x4xbf16, #tpu.memory_space<vmem>>, %arg7: memref<4x1xf32, #tpu.memory_space<vmem>>, %arg8: memref<4x1xf32, #tpu.memory_space<vmem>>, %arg9: memref<4x768xf32, #tpu.memory_space<vmem>>, %arg10: memref<4x1536xf32, #tpu.memory_space<vmem>>, %arg11: memref<4x1xf32, #tpu.memory_space<vmem>>, %arg12: memref<4x1xf32, #tpu.memory_space<vmem>>) attributes {dimension_semantics = [#tpu.dimension_semantics<arbitrary>, #tpu.dimension_semantics<arbitrary>], iteration_bounds = array<i64: 2, 2>, scalar_prefetch = 0 : i64, scratch_operands = 3 : i64, tpu.core_type = #tpu.core_type<tc>, window_params = [{transform_indices = @transform_0, window_bounds = array<i64: 4, 768>}, {transform_indices = @transform_1, window_bounds = array<i64: 4, 768>}, {transform_indices = @transform_2, window_bounds = array<i64: 4, 768>}, {transform_indices = @transform_3, window_bounds = array<i64: 1, 768>}, {pipeline_mode = #tpu.pipeline_mode<synchronous>, transform_indices = @transform_4, window_bounds = array<i64: 9, 4, 4>}, {pipeline_mode = #tpu.pipeline_mode<synchronous>, transform_indices = @transform_5, window_bounds = array<i64: 4, 1>}, {pipeline_mode = #tpu.pipeline_mode<synchronous>, transform_indices = @transform_6, window_bounds = array<i64: 4, 1>}, {transform_indices = @transform_7, window_bounds = array<i64: 4, 768>}]} {
    %c768_i32 = arith.constant 768 : i32
    %0 = arith.muli %arg1, %c768_i32 : i32
    %1 = tpu.assume_multiple %0, 128 : i32
    %c0_i32 = arith.constant 0 : i32
    %2 = arith.cmpi eq, %arg0, %c0_i32 : i32
    %c0_i32_0 = arith.constant 0 : i32
    %3 = arith.cmpi eq, %arg1, %c0_i32_0 : i32
    %4 = arith.andi %2, %3 : i1
    %5 = arith.extui %4 : i1 to i32
    %c0_i32_1 = arith.constant 0 : i32
    %6 = arith.cmpi ne, %5, %c0_i32_1 : i32
    scf.if %6 {
      %cst = arith.constant 0.000000e+00 : f32
      %13 = vector.broadcast %cst : f32 to vector<4x1xf32>
      %c0 = arith.constant 0 : index
      %c0_5 = arith.constant 0 : index
      %14 = vector.load %arg11[%c0, %c0_5] : memref<4x1xf32, #tpu.memory_space<vmem>>, vector<4x1xf32>
      tpu.vector_store %arg11[%c0, %c0_5], %13 {strides = array<i32>} : memref<4x1xf32, #tpu.memory_space<vmem>>, vector<4x1xf32>,
      %cst_6 = arith.constant 0.000000e+00 : f32
      %15 = vector.broadcast %cst_6 : f32 to vector<4x1xf32>
      %c0_7 = arith.constant 0 : index
      %c0_8 = arith.constant 0 : index
      %16 = vector.load %arg12[%c0_7, %c0_8] : memref<4x1xf32, #tpu.memory_space<vmem>>, vector<4x1xf32>
      tpu.vector_store %arg12[%c0_7, %c0_8], %15 {strides = array<i32>} : memref<4x1xf32, #tpu.memory_space<vmem>>, vector<4x1xf32>,
    } else {
    }
    %c0_i32_2 = arith.constant 0 : i32
    %7 = arith.cmpi eq, %arg0, %c0_i32_2 : i32
    %8 = arith.extui %7 : i1 to i32
    %c0_i32_3 = arith.constant 0 : i32
    %9 = arith.cmpi ne, %8, %c0_i32_3 : i32
    scf.if %9 {
      %c0 = arith.constant 0 : index
      %c0_5 = arith.constant 0 : index
      %13 = vector.load %arg2[%c0, %c0_5] : memref<4x768xbf16, #tpu.memory_space<vmem>>, vector<4x768xbf16>
      %c0_6 = arith.constant 0 : index
      %c0_7 = arith.constant 0 : index
      %14 = vector.load %arg3[%c0_6, %c0_7] : memref<4x768xbf16, #tpu.memory_space<vmem>>, vector<4x768xbf16>
      %c0_8 = arith.constant 0 : index
      %c0_9 = arith.constant 0 : index
      %15 = vector.load %arg4[%c0_8, %c0_9] : memref<4x768xbf16, #tpu.memory_space<vmem>>, vector<4x768xbf16>
      %16 = tpu.concatenate %13, %14, %15 in 1 : vector<4x768xbf16>, vector<4x768xbf16>, vector<4x768xbf16> -> vector<4x2304xbf16>
      %cst = arith.constant 0.000000e+00 : f32
      %17 = vector.broadcast %cst : f32 to vector<4x768xf32>
      %18 = vector.extract_strided_slice %16 {offsets = [0, 741], sizes = [4, 768], strides = [1, 1]} : vector<4x2304xbf16> to vector<4x768xbf16>
      %c0_10 = arith.constant 0 : index
      %c0_11 = arith.constant 0 : index
      %c0_12 = arith.constant 0 : index
      %19 = vector.load %arg6[%c0_10, %c0_11, %c0_12] : memref<9x4x4xbf16, #tpu.memory_space<vmem>>, vector<1x4x4xbf16>
      %20 = vector.shape_cast %19 : vector<1x4x4xbf16> to vector<4x4xbf16>
      %cst_13 = arith.constant dense<0.000000e+00> : vector<4x768xf32>
      %21 = tpu.matmul %20, %18, %cst_13 {dimension_numbers = #tpu.dot_dimension_numbers<[1], [0], [0], [1], [0, 0, 1, 1], [], []>} : vector<4x4xbf16>, vector<4x768xbf16>, vector<4x768xf32> -> vector<4x768xf32>
      %22 = arith.addf %17, %21 : vector<4x768xf32>
      %23 = vector.extract_strided_slice %16 {offsets = [0, 742], sizes = [4, 768], strides = [1, 1]} : vector<4x2304xbf16> to vector<4x768xbf16>
      %c1 = arith.constant 1 : index
      %c0_14 = arith.constant 0 : index
      %c0_15 = arith.constant 0 : index
      %24 = vector.load %arg6[%c1, %c0_14, %c0_15] : memref<9x4x4xbf16, #tpu.memory_space<vmem>>, vector<1x4x4xbf16>
      %25 = vector.shape_cast %24 : vector<1x4x4xbf16> to vector<4x4xbf16>
      %cst_16 = arith.constant dense<0.000000e+00> : vector<4x768xf32>
      %26 = tpu.matmul %25, %23, %cst_16 {dimension_numbers = #tpu.dot_dimension_numbers<[1], [0], [0], [1], [0, 0, 1, 1], [], []>} : vector<4x4xbf16>, vector<4x768xbf16>, vector<4x768xf32> -> vector<4x768xf32>
      %27 = arith.addf %22, %26 : vector<4x768xf32>
      %28 = vector.extract_strided_slice %16 {offsets = [0, 743], sizes = [4, 768], strides = [1, 1]} : vector<4x2304xbf16> to vector<4x768xbf16>
      %c2 = arith.constant 2 : index
      %c0_17 = arith.constant 0 : index
      %c0_18 = arith.constant 0 : index
      %29 = vector.load %arg6[%c2, %c0_17, %c0_18] : memref<9x4x4xbf16, #tpu.memory_space<vmem>>, vector<1x4x4xbf16>
      %30 = vector.shape_cast %29 : vector<1x4x4xbf16> to vector<4x4xbf16>
      %cst_19 = arith.constant dense<0.000000e+00> : vector<4x768xf32>
      %31 = tpu.matmul %30, %28, %cst_19 {dimension_numbers = #tpu.dot_dimension_numbers<[1], [0], [0], [1], [0, 0, 1, 1], [], []>} : vector<4x4xbf16>, vector<4x768xbf16>, vector<4x768xf32> -> vector<4x768xf32>
      %32 = arith.addf %27, %31 : vector<4x768xf32>
      %33 = vector.extract_strided_slice %16 {offsets = [0, 767], sizes = [4, 768], strides = [1, 1]} : vector<4x2304xbf16> to vector<4x768xbf16>
      %c3 = arith.constant 3 : index
      %c0_20 = arith.constant 0 : index
      %c0_21 = arith.constant 0 : index
      %34 = vector.load %arg6[%c3, %c0_20, %c0_21] : memref<9x4x4xbf16, #tpu.memory_space<vmem>>, vector<1x4x4xbf16>
      %35 = vector.shape_cast %34 : vector<1x4x4xbf16> to vector<4x4xbf16>
      %cst_22 = arith.constant dense<0.000000e+00> : vector<4x768xf32>
      %36 = tpu.matmul %35, %33, %cst_22 {dimension_numbers = #tpu.dot_dimension_numbers<[1], [0], [0], [1], [0, 0, 1, 1], [], []>} : vector<4x4xbf16>, vector<4x768xbf16>, vector<4x768xf32> -> vector<4x768xf32>
      %37 = arith.addf %32, %36 : vector<4x768xf32>
      %38 = vector.extract_strided_slice %16 {offsets = [0, 768], sizes = [4, 768], strides = [1, 1]} : vector<4x2304xbf16> to vector<4x768xbf16>
      %c4 = arith.constant 4 : index
      %c0_23 = arith.constant 0 : index
      %c0_24 = arith.constant 0 : index
      %39 = vector.load %arg6[%c4, %c0_23, %c0_24] : memref<9x4x4xbf16, #tpu.memory_space<vmem>>, vector<1x4x4xbf16>
      %40 = vector.shape_cast %39 : vector<1x4x4xbf16> to vector<4x4xbf16>
      %cst_25 = arith.constant dense<0.000000e+00> : vector<4x768xf32>
      %41 = tpu.matmul %40, %38, %cst_25 {dimension_numbers = #tpu.dot_dimension_numbers<[1], [0], [0], [1], [0, 0, 1, 1], [], []>} : vector<4x4xbf16>, vector<4x768xbf16>, vector<4x768xf32> -> vector<4x768xf32>
      %42 = arith.addf %37, %41 : vector<4x768xf32>
      %43 = vector.extract_strided_slice %16 {offsets = [0, 769], sizes = [4, 768], strides = [1, 1]} : vector<4x2304xbf16> to vector<4x768xbf16>
      %c5 = arith.constant 5 : index
      %c0_26 = arith.constant 0 : index
      %c0_27 = arith.constant 0 : index
      %44 = vector.load %arg6[%c5, %c0_26, %c0_27] : memref<9x4x4xbf16, #tpu.memory_space<vmem>>, vector<1x4x4xbf16>
      %45 = vector.shape_cast %44 : vector<1x4x4xbf16> to vector<4x4xbf16>
      %cst_28 = arith.constant dense<0.000000e+00> : vector<4x768xf32>
      %46 = tpu.matmul %45, %43, %cst_28 {dimension_numbers = #tpu.dot_dimension_numbers<[1], [0], [0], [1], [0, 0, 1, 1], [], []>} : vector<4x4xbf16>, vector<4x768xbf16>, vector<4x768xf32> -> vector<4x768xf32>
      %47 = arith.addf %42, %46 : vector<4x768xf32>
      %48 = vector.extract_strided_slice %16 {offsets = [0, 793], sizes = [4, 768], strides = [1, 1]} : vector<4x2304xbf16> to vector<4x768xbf16>
      %c6 = arith.constant 6 : index
      %c0_29 = arith.constant 0 : index
      %c0_30 = arith.constant 0 : index
      %49 = vector.load %arg6[%c6, %c0_29, %c0_30] : memref<9x4x4xbf16, #tpu.memory_space<vmem>>, vector<1x4x4xbf16>
      %50 = vector.shape_cast %49 : vector<1x4x4xbf16> to vector<4x4xbf16>
      %cst_31 = arith.constant dense<0.000000e+00> : vector<4x768xf32>
      %51 = tpu.matmul %50, %48, %cst_31 {dimension_numbers = #tpu.dot_dimension_numbers<[1], [0], [0], [1], [0, 0, 1, 1], [], []>} : vector<4x4xbf16>, vector<4x768xbf16>, vector<4x768xf32> -> vector<4x768xf32>
      %52 = arith.addf %47, %51 : vector<4x768xf32>
      %53 = vector.extract_strided_slice %16 {offsets = [0, 794], sizes = [4, 768], strides = [1, 1]} : vector<4x2304xbf16> to vector<4x768xbf16>
      %c7 = arith.constant 7 : index
      %c0_32 = arith.constant 0 : index
      %c0_33 = arith.constant 0 : index
      %54 = vector.load %arg6[%c7, %c0_32, %c0_33] : memref<9x4x4xbf16, #tpu.memory_space<vmem>>, vector<1x4x4xbf16>
      %55 = vector.shape_cast %54 : vector<1x4x4xbf16> to vector<4x4xbf16>
      %cst_34 = arith.constant dense<0.000000e+00> : vector<4x768xf32>
      %56 = tpu.matmul %55, %53, %cst_34 {dimension_numbers = #tpu.dot_dimension_numbers<[1], [0], [0], [1], [0, 0, 1, 1], [], []>} : vector<4x4xbf16>, vector<4x768xbf16>, vector<4x768xf32> -> vector<4x768xf32>
      %57 = arith.addf %52, %56 : vector<4x768xf32>
      %58 = vector.extract_strided_slice %16 {offsets = [0, 795], sizes = [4, 768], strides = [1, 1]} : vector<4x2304xbf16> to vector<4x768xbf16>
      %c8 = arith.constant 8 : index
      %c0_35 = arith.constant 0 : index
      %c0_36 = arith.constant 0 : index
      %59 = vector.load %arg6[%c8, %c0_35, %c0_36] : memref<9x4x4xbf16, #tpu.memory_space<vmem>>, vector<1x4x4xbf16>
      %60 = vector.shape_cast %59 : vector<1x4x4xbf16> to vector<4x4xbf16>
      %cst_37 = arith.constant dense<0.000000e+00> : vector<4x768xf32>
      %61 = tpu.matmul %60, %58, %cst_37 {dimension_numbers = #tpu.dot_dimension_numbers<[1], [0], [0], [1], [0, 0, 1, 1], [], []>} : vector<4x4xbf16>, vector<4x768xbf16>, vector<4x768xf32> -> vector<4x768xf32>
      %62 = arith.addf %57, %61 : vector<4x768xf32>
      %c0_38 = arith.constant 0 : index
      %c0_39 = arith.constant 0 : index
      %63 = vector.load %arg5[%c0_38, %c0_39] : memref<1x768xf32, #tpu.memory_space<vmem>>, vector<1x768xf32>
      %64 = vector.broadcast %63 : vector<1x768xf32> to vector<4x768xf32>
      %65 = arith.mulf %62, %64 : vector<4x768xf32>
      %c0_40 = arith.constant 0 : index
      %c0_41 = arith.constant 0 : index
      %66 = vector.load %arg11[%c0_40, %c0_41] : memref<4x1xf32, #tpu.memory_space<vmem>>, vector<4x1xf32>
      %cst_42 = arith.constant dense<0.000000e+00> : vector<4xf32>
      %67 = vector.multi_reduction <add>, %65, %cst_42 [1] : vector<4x768xf32> to vector<4xf32>
      %68 = vector.shape_cast %67 : vector<4xf32> to vector<4x1xf32>
      %69 = arith.addf %66, %68 : vector<4x1xf32>
      %c0_43 = arith.constant 0 : index
      %c0_44 = arith.constant 0 : index
      %70 = vector.load %arg11[%c0_43, %c0_44] : memref<4x1xf32, #tpu.memory_space<vmem>>, vector<4x1xf32>
      tpu.vector_store %arg11[%c0_43, %c0_44], %69 {strides = array<i32>} : memref<4x1xf32, #tpu.memory_space<vmem>>, vector<4x1xf32>,
      %c0_45 = arith.constant 0 : index
      %c0_46 = arith.constant 0 : index
      %71 = vector.load %arg12[%c0_45, %c0_46] : memref<4x1xf32, #tpu.memory_space<vmem>>, vector<4x1xf32>
      %72 = arith.mulf %65, %65 : vector<4x768xf32>
      %cst_47 = arith.constant dense<0.000000e+00> : vector<4xf32>
      %73 = vector.multi_reduction <add>, %72, %cst_47 [1] : vector<4x768xf32> to vector<4xf32>
      %74 = vector.shape_cast %73 : vector<4xf32> to vector<4x1xf32>
      %75 = arith.addf %71, %74 : vector<4x1xf32>
      %c0_48 = arith.constant 0 : index
      %c0_49 = arith.constant 0 : index
      %76 = vector.load %arg12[%c0_48, %c0_49] : memref<4x1xf32, #tpu.memory_space<vmem>>, vector<4x1xf32>
      tpu.vector_store %arg12[%c0_48, %c0_49], %75 {strides = array<i32>} : memref<4x1xf32, #tpu.memory_space<vmem>>, vector<4x1xf32>,
      %c0_50 = arith.constant 0 : index
      %77 = arith.index_cast %1 : i32 to index
      %78 = vector.load %arg10[%c0_50, %77] : memref<4x1536xf32, #tpu.memory_space<vmem>>, vector<4x768xf32>
      tpu.vector_store %arg10[%c0_50, %77], %62 {strides = array<i32>} : memref<4x1536xf32, #tpu.memory_space<vmem>>, vector<4x768xf32>,
    } else {
    }
    %c1_i32 = arith.constant 1 : i32
    %10 = arith.cmpi eq, %arg0, %c1_i32 : i32
    %11 = arith.extui %10 : i1 to i32
    %c0_i32_4 = arith.constant 0 : i32
    %12 = arith.cmpi ne, %11, %c0_i32_4 : i32
    scf.if %12 {
      %c0 = arith.constant 0 : index
      %c0_5 = arith.constant 0 : index
      %13 = vector.load %arg11[%c0, %c0_5] : memref<4x1xf32, #tpu.memory_space<vmem>>, vector<4x1xf32>
      %cst = arith.constant 8.68055562E-4 : f32
      %14 = vector.broadcast %cst : f32 to vector<4x1xf32>
      %15 = arith.mulf %13, %14 : vector<4x1xf32>
      %c0_6 = arith.constant 0 : index
      %c0_7 = arith.constant 0 : index
      %16 = vector.load %arg12[%c0_6, %c0_7] : memref<4x1xf32, #tpu.memory_space<vmem>>, vector<4x1xf32>
      %cst_8 = arith.constant 8.68055562E-4 : f32
      %17 = vector.broadcast %cst_8 : f32 to vector<4x1xf32>
      %18 = arith.mulf %16, %17 : vector<4x1xf32>
      %19 = arith.mulf %15, %15 : vector<4x1xf32>
      %20 = arith.subf %18, %19 : vector<4x1xf32>
      %cst_9 = arith.constant 0.000000e+00 : f32
      %21 = vector.broadcast %cst_9 : f32 to vector<4x1xf32>
      %22 = arith.maximumf %20, %21 : vector<4x1xf32>
      %c0_10 = arith.constant 0 : index
      %c0_11 = arith.constant 0 : index
      %23 = vector.load %arg7[%c0_10, %c0_11] : memref<4x1xf32, #tpu.memory_space<vmem>>, vector<4x1xf32>
      %cst_12 = arith.constant 9.99999974E-6 : f32
      %24 = vector.broadcast %cst_12 : f32 to vector<4x1xf32>
      %25 = arith.addf %22, %24 : vector<4x1xf32>
      %26 = math.rsqrt %25 : vector<4x1xf32>
      %27 = arith.mulf %23, %26 : vector<4x1xf32>
      %c0_13 = arith.constant 0 : index
      %c0_14 = arith.constant 0 : index
      %28 = vector.load %arg8[%c0_13, %c0_14] : memref<4x1xf32, #tpu.memory_space<vmem>>, vector<4x1xf32>
      %29 = arith.mulf %27, %15 : vector<4x1xf32>
      %30 = arith.subf %28, %29 : vector<4x1xf32>
      %c0_15 = arith.constant 0 : index
      %31 = arith.index_cast %1 : i32 to index
      %32 = vector.load %arg10[%c0_15, %31] : memref<4x1536xf32, #tpu.memory_space<vmem>>, vector<4x768xf32>
      %33 = vector.broadcast %27 : vector<4x1xf32> to vector<4x768xf32>
      %34 = arith.mulf %32, %33 : vector<4x768xf32>
      %35 = vector.broadcast %30 : vector<4x1xf32> to vector<4x768xf32>
      %36 = arith.addf %34, %35 : vector<4x768xf32>
      %cst_16 = arith.constant 0.000000e+00 : f32
      %37 = vector.broadcast %cst_16 : f32 to vector<4x768xf32>
      %38 = arith.cmpf ogt, %36, %37 : vector<4x768xf32>
      %cst_17 = arith.constant 2.000000e-01 : f32
      %39 = vector.broadcast %cst_17 : f32 to vector<4x768xf32>
      %40 = arith.mulf %39, %36 : vector<4x768xf32>
      %41 = arith.select %38, %36, %40 : vector<4x768xi1>, vector<4x768xf32>
      %c0_18 = arith.constant 0 : index
      %c0_19 = arith.constant 0 : index
      %42 = vector.load %arg9[%c0_18, %c0_19] : memref<4x768xf32, #tpu.memory_space<vmem>>, vector<4x768xf32>
      tpu.vector_store %arg9[%c0_18, %c0_19], %41 {strides = array<i32>} : memref<4x768xf32, #tpu.memory_space<vmem>>, vector<4x768xf32>,
    } else {
    }
    return
  }
  func.func @transform_0(%arg0: i32, %arg1: i32) -> (i32, i32) {
    %c1_i32 = arith.constant 1 : i32
    %0 = arith.subi %arg1, %c1_i32 : i32
    %c0_i32 = arith.constant 0 : i32
    %1 = arith.maxsi %0, %c0_i32 : i32
    %c1_i32_0 = arith.constant 1 : i32
    %2 = arith.subi %c1_i32_0, %arg0 : i32
    %3 = arith.muli %1, %2 : i32
    %c0_i32_1 = arith.constant 0 : i32
    %c0_i32_2 = arith.constant 0 : i32
    return %c0_i32_1, %3 : i32, i32
  }
  func.func @transform_1(%arg0: i32, %arg1: i32) -> (i32, i32) {
    %c1_i32 = arith.constant 1 : i32
    %0 = arith.subi %c1_i32, %arg0 : i32
    %1 = arith.muli %arg1, %0 : i32
    %c0_i32 = arith.constant 0 : i32
    %c0_i32_0 = arith.constant 0 : i32
    return %c0_i32, %1 : i32, i32
  }
  func.func @transform_2(%arg0: i32, %arg1: i32) -> (i32, i32) {
    %c1_i32 = arith.constant 1 : i32
    %0 = arith.addi %arg1, %c1_i32 : i32
    %c1_i32_0 = arith.constant 1 : i32
    %1 = arith.minsi %0, %c1_i32_0 : i32
    %c1_i32_1 = arith.constant 1 : i32
    %2 = arith.subi %c1_i32_1, %arg0 : i32
    %3 = arith.muli %1, %2 : i32
    %c0_i32 = arith.constant 0 : i32
    %c0_i32_2 = arith.constant 0 : i32
    return %c0_i32, %3 : i32, i32
  }
  func.func @transform_3(%arg0: i32, %arg1: i32) -> (i32, i32) {
    %c1_i32 = arith.constant 1 : i32
    %0 = arith.subi %c1_i32, %arg0 : i32
    %1 = arith.muli %arg1, %0 : i32
    %c0_i32 = arith.constant 0 : i32
    %c0_i32_0 = arith.constant 0 : i32
    return %c0_i32, %1 : i32, i32
  }
  func.func @transform_4(%arg0: i32, %arg1: i32) -> (i32, i32, i32) {
    %c0_i32 = arith.constant 0 : i32
    %c0_i32_0 = arith.constant 0 : i32
    %c0_i32_1 = arith.constant 0 : i32
    %c0_i32_2 = arith.constant 0 : i32
    return %c0_i32, %c0_i32_0, %c0_i32_1 : i32, i32, i32
  }
  func.func @transform_5(%arg0: i32, %arg1: i32) -> (i32, i32) {
    %c0_i32 = arith.constant 0 : i32
    %c0_i32_0 = arith.constant 0 : i32
    %c0_i32_1 = arith.constant 0 : i32
    return %c0_i32, %c0_i32_0 : i32, i32
  }
  func.func @transform_6(%arg0: i32, %arg1: i32) -> (i32, i32) {
    %c0_i32 = arith.constant 0 : i32
    %c0_i32_0 = arith.constant 0 : i32
    %c0_i32_1 = arith.constant 0 : i32
    return %c0_i32, %c0_i32_0 : i32, i32
  }
  func.func @transform_7(%arg0: i32, %arg1: i32) -> (i32, i32) {
    %0 = arith.muli %arg1, %arg0 : i32
    %c0_i32 = arith.constant 0 : i32
    %c0_i32_0 = arith.constant 0 : i32
    return %c0_i32, %0 : i32, i32
  }
}

module attributes {stable_mosaic.version = 11 : i64} {
  func.func @_fused_conv_bn_lrelu_kernel(%arg0: i32, %arg1: i32, %arg2: memref<8x256xbf16, #tpu.memory_space<vmem>>, %arg3: memref<8x256xbf16, #tpu.memory_space<vmem>>, %arg4: memref<8x256xbf16, #tpu.memory_space<vmem>>, %arg5: memref<1x256xf32, #tpu.memory_space<vmem>>, %arg6: memref<9x4x8xbf16, #tpu.memory_space<vmem>>, %arg7: memref<4x1xf32, #tpu.memory_space<vmem>>, %arg8: memref<4x1xf32, #tpu.memory_space<vmem>>, %arg9: memref<4x256xf32, #tpu.memory_space<vmem>>, %arg10: memref<4x512xf32, #tpu.memory_space<vmem>>, %arg11: memref<4x1xf32, #tpu.memory_space<vmem>>, %arg12: memref<4x1xf32, #tpu.memory_space<vmem>>) attributes {dimension_semantics = [#tpu.dimension_semantics<arbitrary>, #tpu.dimension_semantics<arbitrary>], iteration_bounds = array<i64: 2, 2>, scalar_prefetch = 0 : i64, scratch_operands = 3 : i64, tpu.core_type = #tpu.core_type<tc>, window_params = [{transform_indices = @transform_0, window_bounds = array<i64: 8, 256>}, {transform_indices = @transform_1, window_bounds = array<i64: 8, 256>}, {transform_indices = @transform_2, window_bounds = array<i64: 8, 256>}, {transform_indices = @transform_3, window_bounds = array<i64: 1, 256>}, {pipeline_mode = #tpu.pipeline_mode<synchronous>, transform_indices = @transform_4, window_bounds = array<i64: 9, 4, 8>}, {pipeline_mode = #tpu.pipeline_mode<synchronous>, transform_indices = @transform_5, window_bounds = array<i64: 4, 1>}, {pipeline_mode = #tpu.pipeline_mode<synchronous>, transform_indices = @transform_6, window_bounds = array<i64: 4, 1>}, {transform_indices = @transform_7, window_bounds = array<i64: 4, 256>}]} {
    %c256_i32 = arith.constant 256 : i32
    %0 = arith.muli %arg1, %c256_i32 : i32
    %1 = tpu.assume_multiple %0, 128 : i32
    %c0_i32 = arith.constant 0 : i32
    %2 = arith.cmpi eq, %arg0, %c0_i32 : i32
    %c0_i32_0 = arith.constant 0 : i32
    %3 = arith.cmpi eq, %arg1, %c0_i32_0 : i32
    %4 = arith.andi %2, %3 : i1
    %5 = arith.extui %4 : i1 to i32
    %c0_i32_1 = arith.constant 0 : i32
    %6 = arith.cmpi ne, %5, %c0_i32_1 : i32
    scf.if %6 {
      %cst = arith.constant 0.000000e+00 : f32
      %13 = vector.broadcast %cst : f32 to vector<4x1xf32>
      %c0 = arith.constant 0 : index
      %c0_5 = arith.constant 0 : index
      %14 = vector.load %arg11[%c0, %c0_5] : memref<4x1xf32, #tpu.memory_space<vmem>>, vector<4x1xf32>
      tpu.vector_store %arg11[%c0, %c0_5], %13 {strides = array<i32>} : memref<4x1xf32, #tpu.memory_space<vmem>>, vector<4x1xf32>,
      %cst_6 = arith.constant 0.000000e+00 : f32
      %15 = vector.broadcast %cst_6 : f32 to vector<4x1xf32>
      %c0_7 = arith.constant 0 : index
      %c0_8 = arith.constant 0 : index
      %16 = vector.load %arg12[%c0_7, %c0_8] : memref<4x1xf32, #tpu.memory_space<vmem>>, vector<4x1xf32>
      tpu.vector_store %arg12[%c0_7, %c0_8], %15 {strides = array<i32>} : memref<4x1xf32, #tpu.memory_space<vmem>>, vector<4x1xf32>,
    } else {
    }
    %c0_i32_2 = arith.constant 0 : i32
    %7 = arith.cmpi eq, %arg0, %c0_i32_2 : i32
    %8 = arith.extui %7 : i1 to i32
    %c0_i32_3 = arith.constant 0 : i32
    %9 = arith.cmpi ne, %8, %c0_i32_3 : i32
    scf.if %9 {
      %c0 = arith.constant 0 : index
      %c0_5 = arith.constant 0 : index
      %13 = vector.load %arg2[%c0, %c0_5] : memref<8x256xbf16, #tpu.memory_space<vmem>>, vector<8x256xbf16>
      %c0_6 = arith.constant 0 : index
      %c0_7 = arith.constant 0 : index
      %14 = vector.load %arg3[%c0_6, %c0_7] : memref<8x256xbf16, #tpu.memory_space<vmem>>, vector<8x256xbf16>
      %c0_8 = arith.constant 0 : index
      %c0_9 = arith.constant 0 : index
      %15 = vector.load %arg4[%c0_8, %c0_9] : memref<8x256xbf16, #tpu.memory_space<vmem>>, vector<8x256xbf16>
      %16 = tpu.concatenate %13, %14, %15 in 1 : vector<8x256xbf16>, vector<8x256xbf16>, vector<8x256xbf16> -> vector<8x768xbf16>
      %cst = arith.constant 0.000000e+00 : f32
      %17 = vector.broadcast %cst : f32 to vector<4x256xf32>
      %18 = vector.extract_strided_slice %16 {offsets = [0, 241], sizes = [8, 256], strides = [1, 1]} : vector<8x768xbf16> to vector<8x256xbf16>
      %c0_10 = arith.constant 0 : index
      %c0_11 = arith.constant 0 : index
      %c0_12 = arith.constant 0 : index
      %19 = vector.load %arg6[%c0_10, %c0_11, %c0_12] : memref<9x4x8xbf16, #tpu.memory_space<vmem>>, vector<1x4x8xbf16>
      %20 = vector.shape_cast %19 : vector<1x4x8xbf16> to vector<4x8xbf16>
      %cst_13 = arith.constant dense<0.000000e+00> : vector<4x256xf32>
      %21 = tpu.matmul %20, %18, %cst_13 {dimension_numbers = #tpu.dot_dimension_numbers<[1], [0], [0], [1], [0, 0, 1, 1], [], []>} : vector<4x8xbf16>, vector<8x256xbf16>, vector<4x256xf32> -> vector<4x256xf32>
      %22 = arith.addf %17, %21 : vector<4x256xf32>
      %23 = vector.extract_strided_slice %16 {offsets = [0, 242], sizes = [8, 256], strides = [1, 1]} : vector<8x768xbf16> to vector<8x256xbf16>
      %c1 = arith.constant 1 : index
      %c0_14 = arith.constant 0 : index
      %c0_15 = arith.constant 0 : index
      %24 = vector.load %arg6[%c1, %c0_14, %c0_15] : memref<9x4x8xbf16, #tpu.memory_space<vmem>>, vector<1x4x8xbf16>
      %25 = vector.shape_cast %24 : vector<1x4x8xbf16> to vector<4x8xbf16>
      %cst_16 = arith.constant dense<0.000000e+00> : vector<4x256xf32>
      %26 = tpu.matmul %25, %23, %cst_16 {dimension_numbers = #tpu.dot_dimension_numbers<[1], [0], [0], [1], [0, 0, 1, 1], [], []>} : vector<4x8xbf16>, vector<8x256xbf16>, vector<4x256xf32> -> vector<4x256xf32>
      %27 = arith.addf %22, %26 : vector<4x256xf32>
      %28 = vector.extract_strided_slice %16 {offsets = [0, 243], sizes = [8, 256], strides = [1, 1]} : vector<8x768xbf16> to vector<8x256xbf16>
      %c2 = arith.constant 2 : index
      %c0_17 = arith.constant 0 : index
      %c0_18 = arith.constant 0 : index
      %29 = vector.load %arg6[%c2, %c0_17, %c0_18] : memref<9x4x8xbf16, #tpu.memory_space<vmem>>, vector<1x4x8xbf16>
      %30 = vector.shape_cast %29 : vector<1x4x8xbf16> to vector<4x8xbf16>
      %cst_19 = arith.constant dense<0.000000e+00> : vector<4x256xf32>
      %31 = tpu.matmul %30, %28, %cst_19 {dimension_numbers = #tpu.dot_dimension_numbers<[1], [0], [0], [1], [0, 0, 1, 1], [], []>} : vector<4x8xbf16>, vector<8x256xbf16>, vector<4x256xf32> -> vector<4x256xf32>
      %32 = arith.addf %27, %31 : vector<4x256xf32>
      %33 = vector.extract_strided_slice %16 {offsets = [0, 255], sizes = [8, 256], strides = [1, 1]} : vector<8x768xbf16> to vector<8x256xbf16>
      %c3 = arith.constant 3 : index
      %c0_20 = arith.constant 0 : index
      %c0_21 = arith.constant 0 : index
      %34 = vector.load %arg6[%c3, %c0_20, %c0_21] : memref<9x4x8xbf16, #tpu.memory_space<vmem>>, vector<1x4x8xbf16>
      %35 = vector.shape_cast %34 : vector<1x4x8xbf16> to vector<4x8xbf16>
      %cst_22 = arith.constant dense<0.000000e+00> : vector<4x256xf32>
      %36 = tpu.matmul %35, %33, %cst_22 {dimension_numbers = #tpu.dot_dimension_numbers<[1], [0], [0], [1], [0, 0, 1, 1], [], []>} : vector<4x8xbf16>, vector<8x256xbf16>, vector<4x256xf32> -> vector<4x256xf32>
      %37 = arith.addf %32, %36 : vector<4x256xf32>
      %38 = vector.extract_strided_slice %16 {offsets = [0, 256], sizes = [8, 256], strides = [1, 1]} : vector<8x768xbf16> to vector<8x256xbf16>
      %c4 = arith.constant 4 : index
      %c0_23 = arith.constant 0 : index
      %c0_24 = arith.constant 0 : index
      %39 = vector.load %arg6[%c4, %c0_23, %c0_24] : memref<9x4x8xbf16, #tpu.memory_space<vmem>>, vector<1x4x8xbf16>
      %40 = vector.shape_cast %39 : vector<1x4x8xbf16> to vector<4x8xbf16>
      %cst_25 = arith.constant dense<0.000000e+00> : vector<4x256xf32>
      %41 = tpu.matmul %40, %38, %cst_25 {dimension_numbers = #tpu.dot_dimension_numbers<[1], [0], [0], [1], [0, 0, 1, 1], [], []>} : vector<4x8xbf16>, vector<8x256xbf16>, vector<4x256xf32> -> vector<4x256xf32>
      %42 = arith.addf %37, %41 : vector<4x256xf32>
      %43 = vector.extract_strided_slice %16 {offsets = [0, 257], sizes = [8, 256], strides = [1, 1]} : vector<8x768xbf16> to vector<8x256xbf16>
      %c5 = arith.constant 5 : index
      %c0_26 = arith.constant 0 : index
      %c0_27 = arith.constant 0 : index
      %44 = vector.load %arg6[%c5, %c0_26, %c0_27] : memref<9x4x8xbf16, #tpu.memory_space<vmem>>, vector<1x4x8xbf16>
      %45 = vector.shape_cast %44 : vector<1x4x8xbf16> to vector<4x8xbf16>
      %cst_28 = arith.constant dense<0.000000e+00> : vector<4x256xf32>
      %46 = tpu.matmul %45, %43, %cst_28 {dimension_numbers = #tpu.dot_dimension_numbers<[1], [0], [0], [1], [0, 0, 1, 1], [], []>} : vector<4x8xbf16>, vector<8x256xbf16>, vector<4x256xf32> -> vector<4x256xf32>
      %47 = arith.addf %42, %46 : vector<4x256xf32>
      %48 = vector.extract_strided_slice %16 {offsets = [0, 269], sizes = [8, 256], strides = [1, 1]} : vector<8x768xbf16> to vector<8x256xbf16>
      %c6 = arith.constant 6 : index
      %c0_29 = arith.constant 0 : index
      %c0_30 = arith.constant 0 : index
      %49 = vector.load %arg6[%c6, %c0_29, %c0_30] : memref<9x4x8xbf16, #tpu.memory_space<vmem>>, vector<1x4x8xbf16>
      %50 = vector.shape_cast %49 : vector<1x4x8xbf16> to vector<4x8xbf16>
      %cst_31 = arith.constant dense<0.000000e+00> : vector<4x256xf32>
      %51 = tpu.matmul %50, %48, %cst_31 {dimension_numbers = #tpu.dot_dimension_numbers<[1], [0], [0], [1], [0, 0, 1, 1], [], []>} : vector<4x8xbf16>, vector<8x256xbf16>, vector<4x256xf32> -> vector<4x256xf32>
      %52 = arith.addf %47, %51 : vector<4x256xf32>
      %53 = vector.extract_strided_slice %16 {offsets = [0, 270], sizes = [8, 256], strides = [1, 1]} : vector<8x768xbf16> to vector<8x256xbf16>
      %c7 = arith.constant 7 : index
      %c0_32 = arith.constant 0 : index
      %c0_33 = arith.constant 0 : index
      %54 = vector.load %arg6[%c7, %c0_32, %c0_33] : memref<9x4x8xbf16, #tpu.memory_space<vmem>>, vector<1x4x8xbf16>
      %55 = vector.shape_cast %54 : vector<1x4x8xbf16> to vector<4x8xbf16>
      %cst_34 = arith.constant dense<0.000000e+00> : vector<4x256xf32>
      %56 = tpu.matmul %55, %53, %cst_34 {dimension_numbers = #tpu.dot_dimension_numbers<[1], [0], [0], [1], [0, 0, 1, 1], [], []>} : vector<4x8xbf16>, vector<8x256xbf16>, vector<4x256xf32> -> vector<4x256xf32>
      %57 = arith.addf %52, %56 : vector<4x256xf32>
      %58 = vector.extract_strided_slice %16 {offsets = [0, 271], sizes = [8, 256], strides = [1, 1]} : vector<8x768xbf16> to vector<8x256xbf16>
      %c8 = arith.constant 8 : index
      %c0_35 = arith.constant 0 : index
      %c0_36 = arith.constant 0 : index
      %59 = vector.load %arg6[%c8, %c0_35, %c0_36] : memref<9x4x8xbf16, #tpu.memory_space<vmem>>, vector<1x4x8xbf16>
      %60 = vector.shape_cast %59 : vector<1x4x8xbf16> to vector<4x8xbf16>
      %cst_37 = arith.constant dense<0.000000e+00> : vector<4x256xf32>
      %61 = tpu.matmul %60, %58, %cst_37 {dimension_numbers = #tpu.dot_dimension_numbers<[1], [0], [0], [1], [0, 0, 1, 1], [], []>} : vector<4x8xbf16>, vector<8x256xbf16>, vector<4x256xf32> -> vector<4x256xf32>
      %62 = arith.addf %57, %61 : vector<4x256xf32>
      %c0_38 = arith.constant 0 : index
      %c0_39 = arith.constant 0 : index
      %63 = vector.load %arg5[%c0_38, %c0_39] : memref<1x256xf32, #tpu.memory_space<vmem>>, vector<1x256xf32>
      %64 = vector.broadcast %63 : vector<1x256xf32> to vector<4x256xf32>
      %65 = arith.mulf %62, %64 : vector<4x256xf32>
      %c0_40 = arith.constant 0 : index
      %c0_41 = arith.constant 0 : index
      %66 = vector.load %arg11[%c0_40, %c0_41] : memref<4x1xf32, #tpu.memory_space<vmem>>, vector<4x1xf32>
      %cst_42 = arith.constant dense<0.000000e+00> : vector<4xf32>
      %67 = vector.multi_reduction <add>, %65, %cst_42 [1] : vector<4x256xf32> to vector<4xf32>
      %68 = vector.shape_cast %67 : vector<4xf32> to vector<4x1xf32>
      %69 = arith.addf %66, %68 : vector<4x1xf32>
      %c0_43 = arith.constant 0 : index
      %c0_44 = arith.constant 0 : index
      %70 = vector.load %arg11[%c0_43, %c0_44] : memref<4x1xf32, #tpu.memory_space<vmem>>, vector<4x1xf32>
      tpu.vector_store %arg11[%c0_43, %c0_44], %69 {strides = array<i32>} : memref<4x1xf32, #tpu.memory_space<vmem>>, vector<4x1xf32>,
      %c0_45 = arith.constant 0 : index
      %c0_46 = arith.constant 0 : index
      %71 = vector.load %arg12[%c0_45, %c0_46] : memref<4x1xf32, #tpu.memory_space<vmem>>, vector<4x1xf32>
      %72 = arith.mulf %65, %65 : vector<4x256xf32>
      %cst_47 = arith.constant dense<0.000000e+00> : vector<4xf32>
      %73 = vector.multi_reduction <add>, %72, %cst_47 [1] : vector<4x256xf32> to vector<4xf32>
      %74 = vector.shape_cast %73 : vector<4xf32> to vector<4x1xf32>
      %75 = arith.addf %71, %74 : vector<4x1xf32>
      %c0_48 = arith.constant 0 : index
      %c0_49 = arith.constant 0 : index
      %76 = vector.load %arg12[%c0_48, %c0_49] : memref<4x1xf32, #tpu.memory_space<vmem>>, vector<4x1xf32>
      tpu.vector_store %arg12[%c0_48, %c0_49], %75 {strides = array<i32>} : memref<4x1xf32, #tpu.memory_space<vmem>>, vector<4x1xf32>,
      %c0_50 = arith.constant 0 : index
      %77 = arith.index_cast %1 : i32 to index
      %78 = vector.load %arg10[%c0_50, %77] : memref<4x512xf32, #tpu.memory_space<vmem>>, vector<4x256xf32>
      tpu.vector_store %arg10[%c0_50, %77], %62 {strides = array<i32>} : memref<4x512xf32, #tpu.memory_space<vmem>>, vector<4x256xf32>,
    } else {
    }
    %c1_i32 = arith.constant 1 : i32
    %10 = arith.cmpi eq, %arg0, %c1_i32 : i32
    %11 = arith.extui %10 : i1 to i32
    %c0_i32_4 = arith.constant 0 : i32
    %12 = arith.cmpi ne, %11, %c0_i32_4 : i32
    scf.if %12 {
      %c0 = arith.constant 0 : index
      %c0_5 = arith.constant 0 : index
      %13 = vector.load %arg11[%c0, %c0_5] : memref<4x1xf32, #tpu.memory_space<vmem>>, vector<4x1xf32>
      %cst = arith.constant 0.00347222225 : f32
      %14 = vector.broadcast %cst : f32 to vector<4x1xf32>
      %15 = arith.mulf %13, %14 : vector<4x1xf32>
      %c0_6 = arith.constant 0 : index
      %c0_7 = arith.constant 0 : index
      %16 = vector.load %arg12[%c0_6, %c0_7] : memref<4x1xf32, #tpu.memory_space<vmem>>, vector<4x1xf32>
      %cst_8 = arith.constant 0.00347222225 : f32
      %17 = vector.broadcast %cst_8 : f32 to vector<4x1xf32>
      %18 = arith.mulf %16, %17 : vector<4x1xf32>
      %19 = arith.mulf %15, %15 : vector<4x1xf32>
      %20 = arith.subf %18, %19 : vector<4x1xf32>
      %cst_9 = arith.constant 0.000000e+00 : f32
      %21 = vector.broadcast %cst_9 : f32 to vector<4x1xf32>
      %22 = arith.maximumf %20, %21 : vector<4x1xf32>
      %c0_10 = arith.constant 0 : index
      %c0_11 = arith.constant 0 : index
      %23 = vector.load %arg7[%c0_10, %c0_11] : memref<4x1xf32, #tpu.memory_space<vmem>>, vector<4x1xf32>
      %cst_12 = arith.constant 9.99999974E-6 : f32
      %24 = vector.broadcast %cst_12 : f32 to vector<4x1xf32>
      %25 = arith.addf %22, %24 : vector<4x1xf32>
      %26 = math.rsqrt %25 : vector<4x1xf32>
      %27 = arith.mulf %23, %26 : vector<4x1xf32>
      %c0_13 = arith.constant 0 : index
      %c0_14 = arith.constant 0 : index
      %28 = vector.load %arg8[%c0_13, %c0_14] : memref<4x1xf32, #tpu.memory_space<vmem>>, vector<4x1xf32>
      %29 = arith.mulf %27, %15 : vector<4x1xf32>
      %30 = arith.subf %28, %29 : vector<4x1xf32>
      %c0_15 = arith.constant 0 : index
      %31 = arith.index_cast %1 : i32 to index
      %32 = vector.load %arg10[%c0_15, %31] : memref<4x512xf32, #tpu.memory_space<vmem>>, vector<4x256xf32>
      %33 = vector.broadcast %27 : vector<4x1xf32> to vector<4x256xf32>
      %34 = arith.mulf %32, %33 : vector<4x256xf32>
      %35 = vector.broadcast %30 : vector<4x1xf32> to vector<4x256xf32>
      %36 = arith.addf %34, %35 : vector<4x256xf32>
      %cst_16 = arith.constant 0.000000e+00 : f32
      %37 = vector.broadcast %cst_16 : f32 to vector<4x256xf32>
      %38 = arith.cmpf ogt, %36, %37 : vector<4x256xf32>
      %cst_17 = arith.constant 2.000000e-01 : f32
      %39 = vector.broadcast %cst_17 : f32 to vector<4x256xf32>
      %40 = arith.mulf %39, %36 : vector<4x256xf32>
      %41 = arith.select %38, %36, %40 : vector<4x256xi1>, vector<4x256xf32>
      %c0_18 = arith.constant 0 : index
      %c0_19 = arith.constant 0 : index
      %42 = vector.load %arg9[%c0_18, %c0_19] : memref<4x256xf32, #tpu.memory_space<vmem>>, vector<4x256xf32>
      tpu.vector_store %arg9[%c0_18, %c0_19], %41 {strides = array<i32>} : memref<4x256xf32, #tpu.memory_space<vmem>>, vector<4x256xf32>,
    } else {
    }
    return
  }
  func.func @transform_0(%arg0: i32, %arg1: i32) -> (i32, i32) {
    %c1_i32 = arith.constant 1 : i32
    %0 = arith.subi %arg1, %c1_i32 : i32
    %c0_i32 = arith.constant 0 : i32
    %1 = arith.maxsi %0, %c0_i32 : i32
    %c1_i32_0 = arith.constant 1 : i32
    %2 = arith.subi %c1_i32_0, %arg0 : i32
    %3 = arith.muli %1, %2 : i32
    %c0_i32_1 = arith.constant 0 : i32
    %c0_i32_2 = arith.constant 0 : i32
    return %c0_i32_1, %3 : i32, i32
  }
  func.func @transform_1(%arg0: i32, %arg1: i32) -> (i32, i32) {
    %c1_i32 = arith.constant 1 : i32
    %0 = arith.subi %c1_i32, %arg0 : i32
    %1 = arith.muli %arg1, %0 : i32
    %c0_i32 = arith.constant 0 : i32
    %c0_i32_0 = arith.constant 0 : i32
    return %c0_i32, %1 : i32, i32
  }
  func.func @transform_2(%arg0: i32, %arg1: i32) -> (i32, i32) {
    %c1_i32 = arith.constant 1 : i32
    %0 = arith.addi %arg1, %c1_i32 : i32
    %c1_i32_0 = arith.constant 1 : i32
    %1 = arith.minsi %0, %c1_i32_0 : i32
    %c1_i32_1 = arith.constant 1 : i32
    %2 = arith.subi %c1_i32_1, %arg0 : i32
    %3 = arith.muli %1, %2 : i32
    %c0_i32 = arith.constant 0 : i32
    %c0_i32_2 = arith.constant 0 : i32
    return %c0_i32, %3 : i32, i32
  }
  func.func @transform_3(%arg0: i32, %arg1: i32) -> (i32, i32) {
    %c1_i32 = arith.constant 1 : i32
    %0 = arith.subi %c1_i32, %arg0 : i32
    %1 = arith.muli %arg1, %0 : i32
    %c0_i32 = arith.constant 0 : i32
    %c0_i32_0 = arith.constant 0 : i32
    return %c0_i32, %1 : i32, i32
  }
  func.func @transform_4(%arg0: i32, %arg1: i32) -> (i32, i32, i32) {
    %c0_i32 = arith.constant 0 : i32
    %c0_i32_0 = arith.constant 0 : i32
    %c0_i32_1 = arith.constant 0 : i32
    %c0_i32_2 = arith.constant 0 : i32
    return %c0_i32, %c0_i32_0, %c0_i32_1 : i32, i32, i32
  }
  func.func @transform_5(%arg0: i32, %arg1: i32) -> (i32, i32) {
    %c0_i32 = arith.constant 0 : i32
    %c0_i32_0 = arith.constant 0 : i32
    %c0_i32_1 = arith.constant 0 : i32
    return %c0_i32, %c0_i32_0 : i32, i32
  }
  func.func @transform_6(%arg0: i32, %arg1: i32) -> (i32, i32) {
    %c0_i32 = arith.constant 0 : i32
    %c0_i32_0 = arith.constant 0 : i32
    %c0_i32_1 = arith.constant 0 : i32
    return %c0_i32, %c0_i32_0 : i32, i32
  }
  func.func @transform_7(%arg0: i32, %arg1: i32) -> (i32, i32) {
    %0 = arith.muli %arg1, %arg0 : i32
    %c0_i32 = arith.constant 0 : i32
    %c0_i32_0 = arith.constant 0 : i32
    return %c0_i32, %0 : i32, i32
  }
}

module attributes {stable_mosaic.version = 11 : i64} {
  func.func @_conv1x1_kernel(%arg0: i32, %arg1: memref<16x256xbf16, #tpu.memory_space<vmem>>, %arg2: memref<1x16xbf16, #tpu.memory_space<vmem>>, %arg3: memref<1x1xf32, #tpu.memory_space<vmem>>, %arg4: memref<1x256xf32, #tpu.memory_space<vmem>>) attributes {dimension_semantics = [#tpu.dimension_semantics<parallel>], iteration_bounds = array<i64: 2>, scalar_prefetch = 0 : i64, scratch_operands = 0 : i64, tpu.core_type = #tpu.core_type<tc>, window_params = [{transform_indices = @transform_0, window_bounds = array<i64: 16, 256>}, {pipeline_mode = #tpu.pipeline_mode<synchronous>, transform_indices = @transform_1, window_bounds = array<i64: 1, 16>}, {pipeline_mode = #tpu.pipeline_mode<synchronous>, transform_indices = @transform_2, window_bounds = array<i64: 1, 1>}, {transform_indices = @transform_3, window_bounds = array<i64: 1, 256>}]} {
    %c0 = arith.constant 0 : index
    %c0_0 = arith.constant 0 : index
    %0 = vector.load %arg2[%c0, %c0_0] : memref<1x16xbf16, #tpu.memory_space<vmem>>, vector<1x16xbf16>
    %c0_1 = arith.constant 0 : index
    %c0_2 = arith.constant 0 : index
    %1 = vector.load %arg1[%c0_1, %c0_2] : memref<16x256xbf16, #tpu.memory_space<vmem>>, vector<16x256xbf16>
    %cst = arith.constant dense<0.000000e+00> : vector<1x256xf32>
    %2 = tpu.matmul %0, %1, %cst {dimension_numbers = #tpu.dot_dimension_numbers<[1], [0], [0], [1], [0, 0, 1, 1], [], []>} : vector<1x16xbf16>, vector<16x256xbf16>, vector<1x256xf32> -> vector<1x256xf32>
    %c0_3 = arith.constant 0 : index
    %c0_4 = arith.constant 0 : index
    %3 = vector.load %arg3[%c0_3, %c0_4] : memref<1x1xf32, #tpu.memory_space<vmem>>, vector<1x1xf32>
    %4 = vector.broadcast %3 : vector<1x1xf32> to vector<1x256xf32>
    %5 = arith.addf %2, %4 : vector<1x256xf32>
    %c0_5 = arith.constant 0 : index
    %c0_6 = arith.constant 0 : index
    %6 = vector.load %arg4[%c0_5, %c0_6] : memref<1x256xf32, #tpu.memory_space<vmem>>, vector<1x256xf32>
    tpu.vector_store %arg4[%c0_5, %c0_6], %5 {strides = array<i32>} : memref<1x256xf32, #tpu.memory_space<vmem>>, vector<1x256xf32>,
    return
  }
  func.func @transform_0(%arg0: i32) -> (i32, i32) {
    %c0_i32 = arith.constant 0 : i32
    %c0_i32_0 = arith.constant 0 : i32
    return %c0_i32, %arg0 : i32, i32
  }
  func.func @transform_1(%arg0: i32) -> (i32, i32) {
    %c0_i32 = arith.constant 0 : i32
    %c0_i32_0 = arith.constant 0 : i32
    %c0_i32_1 = arith.constant 0 : i32
    return %c0_i32, %c0_i32_0 : i32, i32
  }
  func.func @transform_2(%arg0: i32) -> (i32, i32) {
    %c0_i32 = arith.constant 0 : i32
    %c0_i32_0 = arith.constant 0 : i32
    %c0_i32_1 = arith.constant 0 : i32
    return %c0_i32, %c0_i32_0 : i32, i32
  }
  func.func @transform_3(%arg0: i32) -> (i32, i32) {
    %c0_i32 = arith.constant 0 : i32
    %c0_i32_0 = arith.constant 0 : i32
    return %c0_i32, %arg0 : i32, i32
  }
}

</mosaic_0001>

<llo_original>
// kernel: _lambda_.3
$region0: #{_lambda_.3}
  #allocation0 [shape = 'u32[]', space=smem, size = 0x4, offset = 0x4, fixed_abs, tag = 'smem constant byte address 0x4 - core index']
  #allocation1 [shape = 'u32[144,128]{1,0:T(1,128)}', space=vmem, size = 0x12000, scoped, tag = 'internal scratch']
  #allocation2 [shape = 'f32[4,1536]{1,0:T(4,128)}', space=vmem, size = 0x6000, scoped, tag = 'scratch operand']
  #allocation3 [shape = 'f32[4,1]{1,0:T(4,128)}', space=vmem, size = 0x800, scoped, tag = 'scratch operand']
  #allocation4 [shape = 'f32[4,1]{1,0:T(4,128)}', space=vmem, size = 0x800, scoped, tag = 'scratch operand']
  %s0 = inlined_call_operand.vmem [shape: bf16[4,1536], index: 0, kind: input, shape index: {}, may-alias: {0,1,2}]
  %s1 = inlined_call_operand.vmem [shape: bf16[4,1536], index: 1, kind: input, shape index: {}, may-alias: {0,1,2}]
  %s2 = inlined_call_operand.vmem [shape: bf16[4,1536], index: 2, kind: input, shape index: {}, may-alias: {0,1,2}]
  %s3 = inlined_call_operand.vmem [shape: f32[1,1536], index: 3, kind: input, shape index: {}]
  %s4 = inlined_call_operand.vmem [shape: bf16[9,4,4], index: 4, kind: input, shape index: {}]
  %s5 = inlined_call_operand.vmem [shape: f32[4,1], index: 5, kind: input, shape index: {}]
  %s6 = inlined_call_operand.vmem [shape: f32[4,1], index: 6, kind: input, shape index: {}]
  %s7 = inlined_call_operand.vmem [shape: f32[4,1536], index: 7, kind: output, shape index: {}]
  %s8 = sld [smem:[#allocation0]]
  $region73: #{_lambda_.3} parent=0
    _
  %s10 = ssub.s32 1, %s8
  %s11 = scalar_select 0, %s10, %s8
  loop: start=0, step=1, limit=6
  $region2: #{_lambda_.3} parent=0 // loop_pre_header
    _
  $region3: #{_lambda_.3} parent=0 // loop_header
    %s13 = sphi 0, %s17
    %p14 = scmp.ge.s32.totalorder %s13, 6
    %s20 = sphi 0, %s32
    %s21 = sphi 0, %s28
    %s22 = sphi 0, %s20
    %s23 = sphi 0, %s21
    %s24 = sphi 0, %s22
    %s25 = sphi 0, %s23
    %s45 = sphi 0, %s47
    %s48 = sphi 0, %s45
    %s49 = sphi 0, %s48
    %s65 = sphi 0, %s49
    %s75 = sphi 0, %s77
    %s78 = sphi 0, %s75
    %s79 = sphi 0, %s78
    %s95 = sphi 0, %s79
    %s111 = sphi 0, %s113
    %s114 = sphi 0, %s111
    %s115 = sphi 0, %s114
    %s131 = sphi 0, %s115
    %s141 = sphi 0, %s143
    %s144 = sphi 0, %s141
    %s145 = sphi 0, %s144
    %s161 = sphi 0, %s145
    %s165 = sphi 0, %s165
    %s167 = sphi 0, %s165
    %s168 = sphi 0, %s167
    %s182 = sphi 0, %s168
    %s186 = sphi 0, %s186
    %s188 = sphi 0, %s186
    %s189 = sphi 0, %s188
    %s203 = sphi 0, %s189
    %s207 = sphi 0, %s207
    %s209 = sphi 0, %s207
    %s210 = sphi 0, %s209
    %s224 = sphi 0, %s210
    %s232 = sphi 0, %s234
    %s235 = sphi 0, %s232
    %s236 = sphi 0, %s235
    %s252 = sphi 0, %s236
  $region4: #{_lambda_.3} parent=0 // loop_header_branch
    %16 = sbr.rel (%p14) target = $region8
  $region5: #{_lambda_.3} parent=0 // loop_body
    %s18 = ssub.s32 %s13, 1
    %s19 = ssub.s32 %s13, 2
    %s26 = sadd.s32 1, %s21
    %p27 = scmp.ge.s32.totalorder %s26, 2
    %s28 = scalar_select %p27, 0, %s26
    %s29 = sadd.s32 1, %s20
    %s30 = scalar_select %p27, %s29, %s20
    %p31 = scmp.ge.s32.totalorder %s30, 2
    %s32 = scalar_select %p31, 0, %s30
    %s33 = ssub.s32 %s21, 1
    %p34 = scmp.gt.s32.totalorder %s33, 0
    %s35 = scalar_select %p34, %s33, 0
    %s36 = ssub.s32 1, %s20
    %s37 = smul.u32 %s35, %s36
    %s38 = ssub.s32 %s28, 1
    %p39 = scmp.gt.s32.totalorder %s38, 0
    %s40 = scalar_select %p39, %s38, 0
    %s41 = ssub.s32 1, %s32
    %s42 = smul.u32 %s40, %s41
    %s43 = ssub.s32 %s37, %s42
    %p44 = scmp.eq.s32.totalorder %s43, 0
    %s46 = sadd.s32 %s45, 1
    %s47 = scalar_select %p44, %s45, %s46
    %p50 = pneg %p44
    %p51 = scmp.eq.s32.totalorder %s13, 3
    %p52 = por %p50, %p51
    %p53 = scmp.ne.s32.totalorder %s45, %s48
    %p54 = scmp.eq.s32.totalorder %s13, 0
    %p55 = por %p53, %p54
    %p56 = scmp.ne.s32.totalorder %s45, %s48
    %p57 = scmp.eq.s32.totalorder %s18, 3
    %p58 = por %p56, %p57
    %p59 = scmp.ne.s32.totalorder %s48, %s49
    %p60 = scmp.eq.s32.totalorder %s18, 0
    %p61 = por %p59, %p60
    %p62 = scmp.ne.s32.totalorder %s48, %s49
    %p63 = scmp.eq.s32.totalorder %s19, 3
    %p64 = por %p62, %p63
    %p66 = scmp.ne.s32.totalorder %s49, %s65
    %p67 = scmp.eq.s32.totalorder %s19, 0
    %p68 = por %p66, %p67
    %s69 = ssub.s32 1, %s20
    %s70 = smul.u32 %s21, %s69
    %s71 = ssub.s32 1, %s32
    %s72 = smul.u32 %s28, %s71
    %s73 = ssub.s32 %s70, %s72
    %p74 = scmp.eq.s32.totalorder %s73, 0
    %s76 = sadd.s32 %s75, 1
    %s77 = scalar_select %p74, %s75, %s76
    %p80 = pneg %p74
    %p81 = scmp.eq.s32.totalorder %s13, 3
    %p82 = por %p80, %p81
    %p83 = scmp.ne.s32.totalorder %s75, %s78
    %p84 = scmp.eq.s32.totalorder %s13, 0
    %p85 = por %p83, %p84
    %p86 = scmp.ne.s32.totalorder %s75, %s78
    %p87 = scmp.eq.s32.totalorder %s18, 3
    %p88 = por %p86, %p87
    %p89 = scmp.ne.s32.totalorder %s78, %s79
    %p90 = scmp.eq.s32.totalorder %s18, 0
    %p91 = por %p89, %p90
    %p92 = scmp.ne.s32.totalorder %s78, %s79
    %p93 = scmp.eq.s32.totalorder %s19, 3
    %p94 = por %p92, %p93
    %p96 = scmp.ne.s32.totalorder %s79, %s95
    %p97 = scmp.eq.s32.totalorder %s19, 0
    %p98 = por %p96, %p97
    %s99 = sadd.s32 %s21, 1
    %p100 = scmp.lt.s32.totalorder %s99, 1
    %s101 = scalar_select %p100, %s99, 1
    %s102 = ssub.s32 1, %s20
    %s103 = smul.u32 %s101, %s102
    %s104 = sadd.s32 %s28, 1
    %p105 = scmp.lt.s32.totalorder %s104, 1
    %s106 = scalar_select %p105, %s104, 1
    %s107 = ssub.s32 1, %s32
    %s108 = smul.u32 %s106, %s107
    %s109 = ssub.s32 %s103, %s108
    %p110 = scmp.eq.s32.totalorder %s109, 0
    %s112 = sadd.s32 %s111, 1
    %s113 = scalar_select %p110, %s111, %s112
    %p116 = pneg %p110
    %p117 = scmp.eq.s32.totalorder %s13, 3
    %p118 = por %p116, %p117
    %p119 = scmp.ne.s32.totalorder %s111, %s114
    %p120 = scmp.eq.s32.totalorder %s13, 0
    %p121 = por %p119, %p120
    %p122 = scmp.ne.s32.totalorder %s111, %s114
    %p123 = scmp.eq.s32.totalorder %s18, 3
    %p124 = por %p122, %p123
    %p125 = scmp.ne.s32.totalorder %s114, %s115
    %p126 = scmp.eq.s32.totalorder %s18, 0
    %p127 = por %p125, %p126
    %p128 = scmp.ne.s32.totalorder %s114, %s115
    %p129 = scmp.eq.s32.totalorder %s19, 3
    %p130 = por %p128, %p129
    %p132 = scmp.ne.s32.totalorder %s115, %s131
    %p133 = scmp.eq.s32.totalorder %s19, 0
    %p134 = por %p132, %p133
    %s135 = ssub.s32 1, %s20
    %s136 = smul.u32 %s21, %s135
    %s137 = ssub.s32 1, %s32
    %s138 = smul.u32 %s28, %s137
    %s139 = ssub.s32 %s136, %s138
    %p140 = scmp.eq.s32.totalorder %s139, 0
    %s142 = sadd.s32 %s141, 1
    %s143 = scalar_select %p140, %s141, %s142
    %p146 = pneg %p140
    %p147 = scmp.eq.s32.totalorder %s13, 3
    %p148 = por %p146, %p147
    %p149 = scmp.ne.s32.totalorder %s141, %s144
    %p150 = scmp.eq.s32.totalorder %s13, 0
    %p151 = por %p149, %p150
    %p152 = scmp.ne.s32.totalorder %s141, %s144
    %p153 = scmp.eq.s32.totalorder %s18, 3
    %p154 = por %p152, %p153
    %p155 = scmp.ne.s32.totalorder %s144, %s145
    %p156 = scmp.eq.s32.totalorder %s18, 0
    %p157 = por %p155, %p156
    %p158 = scmp.ne.s32.totalorder %s144, %s145
    %p159 = scmp.eq.s32.totalorder %s19, 3
    %p160 = por %p158, %p159
    %p162 = scmp.ne.s32.totalorder %s145, %s161
    %p163 = scmp.eq.s32.totalorder %s19, 0
    %p164 = por %p162, %p163
    %s166 = sadd.s32 %s165, 1
    %p169 = scmp.eq.s32.totalorder %s13, 3
    %p170 = scmp.ne.s32.totalorder %s165, %s167
    %p171 = scmp.eq.s32.totalorder %s13, 0
    %p172 = por %p170, %p171
    %p173 = scmp.ne.s32.totalorder %s165, %s167
    %p174 = scmp.eq.s32.totalorder %s18, 3
    %p175 = por %p173, %p174
    %p176 = scmp.ne.s32.totalorder %s167, %s168
    %p177 = scmp.eq.s32.totalorder %s18, 0
    %p178 = por %p176, %p177
    %p179 = scmp.ne.s32.totalorder %s167, %s168
    %p180 = scmp.eq.s32.totalorder %s19, 3
    %p181 = por %p179, %p180
    %p183 = scmp.ne.s32.totalorder %s168, %s182
    %p184 = scmp.eq.s32.totalorder %s19, 0
    %p185 = por %p183, %p184
    %s187 = sadd.s32 %s186, 1
    %p190 = scmp.eq.s32.totalorder %s13, 3
    %p191 = scmp.ne.s32.totalorder %s186, %s188
    %p192 = scmp.eq.s32.totalorder %s13, 0
    %p193 = por %p191, %p192
    %p194 = scmp.ne.s32.totalorder %s186, %s188
    %p195 = scmp.eq.s32.totalorder %s18, 3
    %p196 = por %p194, %p195
    %p197 = scmp.ne.s32.totalorder %s188, %s189
    %p198 = scmp.eq.s32.totalorder %s18, 0
    %p199 = por %p197, %p198
    %p200 = scmp.ne.s32.totalorder %s188, %s189
    %p201 = scmp.eq.s32.totalorder %s19, 3
    %p202 = por %p200, %p201
    %p204 = scmp.ne.s32.totalorder %s189, %s203
    %p205 = scmp.eq.s32.totalorder %s19, 0
    %p206 = por %p204, %p205
    %s208 = sadd.s32 %s207, 1
    %p211 = scmp.eq.s32.totalorder %s13, 3
    %p212 = scmp.ne.s32.totalorder %s207, %s209
    %p213 = scmp.eq.s32.totalorder %s13, 0
    %p214 = por %p212, %p213
    %p215 = scmp.ne.s32.totalorder %s207, %s209
    %p216 = scmp.eq.s32.totalorder %s18, 3
    %p217 = por %p215, %p216
    %p218 = scmp.ne.s32.totalorder %s209, %s210
    %p219 = scmp.eq.s32.totalorder %s18, 0
    %p220 = por %p218, %p219
    %p221 = scmp.ne.s32.totalorder %s209, %s210
    %p222 = scmp.eq.s32.totalorder %s19, 3
    %p223 = por %p221, %p222
    %p225 = scmp.ne.s32.totalorder %s210, %s224
    %p226 = scmp.eq.s32.totalorder %s19, 0
    %p227 = por %p225, %p226
    %s228 = smul.u32 %s21, %s20
    %s229 = smul.u32 %s28, %s32
    %s230 = ssub.s32 %s228, %s229
    %p231 = scmp.eq.s32.totalorder %s230, 0
    %s233 = sadd.s32 %s232, 1
    %s234 = scalar_select %p231, %s232, %s233
    %p237 = pneg %p231
    %p238 = scmp.eq.s32.totalorder %s13, 3
    %p239 = por %p237, %p238
    %p240 = scmp.ne.s32.totalorder %s232, %s235
    %p241 = scmp.eq.s32.totalorder %s13, 0
    %p242 = por %p240, %p241
    %p243 = scmp.ne.s32.totalorder %s232, %s235
    %p244 = scmp.eq.s32.totalorder %s18, 3
    %p245 = por %p243, %p244
    %p246 = scmp.ne.s32.totalorder %s235, %s236
    %p247 = scmp.eq.s32.totalorder %s18, 0
    %p248 = por %p246, %p247
    %p249 = scmp.ne.s32.totalorder %s235, %s236
    %p250 = scmp.eq.s32.totalorder %s19, 3
    %p251 = por %p249, %p250
    %p253 = scmp.ne.s32.totalorder %s236, %s252
    %p254 = scmp.eq.s32.totalorder %s19, 0
    %p255 = por %p253, %p254
    %p256 = scmp.le.s32.totalorder 1, %s13
    %p257 = scmp.lt.s32.totalorder %s13, 5
    %p258 = pnand %p256, %p257
    %p259 = pneg %p258
    // Predicated region
    $region9: #{_lambda_.3} parent=5 // pred_check
      _
    $region10: #{_lambda_.3} parent=5 // pred_check_branch
      %261 = sbr.rel (%p258) target = $region12
    $region11: #{_lambda_.3} parent=5 // pred_region
      %s262 = ssub.s32 %s13, 1
      // Predicated region
      $region13: #{_lambda_.3} parent=11 // pred_check
        %p263 = pneg %p178
      $region14: #{_lambda_.3} parent=11 // pred_check_branch
        %265 = sbr.rel (%p263) target = $region16
      $region15: #{_lambda_.3} parent=11 // pred_region
        _
      $region16: #{_lambda_.3} parent=11 // pred_fallthru
        _
      // Predicated region
      $region17: #{_lambda_.3} parent=11 // pred_check
        %p266 = pneg %p199
      $region18: #{_lambda_.3} parent=11 // pred_check_branch
        %268 = sbr.rel (%p266) target = $region20
      $region19: #{_lambda_.3} parent=11 // pred_region
        _
      $region20: #{_lambda_.3} parent=11 // pred_fallthru
        _
      // Predicated region
      $region21: #{_lambda_.3} parent=11 // pred_check
        %p269 = pneg %p220
      $region22: #{_lambda_.3} parent=11 // pred_check_branch
        %271 = sbr.rel (%p269) target = $region24
      $region23: #{_lambda_.3} parent=11 // pred_region
        _
      $region24: #{_lambda_.3} parent=11 // pred_fallthru
        _
    $region12: #{_lambda_.3} parent=5 // pred_fallthru
      _
    %p272 = scmp.lt.s32.totalorder %s13, 4
    // Predicated region
    $region25: #{_lambda_.3} parent=5 // pred_check
      %p273 = pneg %p272
    $region26: #{_lambda_.3} parent=5 // pred_check_branch
      %275 = sbr.rel (%p273) target = $region28
    $region27: #{_lambda_.3} parent=5 // pred_region
      // Predicated region
      $region29: #{_lambda_.3} parent=27 // pred_check
        %p276 = pneg %p55
      $region30: #{_lambda_.3} parent=27 // pred_check_branch
        %278 = sbr.rel (%p276) target = $region32
      $region31: #{_lambda_.3} parent=27 // pred_region
        %s279 = ssub.s32 %s21, 1
        %p280 = scmp.gt.s32.totalorder %s279, 0
        %s281 = scalar_select %p280, %s279, 0
        %s282 = ssub.s32 1, %s20
        %s283 = smul.u32 %s281, %s282
        %s284 = smul.u32 6, %s283
        %p285 = scmp.lt.s32.totalorder %s284, 11
        %s286 = scalar_select %p285, %s284, 11
        %s287 = smul.addr %s286, 2
        %s288 = scalar_lea.vmem %s0, %s287
        %s289 = ssub.s32 %s21, 1
        %p290 = scmp.gt.s32.totalorder %s289, 0
        %s291 = scalar_select %p290, %s289, 0
        %s292 = ssub.s32 1, %s20
        %s293 = smul.u32 %s291, %s292
        %s294 = smul.u32 6, %s293
      $region32: #{_lambda_.3} parent=27 // pred_fallthru
        _
      // Predicated region
      $region33: #{_lambda_.3} parent=27 // pred_check
        %p295 = pneg %p85
      $region34: #{_lambda_.3} parent=27 // pred_check_branch
        %297 = sbr.rel (%p295) target = $region36
      $region35: #{_lambda_.3} parent=27 // pred_region
        %s298 = ssub.s32 1, %s20
        %s299 = smul.u32 %s21, %s298
        %s300 = smul.u32 6, %s299
        %p301 = scmp.lt.s32.totalorder %s300, 11
        %s302 = scalar_select %p301, %s300, 11
        %s303 = smul.addr %s302, 2
        %s304 = scalar_lea.vmem %s1, %s303
        %s305 = ssub.s32 1, %s20
        %s306 = smul.u32 %s21, %s305
        %s307 = smul.u32 6, %s306
      $region36: #{_lambda_.3} parent=27 // pred_fallthru
        _
      // Predicated region
      $region37: #{_lambda_.3} parent=27 // pred_check
        %p308 = pneg %p121
      $region38: #{_lambda_.3} parent=27 // pred_check_branch
        %310 = sbr.rel (%p308) target = $region40
      $region39: #{_lambda_.3} parent=27 // pred_region
        %s311 = sadd.s32 %s21, 1
        %p312 = scmp.lt.s32.totalorder %s311, 1
        %s313 = scalar_select %p312, %s311, 1
        %s314 = ssub.s32 1, %s20
        %s315 = smul.u32 %s313, %s314
        %s316 = smul.u32 6, %s315
        %p317 = scmp.lt.s32.totalorder %s316, 11
        %s318 = scalar_select %p317, %s316, 11
        %s319 = smul.addr %s318, 2
        %s320 = scalar_lea.vmem %s2, %s319
        %s321 = sadd.s32 %s21, 1
        %p322 = scmp.lt.s32.totalorder %s321, 1
        %s323 = scalar_select %p322, %s321, 1
        %s324 = ssub.s32 1, %s20
        %s325 = smul.u32 %s323, %s324
        %s326 = smul.u32 6, %s325
      $region40: #{_lambda_.3} parent=27 // pred_fallthru
        _
      // Predicated region
      $region41: #{_lambda_.3} parent=27 // pred_check
        %p327 = pneg %p151
      $region42: #{_lambda_.3} parent=27 // pred_check_branch
        %329 = sbr.rel (%p327) target = $region44
      $region43: #{_lambda_.3} parent=27 // pred_region
        %s330 = ssub.s32 1, %s20
        %s331 = smul.u32 %s21, %s330
        %s332 = smul.u32 6, %s331
        %p333 = scmp.lt.s32.totalorder %s332, 11
        %s334 = scalar_select %p333, %s332, 11
        %s335 = scalar_lea.vmem %s3, %s334
        %s336 = ssub.s32 1, %s20
        %s337 = smul.u32 %s21, %s336
        %s338 = smul.u32 6, %s337
      $region44: #{_lambda_.3} parent=27 // pred_fallthru
        _
    $region28: #{_lambda_.3} parent=5 // pred_fallthru
      _
    %p339 = scmp.le.s32.totalorder 1, %s13
    %p340 = scmp.lt.s32.totalorder %s13, 5
    %p341 = pnand %p339, %p340
    %p342 = pneg %p341
    // Predicated region
    $region45: #{_lambda_.3} parent=5 // pred_check
      _
    $region46: #{_lambda_.3} parent=5 // pred_check_branch
      %344 = sbr.rel (%p341) target = $region48
    $region47: #{_lambda_.3} parent=5 // pred_region
      %s345 = ssub.s32 %s13, 1
      %s346 = ssub.s32 %s23, 1
      %p347 = scmp.gt.s32.totalorder %s346, 0
      %s348 = scalar_select %p347, %s346, 0
      %s349 = ssub.s32 1, %s22
      %s350 = smul.u32 %s348, %s349
      %s351 = smul.u32 6, %s350
      %p352 = scmp.lt.s32.totalorder %s351, 11
      %s353 = scalar_select %p352, %s351, 11
      %s354 = smul.addr %s353, 2
      %s355 = scalar_lea.vmem %s0, %s354
      %p356 = pneg %p61
      %p357 = pneg %p58
      %s358 = ssub.s32 1, %s22
      %s359 = smul.u32 %s23, %s358
      %s360 = smul.u32 6, %s359
      %p361 = scmp.lt.s32.totalorder %s360, 11
      %s362 = scalar_select %p361, %s360, 11
      %s363 = smul.addr %s362, 2
      %s364 = scalar_lea.vmem %s1, %s363
      %p365 = pneg %p91
      %p366 = pneg %p88
      %s367 = sadd.s32 %s23, 1
      %p368 = scmp.lt.s32.totalorder %s367, 1
      %s369 = scalar_select %p368, %s367, 1
      %s370 = ssub.s32 1, %s22
      %s371 = smul.u32 %s369, %s370
      %s372 = smul.u32 6, %s371
      %p373 = scmp.lt.s32.totalorder %s372, 11
      %s374 = scalar_select %p373, %s372, 11
      %s375 = smul.addr %s374, 2
      %s376 = scalar_lea.vmem %s2, %s375
      %p377 = pneg %p127
      %p378 = pneg %p124
      %s379 = ssub.s32 1, %s22
      %s380 = smul.u32 %s23, %s379
      %s381 = smul.u32 6, %s380
      %p382 = scmp.lt.s32.totalorder %s381, 11
      %s383 = scalar_select %p382, %s381, 11
      %s384 = scalar_lea.vmem %s3, %s383
      %p385 = pneg %p157
      %p386 = pneg %p154
      %p387 = pneg %p178
      %p388 = pneg %p175
      %p389 = pneg %p199
      %p390 = pneg %p196
      %p391 = pneg %p220
      %p392 = pneg %p217
      %p393 = pneg %p248
      %p394 = pneg %p245
      %s395 = smul.u32 %s23, %s22
      %s396 = smul.u32 6, %s395
      %p397 = scmp.lt.s32.totalorder %s396, 11
      %s398 = scalar_select %p397, %s396, 11
      %s399 = smul.addr %s398, 4
      %s400 = scalar_lea.vmem %s7, %s399
      %s401 = ssub.s32 %s23, 1
      %p402 = scmp.gt.s32.totalorder %s401, 0
      %s403 = scalar_select %p402, %s401, 0
      %s404 = ssub.s32 1, %s22
      %s405 = smul.u32 %s403, %s404
      %s406 = smul.u32 6, %s405
      %p407 = scmp.lt.s32.totalorder %s406, 11
      %s408 = scalar_select %p407, %s406, 11
      %s409 = smul.addr %s408, 2
      %s410 = scalar_lea.vmem %s0, %s409
      %s411 = ssub.s32 %s23, 1
      %p412 = scmp.gt.s32.totalorder %s411, 0
      %s413 = scalar_select %p412, %s411, 0
      %s414 = ssub.s32 1, %s22
      %s415 = smul.u32 %s413, %s414
      %s416 = smul.u32 6, %s415
      %s417 = ssub.s32 1, %s22
      %s418 = smul.u32 %s23, %s417
      %s419 = smul.u32 6, %s418
      %p420 = scmp.lt.s32.totalorder %s419, 11
      %s421 = scalar_select %p420, %s419, 11
      %s422 = smul.addr %s421, 2
      %s423 = scalar_lea.vmem %s1, %s422
      %s424 = ssub.s32 1, %s22
      %s425 = smul.u32 %s23, %s424
      %s426 = smul.u32 6, %s425
      %s427 = sadd.s32 %s23, 1
      %p428 = scmp.lt.s32.totalorder %s427, 1
      %s429 = scalar_select %p428, %s427, 1
      %s430 = ssub.s32 1, %s22
      %s431 = smul.u32 %s429, %s430
      %s432 = smul.u32 6, %s431
      %p433 = scmp.lt.s32.totalorder %s432, 11
      %s434 = scalar_select %p433, %s432, 11
      %s435 = smul.addr %s434, 2
      %s436 = scalar_lea.vmem %s2, %s435
      %s437 = sadd.s32 %s23, 1
      %p438 = scmp.lt.s32.totalorder %s437, 1
      %s439 = scalar_select %p438, %s437, 1
      %s440 = ssub.s32 1, %s22
      %s441 = smul.u32 %s439, %s440
      %s442 = smul.u32 6, %s441
      %s443 = ssub.s32 1, %s22
      %s444 = smul.u32 %s23, %s443
      %s445 = smul.u32 6, %s444
      %p446 = scmp.lt.s32.totalorder %s445, 11
      %s447 = scalar_select %p446, %s445, 11
      %s448 = scalar_lea.vmem %s3, %s447
      %s449 = ssub.s32 1, %s22
      %s450 = smul.u32 %s23, %s449
      %s451 = smul.u32 6, %s450
      %s452 = smul.u32 %s23, %s22
      %s453 = smul.u32 6, %s452
      %p454 = scmp.lt.s32.totalorder %s453, 11
      %s455 = scalar_select %p454, %s453, 11
      %s456 = smul.addr %s455, 4
      %s457 = scalar_lea.vmem %s7, %s456
      %s458 = smul.u32 %s23, %s22
      %s459 = smul.u32 6, %s458
      %s461 = smul.u32 %s23, 768
      %p462 = scmp.eq.s32.totalorder %s22, 0
      %p463 = scmp.eq.s32.totalorder %s23, 0
      %p464 = pnand %p462, %p463
      %p465 = pneg %p464
      // Predicated region
      $region49: #{_lambda_.3} parent=47 // pred_check
        _
      $region50: #{_lambda_.3} parent=47 // pred_check_branch
        %467 = sbr.rel (%p464) target = $region52
      $region51: #{_lambda_.3} parent=47 // pred_region
        %vm468 = vcmask 3072
        %469 = vst.msk [vmem:[#allocation3] sm:$0xf] %vm468, 0.0
        %470 = vst.msk [vmem:[#allocation4] sm:$0xf] %vm468, 0.0
      $region52: #{_lambda_.3} parent=47 // pred_fallthru
        _
      // Predicated region
      $region53: #{_lambda_.3} parent=47 // pred_check
        %p471 = pneg %p462
      $region54: #{_lambda_.3} parent=47 // pred_check_branch
        %473 = sbr.rel (%p471) target = $region56
      $region55: #{_lambda_.3} parent=47 // pred_region
        %v474 = vld [vmem:[%s410 + $0x8] sm:$0xf]
        %v475 = vld [vmem:[%s423] sm:$0xff]
        %v476 = vld [vmem:[%s423 + $0x8] sm:$0xf]
        %v477 = vld [vmem:[%s436] sm:$0xff]
        %v480 = vunpack.c.l.s4 1983009808
        %v481 = vunpack.c.0.s8 %v480
        %v482 = vlaneseq
        %v483 = vshrl.u32 %v482, 7
        %v484 = vsub.s32 %v481, %v483
        %v485 = vrot.slane %v474, %v484
        %v486 = vcombine.high %v485, %v485
        %v489 = vcombine.high %v475, %v475
        %v491 = vunpack.c.l.s4 1983009808
        %v492 = vunpack.c.0.s8 %v491
        %v493 = vlaneseq
        %v494 = vshrl.u32 %v493, 7
        %v495 = vsub.s32 %v492, %v494
        %v496 = vrot.slane %v475, %v495
        %v498 = vunpack.c.l.s4 1983009808
        %v499 = vunpack.c.0.s8 %v498
        %v500 = vlaneseq
        %v501 = vshrl.u32 %v500, 7
        %v502 = vsub.s32 %v499, %v501
        %v503 = vrot.slane %v489, %v502
        %v504 = vcombine.high %v496, %v496
        %v505 = vcombine.high %v503, %v503
        %v507 = vunpack.c.l.s4 1983009808
        %v508 = vunpack.c.0.s8 %v507
        %v509 = vlaneseq
        %v510 = vshrl.u32 %v509, 7
        %v511 = vsub.s32 %v508, %v510
        %v512 = vrot.slane %v476, %v511
        %v513 = vcombine.high %v512, %v512
        %v516 = vunpack.c.l.s4 1983009808
        %v517 = vunpack.c.0.s8 %v516
        %v518 = vlaneseq
        %v519 = vshrl.u32 %v518, 7
        %v520 = vsub.s32 %v517, %v519
        %v521 = vrot.slane %v477, %v520
        %v522 = vld [vmem:[%s4] sm:$0x3]
        %s523 = scalar_lea.vmem %s4, 2
        %v524 = vld [vmem:[%s523] sm:$0x3]
        %525 = vrot.lane.b32.xlu0 %v486, 26
        %v526 = vpop.permute.xlu0 %525
        %527 = vrot.lane.b32.xlu0 %v496, 26
        %v528 = vpop.permute.xlu0 %527
        %529 = vrot.lane.b32.xlu0 %v504, 26
        %v530 = vpop.permute.xlu0 %529
        %531 = vrot.lane.b32.xlu0 %v503, 26
        %v532 = vpop.permute.xlu0 %531
        %533 = vrot.lane.b32.xlu0 %v505, 26
        %v534 = vpop.permute.xlu0 %533
        %535 = vrot.lane.b32.xlu0 %v512, 26
        %v536 = vpop.permute.xlu0 %535
        %537 = vrot.lane.b32.xlu0 %v513, 26
        %v538 = vpop.permute.xlu0 %537
        %vm539 = vcmask 211968
        %v540 = vsel %vm539, %v526, %v528
        %v541 = vsel %vm539, %v528, %v530
        %v542 = vsel %vm539, %v530, %v532
        %v543 = vsel %vm539, %v532, %v534
        %v544 = vsel %vm539, %v534, %v536
        %v545 = vsel %vm539, %v536, %v538
        %vm546 = vcmask 31744
        %v548 = vsel %vm546, %v524, 0
        %vm550 = vcmask 1041408
        %v552 = vsel %vm550, %v540, 0
        %v555 = vsel %vm550, %v541, 0
        %v558 = vsel %vm550, %v542, 0
        %v561 = vsel %vm550, %v543, 0
        %v564 = vsel %vm550, %v544, 0
        %v567 = vsel %vm550, %v545, 0
        %569 = vmatprep.subr.bf16.mxu0 %v555
        %570 = vmatpush1.bf16.msra.mxu0 %v552
        %571 = vmatprep.subr.bf16.mxu0 0
        %572 = vmatpush1.bf16.msra.mxu0 0
        %573 = vmatprep.subr.bf16.mxu0 0
        %574 = vmatpush1.bf16.msra.mxu0 0
        %575 = vmatprep.subr.bf16.mxu0 0
        %576 = vmatpush1.bf16.msra.mxu0 0
        %577 = vmatprep.subr.bf16.mxu0 0
        %578 = vmatpush1.bf16.msra.mxu0 0
        %579 = vmatprep.subr.bf16.mxu0 0
        %580 = vmatpush1.bf16.msra.mxu0 0
        %581 = vmatprep.subr.bf16.mxu0 0
        %582 = vmatpush1.bf16.msra.mxu0 0
        %583 = vmatprep.subr.bf16.mxu0 0
        %584 = vmatpush1.bf16.msra.mxu0 0
        %585 = vmatprep.subr.bf16.mxu0 0
        %586 = vmatpush1.bf16.msra.mxu0 0
        %587 = vmatprep.subr.bf16.mxu0 0
        %588 = vmatpush1.bf16.msra.mxu0 0
        %589 = vmatprep.subr.bf16.mxu0 0
        %590 = vmatpush1.bf16.msra.mxu0 0
        %591 = vmatprep.subr.bf16.mxu0 0
        %592 = vmatpush1.bf16.msra.mxu0 0
        %593 = vmatprep.subr.bf16.mxu0 0
        %594 = vmatpush1.bf16.msra.mxu0 0
        %595 = vmatprep.subr.bf16.mxu0 0
        %596 = vmatpush1.bf16.msra.mxu0 0
        %597 = vmatprep.subr.bf16.mxu0 0
        %598 = vmatpush1.bf16.msra.mxu0 0
        %599 = vmatprep.subr.bf16.mxu0 0
        %600 = vmatpush1.bf16.msra.mxu0 0
        %601 = vmatprep.mubr.bf16.mxu0 0
        %602 = vmatmul.mubr.bf16.gmra.mrb[0].mxu0 %v548
        %v603 = vpop.f32.mrb[0].mxu0
        %v604 = vadd.f32 0.0, %v603
        %v605 = vpop.f32.mrb[0].mxu0
        %v606 = vadd.f32 0.0, %v605
        %v607 = vpop.f32.mrb[0].mxu0
        %v608 = vpop.f32.mrb[0].mxu0
        %609 = vdwg.mxu0
        %610 = vmatprep.subr.bf16.mxu0 %v561
        %611 = vmatpush1.bf16.msra.mxu0 %v558
        %612 = vmatprep.subr.bf16.mxu0 0
        %613 = vmatpush1.bf16.msra.mxu0 0
        %614 = vmatprep.subr.bf16.mxu0 0
        %615 = vmatpush1.bf16.msra.mxu0 0
        %616 = vmatprep.subr.bf16.mxu0 0
        %617 = vmatpush1.bf16.msra.mxu0 0
        %618 = vmatprep.subr.bf16.mxu0 0
        %619 = vmatpush1.bf16.msra.mxu0 0
        %620 = vmatprep.subr.bf16.mxu0 0
        %621 = vmatpush1.bf16.msra.mxu0 0
        %622 = vmatprep.subr.bf16.mxu0 0
        %623 = vmatpush1.bf16.msra.mxu0 0
        %624 = vmatprep.subr.bf16.mxu0 0
        %625 = vmatpush1.bf16.msra.mxu0 0
        %626 = vmatprep.subr.bf16.mxu0 0
        %627 = vmatpush1.bf16.msra.mxu0 0
        %628 = vmatprep.subr.bf16.mxu0 0
        %629 = vmatpush1.bf16.msra.mxu0 0
        %630 = vmatprep.subr.bf16.mxu0 0
        %631 = vmatpush1.bf16.msra.mxu0 0
        %632 = vmatprep.subr.bf16.mxu0 0
        %633 = vmatpush1.bf16.msra.mxu0 0
        %634 = vmatprep.subr.bf16.mxu0 0
        %635 = vmatpush1.bf16.msra.mxu0 0
        %636 = vmatprep.subr.bf16.mxu0 0
        %637 = vmatpush1.bf16.msra.mxu0 0
        %638 = vmatprep.subr.bf16.mxu0 0
        %639 = vmatpush1.bf16.msra.mxu0 0
        %640 = vmatprep.subr.bf16.mxu0 0
        %641 = vmatpush1.bf16.msra.mxu0 0
        %642 = vmatprep.mubr.bf16.mxu0 0
        %643 = vmatmul.mubr.bf16.gmra.mrb[0].mxu0 %v548
        %v644 = vpop.f32.mrb[0].mxu0
        %v645 = vadd.f32 0.0, %v644
        %v646 = vpop.f32.mrb[0].mxu0
        %v647 = vadd.f32 0.0, %v646
        %v648 = vpop.f32.mrb[0].mxu0
        %v649 = vpop.f32.mrb[0].mxu0
        %650 = vdwg.mxu0
        %651 = vmatprep.subr.bf16.mxu0 %v567
        %652 = vmatpush1.bf16.msra.mxu0 %v564
        %653 = vmatprep.subr.bf16.mxu0 0
        %654 = vmatpush1.bf16.msra.mxu0 0
        %655 = vmatprep.subr.bf16.mxu0 0
        %656 = vmatpush1.bf16.msra.mxu0 0
        %657 = vmatprep.subr.bf16.mxu0 0
        %658 = vmatpush1.bf16.msra.mxu0 0
        %659 = vmatprep.subr.bf16.mxu0 0
        %660 = vmatpush1.bf16.msra.mxu0 0
        %661 = vmatprep.subr.bf16.mxu0 0
        %662 = vmatpush1.bf16.msra.mxu0 0
        %663 = vmatprep.subr.bf16.mxu0 0
        %664 = vmatpush1.bf16.msra.mxu0 0
        %665 = vmatprep.subr.bf16.mxu0 0
        %666 = vmatpush1.bf16.msra.mxu0 0
        %667 = vmatprep.subr.bf16.mxu0 0
        %668 = vmatpush1.bf16.msra.mxu0 0
        %669 = vmatprep.subr.bf16.mxu0 0
        %670 = vmatpush1.bf16.msra.mxu0 0
        %671 = vmatprep.subr.bf16.mxu0 0
        %672 = vmatpush1.bf16.msra.mxu0 0
        %673 = vmatprep.subr.bf16.mxu0 0
        %674 = vmatpush1.bf16.msra.mxu0 0
        %675 = vmatprep.subr.bf16.mxu0 0
        %676 = vmatpush1.bf16.msra.mxu0 0
        %677 = vmatprep.subr.bf16.mxu0 0
        %678 = vmatpush1.bf16.msra.mxu0 0
        %679 = vmatprep.subr.bf16.mxu0 0
        %680 = vmatpush1.bf16.msra.mxu0 0
        %681 = vmatprep.subr.bf16.mxu0 0
        %682 = vmatpush1.bf16.msra.mxu0 0
        %683 = vmatprep.mubr.bf16.mxu0 0
        %684 = vmatmul.mubr.bf16.gmra.mrb[0].mxu0 %v548
        %v685 = vpop.f32.mrb[0].mxu0
        %v686 = vadd.f32 0.0, %v685
        %v687 = vpop.f32.mrb[0].mxu0
        %v688 = vadd.f32 0.0, %v687
        %v689 = vpop.f32.mrb[0].mxu0
        %v690 = vpop.f32.mrb[0].mxu0
        %691 = vdwg.mxu0
        %692 = vrot.lane.b32.xlu0 %v486, 27
        %v693 = vpop.permute.xlu0 %692
        %694 = vrot.lane.b32.xlu0 %v496, 27
        %v695 = vpop.permute.xlu0 %694
        %696 = vrot.lane.b32.xlu0 %v504, 27
        %v697 = vpop.permute.xlu0 %696
        %698 = vrot.lane.b32.xlu0 %v503, 27
        %v699 = vpop.permute.xlu0 %698
        %700 = vrot.lane.b32.xlu0 %v505, 27
        %v701 = vpop.permute.xlu0 %700
        %702 = vrot.lane.b32.xlu0 %v512, 27
        %v703 = vpop.permute.xlu0 %702
        %704 = vrot.lane.b32.xlu0 %v513, 27
        %v705 = vpop.permute.xlu0 %704
        %vm706 = vcmask 220160
        %v707 = vsel %vm706, %v693, %v695
        %v708 = vsel %vm706, %v695, %v697
        %v709 = vsel %vm706, %v697, %v699
        %v710 = vsel %vm706, %v699, %v701
        %v711 = vsel %vm706, %v701, %v703
        %v712 = vsel %vm706, %v703, %v705
        %v714 = vsel %vm546, %v522, 0
        %v717 = vsel %vm550, %v707, 0
        %v720 = vsel %vm550, %v708, 0
        %v723 = vsel %vm550, %v709, 0
        %v726 = vsel %vm550, %v710, 0
        %v729 = vsel %vm550, %v711, 0
        %v732 = vsel %vm550, %v712, 0
        %734 = vmatprep.subr.bf16.mxu0 %v720
        %735 = vmatpush1.bf16.msra.mxu0 %v717
        %736 = vmatprep.subr.bf16.mxu0 0
        %737 = vmatpush1.bf16.msra.mxu0 0
        %738 = vmatprep.subr.bf16.mxu0 0
        %739 = vmatpush1.bf16.msra.mxu0 0
        %740 = vmatprep.subr.bf16.mxu0 0
        %741 = vmatpush1.bf16.msra.mxu0 0
        %742 = vmatprep.subr.bf16.mxu0 0
        %743 = vmatpush1.bf16.msra.mxu0 0
        %744 = vmatprep.subr.bf16.mxu0 0
        %745 = vmatpush1.bf16.msra.mxu0 0
        %746 = vmatprep.subr.bf16.mxu0 0
        %747 = vmatpush1.bf16.msra.mxu0 0
        %748 = vmatprep.subr.bf16.mxu0 0
        %749 = vmatpush1.bf16.msra.mxu0 0
        %750 = vmatprep.subr.bf16.mxu0 0
        %751 = vmatpush1.bf16.msra.mxu0 0
        %752 = vmatprep.subr.bf16.mxu0 0
        %753 = vmatpush1.bf16.msra.mxu0 0
        %754 = vmatprep.subr.bf16.mxu0 0
        %755 = vmatpush1.bf16.msra.mxu0 0
        %756 = vmatprep.subr.bf16.mxu0 0
        %757 = vmatpush1.bf16.msra.mxu0 0
        %758 = vmatprep.subr.bf16.mxu0 0
        %759 = vmatpush1.bf16.msra.mxu0 0
        %760 = vmatprep.subr.bf16.mxu0 0
        %761 = vmatpush1.bf16.msra.mxu0 0
        %762 = vmatprep.subr.bf16.mxu0 0
        %763 = vmatpush1.bf16.msra.mxu0 0
        %764 = vmatprep.subr.bf16.mxu0 0
        %765 = vmatpush1.bf16.msra.mxu0 0
        %766 = vmatprep.mubr.bf16.mxu0 0
        %767 = vmatmul.mubr.bf16.gmra.mrb[0].mxu0 %v714
        %v768 = vpop.f32.mrb[0].mxu0
        %v769 = vadd.f32 %v604, %v768
        %v770 = vpop.f32.mrb[0].mxu0
        %v771 = vadd.f32 %v606, %v770
        %v772 = vpop.f32.mrb[0].mxu0
        %v773 = vpop.f32.mrb[0].mxu0
        %774 = vdwg.mxu0
        %775 = vmatprep.subr.bf16.mxu0 %v726
        %776 = vmatpush1.bf16.msra.mxu0 %v723
        %777 = vmatprep.subr.bf16.mxu0 0
        %778 = vmatpush1.bf16.msra.mxu0 0
        %779 = vmatprep.subr.bf16.mxu0 0
        %780 = vmatpush1.bf16.msra.mxu0 0
        %781 = vmatprep.subr.bf16.mxu0 0
        %782 = vmatpush1.bf16.msra.mxu0 0
        %783 = vmatprep.subr.bf16.mxu0 0
        %784 = vmatpush1.bf16.msra.mxu0 0
        %785 = vmatprep.subr.bf16.mxu0 0
        %786 = vmatpush1.bf16.msra.mxu0 0
        %787 = vmatprep.subr.bf16.mxu0 0
        %788 = vmatpush1.bf16.msra.mxu0 0
        %789 = vmatprep.subr.bf16.mxu0 0
        %790 = vmatpush1.bf16.msra.mxu0 0
        %791 = vmatprep.subr.bf16.mxu0 0
        %792 = vmatpush1.bf16.msra.mxu0 0
        %793 = vmatprep.subr.bf16.mxu0 0
        %794 = vmatpush1.bf16.msra.mxu0 0
        %795 = vmatprep.subr.bf16.mxu0 0
        %796 = vmatpush1.bf16.msra.mxu0 0
        %797 = vmatprep.subr.bf16.mxu0 0
        %798 = vmatpush1.bf16.msra.mxu0 0
        %799 = vmatprep.subr.bf16.mxu0 0
        %800 = vmatpush1.bf16.msra.mxu0 0
        %801 = vmatprep.subr.bf16.mxu0 0
        %802 = vmatpush1.bf16.msra.mxu0 0
        %803 = vmatprep.subr.bf16.mxu0 0
        %804 = vmatpush1.bf16.msra.mxu0 0
        %805 = vmatprep.subr.bf16.mxu0 0
        %806 = vmatpush1.bf16.msra.mxu0 0
        %807 = vmatprep.mubr.bf16.mxu0 0
        %808 = vmatmul.mubr.bf16.gmra.mrb[0].mxu0 %v714
        %v809 = vpop.f32.mrb[0].mxu0
        %v810 = vadd.f32 %v645, %v809
        %v811 = vpop.f32.mrb[0].mxu0
        %v812 = vadd.f32 %v647, %v811
        %v813 = vpop.f32.mrb[0].mxu0
        %v814 = vpop.f32.mrb[0].mxu0
        %815 = vdwg.mxu0
        %816 = vmatprep.subr.bf16.mxu0 %v732
        %817 = vmatpush1.bf16.msra.mxu0 %v729
        %818 = vmatprep.subr.bf16.mxu0 0
        %819 = vmatpush1.bf16.msra.mxu0 0
        %820 = vmatprep.subr.bf16.mxu0 0
        %821 = vmatpush1.bf16.msra.mxu0 0
        %822 = vmatprep.subr.bf16.mxu0 0
        %823 = vmatpush1.bf16.msra.mxu0 0
        %824 = vmatprep.subr.bf16.mxu0 0
        %825 = vmatpush1.bf16.msra.mxu0 0
        %826 = vmatprep.subr.bf16.mxu0 0
        %827 = vmatpush1.bf16.msra.mxu0 0
        %828 = vmatprep.subr.bf16.mxu0 0
        %829 = vmatpush1.bf16.msra.mxu0 0
        %830 = vmatprep.subr.bf16.mxu0 0
        %831 = vmatpush1.bf16.msra.mxu0 0
        %832 = vmatprep.subr.bf16.mxu0 0
        %833 = vmatpush1.bf16.msra.mxu0 0
        %834 = vmatprep.subr.bf16.mxu0 0
        %835 = vmatpush1.bf16.msra.mxu0 0
        %836 = vmatprep.subr.bf16.mxu0 0
        %837 = vmatpush1.bf16.msra.mxu0 0
        %838 = vmatprep.subr.bf16.mxu0 0
        %839 = vmatpush1.bf16.msra.mxu0 0
        %840 = vmatprep.subr.bf16.mxu0 0
        %841 = vmatpush1.bf16.msra.mxu0 0
        %842 = vmatprep.subr.bf16.mxu0 0
        %843 = vmatpush1.bf16.msra.mxu0 0
        %844 = vmatprep.subr.bf16.mxu0 0
        %845 = vmatpush1.bf16.msra.mxu0 0
        %846 = vmatprep.subr.bf16.mxu0 0
        %847 = vmatpush1.bf16.msra.mxu0 0
        %848 = vmatprep.mubr.bf16.mxu0 0
        %849 = vmatmul.mubr.bf16.gmra.mrb[0].mxu0 %v714
        %v850 = vpop.f32.mrb[0].mxu0
        %v851 = vadd.f32 %v686, %v850
        %v852 = vpop.f32.mrb[0].mxu0
        %v853 = vadd.f32 %v688, %v852
        %v854 = vpop.f32.mrb[0].mxu0
        %v855 = vpop.f32.mrb[0].mxu0
        %856 = vdwg.mxu0
        %s857 = scalar_lea.vmem %s4, 4
        %v858 = vld [vmem:[%s857] sm:$0x3]
        %859 = vrot.lane.b32.xlu0 %v486, 25
        %v860 = vpop.permute.xlu0 %859
        %861 = vrot.lane.b32.xlu0 %v496, 25
        %v862 = vpop.permute.xlu0 %861
        %863 = vrot.lane.b32.xlu0 %v504, 25
        %v864 = vpop.permute.xlu0 %863
        %865 = vrot.lane.b32.xlu0 %v503, 25
        %v866 = vpop.permute.xlu0 %865
        %867 = vrot.lane.b32.xlu0 %v505, 25
        %v868 = vpop.permute.xlu0 %867
        %869 = vrot.lane.b32.xlu0 %v512, 25
        %v870 = vpop.permute.xlu0 %869
        %871 = vrot.lane.b32.xlu0 %v513, 25
        %v872 = vpop.permute.xlu0 %871
        %vm873 = vcmask 203776
        %v874 = vsel %vm873, %v860, %v862
        %v875 = vsel %vm873, %v862, %v864
        %v876 = vsel %vm873, %v864, %v866
        %v877 = vsel %vm873, %v866, %v868
        %v878 = vsel %vm873, %v868, %v870
        %v879 = vsel %vm873, %v870, %v872
        %v881 = vsel %vm546, %v858, 0
        %v884 = vsel %vm550, %v874, 0
        %v887 = vsel %vm550, %v875, 0
        %v890 = vsel %vm550, %v876, 0
        %v893 = vsel %vm550, %v877, 0
        %v896 = vsel %vm550, %v878, 0
        %v899 = vsel %vm550, %v879, 0
        %901 = vmatprep.subr.bf16.mxu0 %v887
        %902 = vmatpush1.bf16.msra.mxu0 %v884
        %903 = vmatprep.subr.bf16.mxu0 0
        %904 = vmatpush1.bf16.msra.mxu0 0
        %905 = vmatprep.subr.bf16.mxu0 0
        %906 = vmatpush1.bf16.msra.mxu0 0
        %907 = vmatprep.subr.bf16.mxu0 0
        %908 = vmatpush1.bf16.msra.mxu0 0
        %909 = vmatprep.subr.bf16.mxu0 0
        %910 = vmatpush1.bf16.msra.mxu0 0
        %911 = vmatprep.subr.bf16.mxu0 0
        %912 = vmatpush1.bf16.msra.mxu0 0
        %913 = vmatprep.subr.bf16.mxu0 0
        %914 = vmatpush1.bf16.msra.mxu0 0
        %915 = vmatprep.subr.bf16.mxu0 0
        %916 = vmatpush1.bf16.msra.mxu0 0
        %917 = vmatprep.subr.bf16.mxu0 0
        %918 = vmatpush1.bf16.msra.mxu0 0
        %919 = vmatprep.subr.bf16.mxu0 0
        %920 = vmatpush1.bf16.msra.mxu0 0
        %921 = vmatprep.subr.bf16.mxu0 0
        %922 = vmatpush1.bf16.msra.mxu0 0
        %923 = vmatprep.subr.bf16.mxu0 0
        %924 = vmatpush1.bf16.msra.mxu0 0
        %925 = vmatprep.subr.bf16.mxu0 0
        %926 = vmatpush1.bf16.msra.mxu0 0
        %927 = vmatprep.subr.bf16.mxu0 0
        %928 = vmatpush1.bf16.msra.mxu0 0
        %929 = vmatprep.subr.bf16.mxu0 0
        %930 = vmatpush1.bf16.msra.mxu0 0
        %931 = vmatprep.subr.bf16.mxu0 0
        %932 = vmatpush1.bf16.msra.mxu0 0
        %933 = vmatprep.mubr.bf16.mxu0 0
        %934 = vmatmul.mubr.bf16.gmra.mrb[0].mxu0 %v881
        %v935 = vpop.f32.mrb[0].mxu0
        %v936 = vadd.f32 0.0, %v935
        %v937 = vpop.f32.mrb[0].mxu0
        %v938 = vadd.f32 0.0, %v937
        %v939 = vpop.f32.mrb[0].mxu0
        %v940 = vpop.f32.mrb[0].mxu0
        %941 = vdwg.mxu0
        %942 = vmatprep.subr.bf16.mxu0 %v893
        %943 = vmatpush1.bf16.msra.mxu0 %v890
        %944 = vmatprep.subr.bf16.mxu0 0
        %945 = vmatpush1.bf16.msra.mxu0 0
        %946 = vmatprep.subr.bf16.mxu0 0
        %947 = vmatpush1.bf16.msra.mxu0 0
        %948 = vmatprep.subr.bf16.mxu0 0
        %949 = vmatpush1.bf16.msra.mxu0 0
        %950 = vmatprep.subr.bf16.mxu0 0
        %951 = vmatpush1.bf16.msra.mxu0 0
        %952 = vmatprep.subr.bf16.mxu0 0
        %953 = vmatpush1.bf16.msra.mxu0 0
        %954 = vmatprep.subr.bf16.mxu0 0
        %955 = vmatpush1.bf16.msra.mxu0 0
        %956 = vmatprep.subr.bf16.mxu0 0
        %957 = vmatpush1.bf16.msra.mxu0 0
        %958 = vmatprep.subr.bf16.mxu0 0
        %959 = vmatpush1.bf16.msra.mxu0 0
        %960 = vmatprep.subr.bf16.mxu0 0
        %961 = vmatpush1.bf16.msra.mxu0 0
        %962 = vmatprep.subr.bf16.mxu0 0
        %963 = vmatpush1.bf16.msra.mxu0 0
        %964 = vmatprep.subr.bf16.mxu0 0
        %965 = vmatpush1.bf16.msra.mxu0 0
        %966 = vmatprep.subr.bf16.mxu0 0
        %967 = vmatpush1.bf16.msra.mxu0 0
        %968 = vmatprep.subr.bf16.mxu0 0
        %969 = vmatpush1.bf16.msra.mxu0 0
        %970 = vmatprep.subr.bf16.mxu0 0
        %971 = vmatpush1.bf16.msra.mxu0 0
        %972 = vmatprep.subr.bf16.mxu0 0
        %973 = vmatpush1.bf16.msra.mxu0 0
        %974 = vmatprep.mubr.bf16.mxu0 0
        %975 = vmatmul.mubr.bf16.gmra.mrb[0].mxu0 %v881
        %v976 = vpop.f32.mrb[0].mxu0
        %v977 = vadd.f32 0.0, %v976
        %v978 = vpop.f32.mrb[0].mxu0
        %v979 = vadd.f32 0.0, %v978
        %v980 = vpop.f32.mrb[0].mxu0
        %v981 = vpop.f32.mrb[0].mxu0
        %982 = vdwg.mxu0
        %983 = vmatprep.subr.bf16.mxu0 %v899
        %984 = vmatpush1.bf16.msra.mxu0 %v896
        %985 = vmatprep.subr.bf16.mxu0 0
        %986 = vmatpush1.bf16.msra.mxu0 0
        %987 = vmatprep.subr.bf16.mxu0 0
        %988 = vmatpush1.bf16.msra.mxu0 0
        %989 = vmatprep.subr.bf16.mxu0 0
        %990 = vmatpush1.bf16.msra.mxu0 0
        %991 = vmatprep.subr.bf16.mxu0 0
        %992 = vmatpush1.bf16.msra.mxu0 0
        %993 = vmatprep.subr.bf16.mxu0 0
        %994 = vmatpush1.bf16.msra.mxu0 0
        %995 = vmatprep.subr.bf16.mxu0 0
        %996 = vmatpush1.bf16.msra.mxu0 0
        %997 = vmatprep.subr.bf16.mxu0 0
        %998 = vmatpush1.bf16.msra.mxu0 0
        %999 = vmatprep.subr.bf16.mxu0 0
        %1000 = vmatpush1.bf16.msra.mxu0 0
        %1001 = vmatprep.subr.bf16.mxu0 0
        %1002 = vmatpush1.bf16.msra.mxu0 0
        %1003 = vmatprep.subr.bf16.mxu0 0
        %1004 = vmatpush1.bf16.msra.mxu0 0
        %1005 = vmatprep.subr.bf16.mxu0 0
        %1006 = vmatpush1.bf16.msra.mxu0 0
        %1007 = vmatprep.subr.bf16.mxu0 0
        %1008 = vmatpush1.bf16.msra.mxu0 0
        %1009 = vmatprep.subr.bf16.mxu0 0
        %1010 = vmatpush1.bf16.msra.mxu0 0
        %1011 = vmatprep.subr.bf16.mxu0 0
        %1012 = vmatpush1.bf16.msra.mxu0 0
        %1013 = vmatprep.subr.bf16.mxu0 0
        %1014 = vmatpush1.bf16.msra.mxu0 0
        %1015 = vmatprep.mubr.bf16.mxu0 0
        %1016 = vmatmul.mubr.bf16.gmra.mrb[0].mxu0 %v881
        %v1017 = vpop.f32.mrb[0].mxu0
        %v1018 = vadd.f32 0.0, %v1017
        %v1019 = vpop.f32.mrb[0].mxu0
        %v1020 = vadd.f32 0.0, %v1019
        %v1021 = vpop.f32.mrb[0].mxu0
        %v1022 = vpop.f32.mrb[0].mxu0
        %1023 = vdwg.mxu0
        %v1024 = vadd.f32 %v769, %v936
        %v1025 = vadd.f32 %v771, %v938
        %v1026 = vadd.f32 %v810, %v977
        %v1027 = vadd.f32 %v812, %v979
        %v1028 = vadd.f32 %v851, %v1018
        %v1029 = vadd.f32 %v853, %v1020
        %s1030 = scalar_lea.vmem %s4, 6
        %v1031 = vld [vmem:[%s1030] sm:$0x3]
        %1032 = vrot.lane.b32.xlu0 %v486, 1
        %v1033 = vpop.permute.xlu0 %1032
        %1034 = vrot.lane.b32.xlu0 %v496, 1
        %v1035 = vpop.permute.xlu0 %1034
        %1036 = vrot.lane.b32.xlu0 %v504, 1
        %v1037 = vpop.permute.xlu0 %1036
        %1038 = vrot.lane.b32.xlu0 %v503, 1
        %v1039 = vpop.permute.xlu0 %1038
        %1040 = vrot.lane.b32.xlu0 %v505, 1
        %v1041 = vpop.permute.xlu0 %1040
        %1042 = vrot.lane.b32.xlu0 %v512, 1
        %v1043 = vpop.permute.xlu0 %1042
        %1044 = vrot.lane.b32.xlu0 %v513, 1
        %v1045 = vpop.permute.xlu0 %1044
        %vm1046 = vcmask 7168
        %v1047 = vsel %vm1046, %v1033, %v1035
        %v1048 = vsel %vm1046, %v1035, %v1037
        %v1049 = vsel %vm1046, %v1037, %v1039
        %v1050 = vsel %vm1046, %v1039, %v1041
        %v1051 = vsel %vm1046, %v1041, %v1043
        %v1052 = vsel %vm1046, %v1043, %v1045
        %v1054 = vsel %vm546, %v1031, 0
        %v1057 = vsel %vm550, %v1047, 0
        %v1060 = vsel %vm550, %v1048, 0
        %v1063 = vsel %vm550, %v1049, 0
        %v1066 = vsel %vm550, %v1050, 0
        %v1069 = vsel %vm550, %v1051, 0
        %v1072 = vsel %vm550, %v1052, 0
        %1074 = vmatprep.subr.bf16.mxu0 %v1060
        %1075 = vmatpush1.bf16.msra.mxu0 %v1057
        %1076 = vmatprep.subr.bf16.mxu0 0
        %1077 = vmatpush1.bf16.msra.mxu0 0
        %1078 = vmatprep.subr.bf16.mxu0 0
        %1079 = vmatpush1.bf16.msra.mxu0 0
        %1080 = vmatprep.subr.bf16.mxu0 0
        %1081 = vmatpush1.bf16.msra.mxu0 0
        %1082 = vmatprep.subr.bf16.mxu0 0
        %1083 = vmatpush1.bf16.msra.mxu0 0
        %1084 = vmatprep.subr.bf16.mxu0 0
        %1085 = vmatpush1.bf16.msra.mxu0 0
        %1086 = vmatprep.subr.bf16.mxu0 0
        %1087 = vmatpush1.bf16.msra.mxu0 0
        %1088 = vmatprep.subr.bf16.mxu0 0
        %1089 = vmatpush1.bf16.msra.mxu0 0
        %1090 = vmatprep.subr.bf16.mxu0 0
        %1091 = vmatpush1.bf16.msra.mxu0 0
        %1092 = vmatprep.subr.bf16.mxu0 0
        %1093 = vmatpush1.bf16.msra.mxu0 0
        %1094 = vmatprep.subr.bf16.mxu0 0
        %1095 = vmatpush1.bf16.msra.mxu0 0
        %1096 = vmatprep.subr.bf16.mxu0 0
        %1097 = vmatpush1.bf16.msra.mxu0 0
        %1098 = vmatprep.subr.bf16.mxu0 0
        %1099 = vmatpush1.bf16.msra.mxu0 0
        %1100 = vmatprep.subr.bf16.mxu0 0
        %1101 = vmatpush1.bf16.msra.mxu0 0
        %1102 = vmatprep.subr.bf16.mxu0 0
        %1103 = vmatpush1.bf16.msra.mxu0 0
        %1104 = vmatprep.subr.bf16.mxu0 0
        %1105 = vmatpush1.bf16.msra.mxu0 0
        %1106 = vmatprep.mubr.bf16.mxu0 0
        %1107 = vmatmul.mubr.bf16.gmra.mrb[0].mxu0 %v1054
        %v1108 = vpop.f32.mrb[0].mxu0
        %v1109 = vadd.f32 0.0, %v1108
        %v1110 = vpop.f32.mrb[0].mxu0
        %v1111 = vadd.f32 0.0, %v1110
        %v1112 = vpop.f32.mrb[0].mxu0
        %v1113 = vpop.f32.mrb[0].mxu0
        %1114 = vdwg.mxu0
        %1115 = vmatprep.subr.bf16.mxu0 %v1066
        %1116 = vmatpush1.bf16.msra.mxu0 %v1063
        %1117 = vmatprep.subr.bf16.mxu0 0
        %1118 = vmatpush1.bf16.msra.mxu0 0
        %1119 = vmatprep.subr.bf16.mxu0 0
        %1120 = vmatpush1.bf16.msra.mxu0 0
        %1121 = vmatprep.subr.bf16.mxu0 0
        %1122 = vmatpush1.bf16.msra.mxu0 0
        %1123 = vmatprep.subr.bf16.mxu0 0
        %1124 = vmatpush1.bf16.msra.mxu0 0
        %1125 = vmatprep.subr.bf16.mxu0 0
        %1126 = vmatpush1.bf16.msra.mxu0 0
        %1127 = vmatprep.subr.bf16.mxu0 0
        %1128 = vmatpush1.bf16.msra.mxu0 0
        %1129 = vmatprep.subr.bf16.mxu0 0
        %1130 = vmatpush1.bf16.msra.mxu0 0
        %1131 = vmatprep.subr.bf16.mxu0 0
        %1132 = vmatpush1.bf16.msra.mxu0 0
        %1133 = vmatprep.subr.bf16.mxu0 0
        %1134 = vmatpush1.bf16.msra.mxu0 0
        %1135 = vmatprep.subr.bf16.mxu0 0
        %1136 = vmatpush1.bf16.msra.mxu0 0
        %1137 = vmatprep.subr.bf16.mxu0 0
        %1138 = vmatpush1.bf16.msra.mxu0 0
        %1139 = vmatprep.subr.bf16.mxu0 0
        %1140 = vmatpush1.bf16.msra.mxu0 0
        %1141 = vmatprep.subr.bf16.mxu0 0
        %1142 = vmatpush1.bf16.msra.mxu0 0
        %1143 = vmatprep.subr.bf16.mxu0 0
        %1144 = vmatpush1.bf16.msra.mxu0 0
        %1145 = vmatprep.subr.bf16.mxu0 0
        %1146 = vmatpush1.bf16.msra.mxu0 0
        %1147 = vmatprep.mubr.bf16.mxu0 0
        %1148 = vmatmul.mubr.bf16.gmra.mrb[0].mxu0 %v1054
        %v1149 = vpop.f32.mrb[0].mxu0
        %v1150 = vadd.f32 0.0, %v1149
        %v1151 = vpop.f32.mrb[0].mxu0
        %v1152 = vadd.f32 0.0, %v1151
        %v1153 = vpop.f32.mrb[0].mxu0
        %v1154 = vpop.f32.mrb[0].mxu0
        %1155 = vdwg.mxu0
        %1156 = vmatprep.subr.bf16.mxu0 %v1072
        %1157 = vmatpush1.bf16.msra.mxu0 %v1069
        %1158 = vmatprep.subr.bf16.mxu0 0
        %1159 = vmatpush1.bf16.msra.mxu0 0
        %1160 = vmatprep.subr.bf16.mxu0 0
        %1161 = vmatpush1.bf16.msra.mxu0 0
        %1162 = vmatprep.subr.bf16.mxu0 0
        %1163 = vmatpush1.bf16.msra.mxu0 0
        %1164 = vmatprep.subr.bf16.mxu0 0
        %1165 = vmatpush1.bf16.msra.mxu0 0
        %1166 = vmatprep.subr.bf16.mxu0 0
        %1167 = vmatpush1.bf16.msra.mxu0 0
        %1168 = vmatprep.subr.bf16.mxu0 0
        %1169 = vmatpush1.bf16.msra.mxu0 0
        %1170 = vmatprep.subr.bf16.mxu0 0
        %1171 = vmatpush1.bf16.msra.mxu0 0
        %1172 = vmatprep.subr.bf16.mxu0 0
        %1173 = vmatpush1.bf16.msra.mxu0 0
        %1174 = vmatprep.subr.bf16.mxu0 0
        %1175 = vmatpush1.bf16.msra.mxu0 0
        %1176 = vmatprep.subr.bf16.mxu0 0
        %1177 = vmatpush1.bf16.msra.mxu0 0
        %1178 = vmatprep.subr.bf16.mxu0 0
        %1179 = vmatpush1.bf16.msra.mxu0 0
        %1180 = vmatprep.subr.bf16.mxu0 0
        %1181 = vmatpush1.bf16.msra.mxu0 0
        %1182 = vmatprep.subr.bf16.mxu0 0
        %1183 = vmatpush1.bf16.msra.mxu0 0
        %1184 = vmatprep.subr.bf16.mxu0 0
        %1185 = vmatpush1.bf16.msra.mxu0 0
        %1186 = vmatprep.subr.bf16.mxu0 0
        %1187 = vmatpush1.bf16.msra.mxu0 0
        %1188 = vmatprep.mubr.bf16.mxu0 0
        %1189 = vmatmul.mubr.bf16.gmra.mrb[0].mxu0 %v1054
        %v1190 = vpop.f32.mrb[0].mxu0
        %v1191 = vadd.f32 0.0, %v1190
        %v1192 = vpop.f32.mrb[0].mxu0
        %v1193 = vadd.f32 0.0, %v1192
        %v1194 = vpop.f32.mrb[0].mxu0
        %v1195 = vpop.f32.mrb[0].mxu0
        %1196 = vdwg.mxu0
        %v1197 = vadd.f32 %v1024, %v1109
        %v1198 = vadd.f32 %v1025, %v1111
        %v1199 = vadd.f32 %v1026, %v1150
        %v1200 = vadd.f32 %v1027, %v1152
        %v1201 = vadd.f32 %v1028, %v1191
        %v1202 = vadd.f32 %v1029, %v1193
        %s1203 = scalar_lea.vmem %s4, 8
        %v1204 = vld [vmem:[%s1203] sm:$0x3]
        %v1206 = vsel %vm546, %v1204, 0
        %v1209 = vsel %vm550, %v496, 0
        %v1212 = vsel %vm550, %v504, 0
        %v1215 = vsel %vm550, %v503, 0
        %v1218 = vsel %vm550, %v505, 0
        %v1221 = vsel %vm550, %v512, 0
        %v1224 = vsel %vm550, %v513, 0
        %1226 = vmatprep.subr.bf16.mxu0 %v1212
        %1227 = vmatpush1.bf16.msra.mxu0 %v1209
        %1228 = vmatprep.subr.bf16.mxu0 0
        %1229 = vmatpush1.bf16.msra.mxu0 0
        %1230 = vmatprep.subr.bf16.mxu0 0
        %1231 = vmatpush1.bf16.msra.mxu0 0
        %1232 = vmatprep.subr.bf16.mxu0 0
        %1233 = vmatpush1.bf16.msra.mxu0 0
        %1234 = vmatprep.subr.bf16.mxu0 0
        %1235 = vmatpush1.bf16.msra.mxu0 0
        %1236 = vmatprep.subr.bf16.mxu0 0
        %1237 = vmatpush1.bf16.msra.mxu0 0
        %1238 = vmatprep.subr.bf16.mxu0 0
        %1239 = vmatpush1.bf16.msra.mxu0 0
        %1240 = vmatprep.subr.bf16.mxu0 0
        %1241 = vmatpush1.bf16.msra.mxu0 0
        %1242 = vmatprep.subr.bf16.mxu0 0
        %1243 = vmatpush1.bf16.msra.mxu0 0
        %1244 = vmatprep.subr.bf16.mxu0 0
        %1245 = vmatpush1.bf16.msra.mxu0 0
        %1246 = vmatprep.subr.bf16.mxu0 0
        %1247 = vmatpush1.bf16.msra.mxu0 0
        %1248 = vmatprep.subr.bf16.mxu0 0
        %1249 = vmatpush1.bf16.msra.mxu0 0
        %1250 = vmatprep.subr.bf16.mxu0 0
        %1251 = vmatpush1.bf16.msra.mxu0 0
        %1252 = vmatprep.subr.bf16.mxu0 0
        %1253 = vmatpush1.bf16.msra.mxu0 0
        %1254 = vmatprep.subr.bf16.mxu0 0
        %1255 = vmatpush1.bf16.msra.mxu0 0
        %1256 = vmatprep.subr.bf16.mxu0 0
        %1257 = vmatpush1.bf16.msra.mxu0 0
        %1258 = vmatprep.mubr.bf16.mxu0 0
        %1259 = vmatmul.mubr.bf16.gmra.mrb[0].mxu0 %v1206
        %v1260 = vpop.f32.mrb[0].mxu0
        %v1261 = vadd.f32 0.0, %v1260
        %v1262 = vpop.f32.mrb[0].mxu0
        %v1263 = vadd.f32 0.0, %v1262
        %v1264 = vpop.f32.mrb[0].mxu0
        %v1265 = vpop.f32.mrb[0].mxu0
        %1266 = vdwg.mxu0
        %1267 = vmatprep.subr.bf16.mxu0 %v1218
        %1268 = vmatpush1.bf16.msra.mxu0 %v1215
        %1269 = vmatprep.subr.bf16.mxu0 0
        %1270 = vmatpush1.bf16.msra.mxu0 0
        %1271 = vmatprep.subr.bf16.mxu0 0
        %1272 = vmatpush1.bf16.msra.mxu0 0
        %1273 = vmatprep.subr.bf16.mxu0 0
        %1274 = vmatpush1.bf16.msra.mxu0 0
        %1275 = vmatprep.subr.bf16.mxu0 0
        %1276 = vmatpush1.bf16.msra.mxu0 0
        %1277 = vmatprep.subr.bf16.mxu0 0
        %1278 = vmatpush1.bf16.msra.mxu0 0
        %1279 = vmatprep.subr.bf16.mxu0 0
        %1280 = vmatpush1.bf16.msra.mxu0 0
        %1281 = vmatprep.subr.bf16.mxu0 0
        %1282 = vmatpush1.bf16.msra.mxu0 0
        %1283 = vmatprep.subr.bf16.mxu0 0
        %1284 = vmatpush1.bf16.msra.mxu0 0
        %1285 = vmatprep.subr.bf16.mxu0 0
        %1286 = vmatpush1.bf16.msra.mxu0 0
        %1287 = vmatprep.subr.bf16.mxu0 0
        %1288 = vmatpush1.bf16.msra.mxu0 0
        %1289 = vmatprep.subr.bf16.mxu0 0
        %1290 = vmatpush1.bf16.msra.mxu0 0
        %1291 = vmatprep.subr.bf16.mxu0 0
        %1292 = vmatpush1.bf16.msra.mxu0 0
        %1293 = vmatprep.subr.bf16.mxu0 0
        %1294 = vmatpush1.bf16.msra.mxu0 0
        %1295 = vmatprep.subr.bf16.mxu0 0
        %1296 = vmatpush1.bf16.msra.mxu0 0
        %1297 = vmatprep.subr.bf16.mxu0 0
        %1298 = vmatpush1.bf16.msra.mxu0 0
        %1299 = vmatprep.mubr.bf16.mxu0 0
        %1300 = vmatmul.mubr.bf16.gmra.mrb[0].mxu0 %v1206
        %v1301 = vpop.f32.mrb[0].mxu0
        %v1302 = vadd.f32 0.0, %v1301
        %v1303 = vpop.f32.mrb[0].mxu0
        %v1304 = vadd.f32 0.0, %v1303
        %v1305 = vpop.f32.mrb[0].mxu0
        %v1306 = vpop.f32.mrb[0].mxu0
        %1307 = vdwg.mxu0
        %1308 = vmatprep.subr.bf16.mxu0 %v1224
        %1309 = vmatpush1.bf16.msra.mxu0 %v1221
        %1310 = vmatprep.subr.bf16.mxu0 0
        %1311 = vmatpush1.bf16.msra.mxu0 0
        %1312 = vmatprep.subr.bf16.mxu0 0
        %1313 = vmatpush1.bf16.msra.mxu0 0
        %1314 = vmatprep.subr.bf16.mxu0 0
        %1315 = vmatpush1.bf16.msra.mxu0 0
        %1316 = vmatprep.subr.bf16.mxu0 0
        %1317 = vmatpush1.bf16.msra.mxu0 0
        %1318 = vmatprep.subr.bf16.mxu0 0
        %1319 = vmatpush1.bf16.msra.mxu0 0
        %1320 = vmatprep.subr.bf16.mxu0 0
        %1321 = vmatpush1.bf16.msra.mxu0 0
        %1322 = vmatprep.subr.bf16.mxu0 0
        %1323 = vmatpush1.bf16.msra.mxu0 0
        %1324 = vmatprep.subr.bf16.mxu0 0
        %1325 = vmatpush1.bf16.msra.mxu0 0
        %1326 = vmatprep.subr.bf16.mxu0 0
        %1327 = vmatpush1.bf16.msra.mxu0 0
        %1328 = vmatprep.subr.bf16.mxu0 0
        %1329 = vmatpush1.bf16.msra.mxu0 0
        %1330 = vmatprep.subr.bf16.mxu0 0
        %1331 = vmatpush1.bf16.msra.mxu0 0
        %1332 = vmatprep.subr.bf16.mxu0 0
        %1333 = vmatpush1.bf16.msra.mxu0 0
        %1334 = vmatprep.subr.bf16.mxu0 0
        %1335 = vmatpush1.bf16.msra.mxu0 0
        %1336 = vmatprep.subr.bf16.mxu0 0
        %1337 = vmatpush1.bf16.msra.mxu0 0
        %1338 = vmatprep.subr.bf16.mxu0 0
        %1339 = vmatpush1.bf16.msra.mxu0 0
        %1340 = vmatprep.mubr.bf16.mxu0 0
        %1341 = vmatmul.mubr.bf16.gmra.mrb[0].mxu0 %v1206
        %v1342 = vpop.f32.mrb[0].mxu0
        %v1343 = vadd.f32 0.0, %v1342
        %v1344 = vpop.f32.mrb[0].mxu0
        %v1345 = vadd.f32 0.0, %v1344
        %v1346 = vpop.f32.mrb[0].mxu0
        %v1347 = vpop.f32.mrb[0].mxu0
        %1348 = vdwg.mxu0
        %v1349 = vadd.f32 %v1197, %v1261
        %v1350 = vadd.f32 %v1198, %v1263
        %v1351 = vadd.f32 %v1199, %v1302
        %v1352 = vadd.f32 %v1200, %v1304
        %v1353 = vadd.f32 %v1201, %v1343
        %v1354 = vadd.f32 %v1202, %v1345
        %s1355 = scalar_lea.vmem %s4, 10
        %v1356 = vld [vmem:[%s1355] sm:$0x3]
        %1357 = vrot.lane.b32.xlu0 %v496, 127
        %v1358 = vpop.permute.xlu0 %1357
        %1359 = vrot.lane.b32.xlu0 %v504, 127
        %v1360 = vpop.permute.xlu0 %1359
        %1361 = vrot.lane.b32.xlu0 %v503, 127
        %v1362 = vpop.permute.xlu0 %1361
        %1363 = vrot.lane.b32.xlu0 %v505, 127
        %v1364 = vpop.permute.xlu0 %1363
        %1365 = vrot.lane.b32.xlu0 %v512, 127
        %v1366 = vpop.permute.xlu0 %1365
        %1367 = vrot.lane.b32.xlu0 %v513, 127
        %v1368 = vpop.permute.xlu0 %1367
        %1369 = vrot.lane.b32.xlu0 %v521, 127
        %v1370 = vpop.permute.xlu0 %1369
        %vm1371 = vcmask 1039360
        %v1372 = vsel %vm1371, %v1358, %v1360
        %v1373 = vsel %vm1371, %v1360, %v1362
        %v1374 = vsel %vm1371, %v1362, %v1364
        %v1375 = vsel %vm1371, %v1364, %v1366
        %v1376 = vsel %vm1371, %v1366, %v1368
        %v1377 = vsel %vm1371, %v1368, %v1370
        %v1379 = vsel %vm546, %v1356, 0
        %v1382 = vsel %vm550, %v1372, 0
        %v1385 = vsel %vm550, %v1373, 0
        %v1388 = vsel %vm550, %v1374, 0
        %v1391 = vsel %vm550, %v1375, 0
        %v1394 = vsel %vm550, %v1376, 0
        %v1397 = vsel %vm550, %v1377, 0
        %1399 = vmatprep.subr.bf16.mxu0 %v1385
        %1400 = vmatpush1.bf16.msra.mxu0 %v1382
        %1401 = vmatprep.subr.bf16.mxu0 0
        %1402 = vmatpush1.bf16.msra.mxu0 0
        %1403 = vmatprep.subr.bf16.mxu0 0
        %1404 = vmatpush1.bf16.msra.mxu0 0
        %1405 = vmatprep.subr.bf16.mxu0 0
        %1406 = vmatpush1.bf16.msra.mxu0 0
        %1407 = vmatprep.subr.bf16.mxu0 0
        %1408 = vmatpush1.bf16.msra.mxu0 0
        %1409 = vmatprep.subr.bf16.mxu0 0
        %1410 = vmatpush1.bf16.msra.mxu0 0
        %1411 = vmatprep.subr.bf16.mxu0 0
        %1412 = vmatpush1.bf16.msra.mxu0 0
        %1413 = vmatprep.subr.bf16.mxu0 0
        %1414 = vmatpush1.bf16.msra.mxu0 0
        %1415 = vmatprep.subr.bf16.mxu0 0
        %1416 = vmatpush1.bf16.msra.mxu0 0
        %1417 = vmatprep.subr.bf16.mxu0 0
        %1418 = vmatpush1.bf16.msra.mxu0 0
        %1419 = vmatprep.subr.bf16.mxu0 0
        %1420 = vmatpush1.bf16.msra.mxu0 0
        %1421 = vmatprep.subr.bf16.mxu0 0
        %1422 = vmatpush1.bf16.msra.mxu0 0
        %1423 = vmatprep.subr.bf16.mxu0 0
        %1424 = vmatpush1.bf16.msra.mxu0 0
        %1425 = vmatprep.subr.bf16.mxu0 0
        %1426 = vmatpush1.bf16.msra.mxu0 0
        %1427 = vmatprep.subr.bf16.mxu0 0
        %1428 = vmatpush1.bf16.msra.mxu0 0
        %1429 = vmatprep.subr.bf16.mxu0 0
        %1430 = vmatpush1.bf16.msra.mxu0 0
        %1431 = vmatprep.mubr.bf16.mxu0 0
        %1432 = vmatmul.mubr.bf16.gmra.mrb[0].mxu0 %v1379
        %v1433 = vpop.f32.mrb[0].mxu0
        %v1434 = vadd.f32 0.0, %v1433
        %v1435 = vpop.f32.mrb[0].mxu0
        %v1436 = vadd.f32 0.0, %v1435
        %v1437 = vpop.f32.mrb[0].mxu0
        %v1438 = vpop.f32.mrb[0].mxu0
        %1439 = vdwg.mxu0
        %1440 = vmatprep.subr.bf16.mxu0 %v1391
        %1441 = vmatpush1.bf16.msra.mxu0 %v1388
        %1442 = vmatprep.subr.bf16.mxu0 0
        %1443 = vmatpush1.bf16.msra.mxu0 0
        %1444 = vmatprep.subr.bf16.mxu0 0
        %1445 = vmatpush1.bf16.msra.mxu0 0
        %1446 = vmatprep.subr.bf16.mxu0 0
        %1447 = vmatpush1.bf16.msra.mxu0 0
        %1448 = vmatprep.subr.bf16.mxu0 0
        %1449 = vmatpush1.bf16.msra.mxu0 0
        %1450 = vmatprep.subr.bf16.mxu0 0
        %1451 = vmatpush1.bf16.msra.mxu0 0
        %1452 = vmatprep.subr.bf16.mxu0 0
        %1453 = vmatpush1.bf16.msra.mxu0 0
        %1454 = vmatprep.subr.bf16.mxu0 0
        %1455 = vmatpush1.bf16.msra.mxu0 0
        %1456 = vmatprep.subr.bf16.mxu0 0
        %1457 = vmatpush1.bf16.msra.mxu0 0
        %1458 = vmatprep.subr.bf16.mxu0 0
        %1459 = vmatpush1.bf16.msra.mxu0 0
        %1460 = vmatprep.subr.bf16.mxu0 0
        %1461 = vmatpush1.bf16.msra.mxu0 0
        %1462 = vmatprep.subr.bf16.mxu0 0
        %1463 = vmatpush1.bf16.msra.mxu0 0
        %1464 = vmatprep.subr.bf16.mxu0 0
        %1465 = vmatpush1.bf16.msra.mxu0 0
        %1466 = vmatprep.subr.bf16.mxu0 0
        %1467 = vmatpush1.bf16.msra.mxu0 0
        %1468 = vmatprep.subr.bf16.mxu0 0
        %1469 = vmatpush1.bf16.msra.mxu0 0
        %1470 = vmatprep.subr.bf16.mxu0 0
        %1471 = vmatpush1.bf16.msra.mxu0 0
        %1472 = vmatprep.mubr.bf16.mxu0 0
        %1473 = vmatmul.mubr.bf16.gmra.mrb[0].mxu0 %v1379
        %v1474 = vpop.f32.mrb[0].mxu0
        %v1475 = vadd.f32 0.0, %v1474
        %v1476 = vpop.f32.mrb[0].mxu0
        %v1477 = vadd.f32 0.0, %v1476
        %v1478 = vpop.f32.mrb[0].mxu0
        %v1479 = vpop.f32.mrb[0].mxu0
        %1480 = vdwg.mxu0
        %1481 = vmatprep.subr.bf16.mxu0 %v1397
        %1482 = vmatpush1.bf16.msra.mxu0 %v1394
        %1483 = vmatprep.subr.bf16.mxu0 0
        %1484 = vmatpush1.bf16.msra.mxu0 0
        %1485 = vmatprep.subr.bf16.mxu0 0
        %1486 = vmatpush1.bf16.msra.mxu0 0
        %1487 = vmatprep.subr.bf16.mxu0 0
        %1488 = vmatpush1.bf16.msra.mxu0 0
        %1489 = vmatprep.subr.bf16.mxu0 0
        %1490 = vmatpush1.bf16.msra.mxu0 0
        %1491 = vmatprep.subr.bf16.mxu0 0
        %1492 = vmatpush1.bf16.msra.mxu0 0
        %1493 = vmatprep.subr.bf16.mxu0 0
        %1494 = vmatpush1.bf16.msra.mxu0 0
        %1495 = vmatprep.subr.bf16.mxu0 0
        %1496 = vmatpush1.bf16.msra.mxu0 0
        %1497 = vmatprep.subr.bf16.mxu0 0
        %1498 = vmatpush1.bf16.msra.mxu0 0
        %1499 = vmatprep.subr.bf16.mxu0 0
        %1500 = vmatpush1.bf16.msra.mxu0 0
        %1501 = vmatprep.subr.bf16.mxu0 0
        %1502 = vmatpush1.bf16.msra.mxu0 0
        %1503 = vmatprep.subr.bf16.mxu0 0
        %1504 = vmatpush1.bf16.msra.mxu0 0
        %1505 = vmatprep.subr.bf16.mxu0 0
        %1506 = vmatpush1.bf16.msra.mxu0 0
        %1507 = vmatprep.subr.bf16.mxu0 0
        %1508 = vmatpush1.bf16.msra.mxu0 0
        %1509 = vmatprep.subr.bf16.mxu0 0
        %1510 = vmatpush1.bf16.msra.mxu0 0
        %1511 = vmatprep.subr.bf16.mxu0 0
        %1512 = vmatpush1.bf16.msra.mxu0 0
        %1513 = vmatprep.mubr.bf16.mxu0 0
        %1514 = vmatmul.mubr.bf16.gmra.mrb[0].mxu0 %v1379
        %v1515 = vpop.f32.mrb[0].mxu0
        %v1516 = vadd.f32 0.0, %v1515
        %v1517 = vpop.f32.mrb[0].mxu0
        %v1518 = vadd.f32 0.0, %v1517
        %v1519 = vpop.f32.mrb[0].mxu0
        %v1520 = vpop.f32.mrb[0].mxu0
        %1521 = vdwg.mxu0
        %v1522 = vadd.f32 %v1349, %v1434
        %v1523 = vadd.f32 %v1350, %v1436
        %v1524 = vadd.f32 %v1351, %v1475
        %v1525 = vadd.f32 %v1352, %v1477
        %v1526 = vadd.f32 %v1353, %v1516
        %v1527 = vadd.f32 %v1354, %v1518
        %s1528 = scalar_lea.vmem %s4, 12
        %v1529 = vld [vmem:[%s1528] sm:$0x3]
        %1530 = vrot.lane.b32.xlu0 %v496, 103
        %v1531 = vpop.permute.xlu0 %1530
        %1532 = vrot.lane.b32.xlu0 %v504, 103
        %v1533 = vpop.permute.xlu0 %1532
        %1534 = vrot.lane.b32.xlu0 %v503, 103
        %v1535 = vpop.permute.xlu0 %1534
        %1536 = vrot.lane.b32.xlu0 %v505, 103
        %v1537 = vpop.permute.xlu0 %1536
        %1538 = vrot.lane.b32.xlu0 %v512, 103
        %v1539 = vpop.permute.xlu0 %1538
        %1540 = vrot.lane.b32.xlu0 %v513, 103
        %v1541 = vpop.permute.xlu0 %1540
        %1542 = vrot.lane.b32.xlu0 %v521, 103
        %v1543 = vpop.permute.xlu0 %1542
        %vm1544 = vcmask 842752
        %v1545 = vsel %vm1544, %v1531, %v1533
        %v1546 = vsel %vm1544, %v1533, %v1535
        %v1547 = vsel %vm1544, %v1535, %v1537
        %v1548 = vsel %vm1544, %v1537, %v1539
        %v1549 = vsel %vm1544, %v1539, %v1541
        %v1550 = vsel %vm1544, %v1541, %v1543
        %v1552 = vsel %vm546, %v1529, 0
        %v1555 = vsel %vm550, %v1545, 0
        %v1558 = vsel %vm550, %v1546, 0
        %v1561 = vsel %vm550, %v1547, 0
        %v1564 = vsel %vm550, %v1548, 0
        %v1567 = vsel %vm550, %v1549, 0
        %v1570 = vsel %vm550, %v1550, 0
        %1572 = vmatprep.subr.bf16.mxu0 %v1558
        %1573 = vmatpush1.bf16.msra.mxu0 %v1555
        %1574 = vmatprep.subr.bf16.mxu0 0
        %1575 = vmatpush1.bf16.msra.mxu0 0
        %1576 = vmatprep.subr.bf16.mxu0 0
        %1577 = vmatpush1.bf16.msra.mxu0 0
        %1578 = vmatprep.subr.bf16.mxu0 0
        %1579 = vmatpush1.bf16.msra.mxu0 0
        %1580 = vmatprep.subr.bf16.mxu0 0
        %1581 = vmatpush1.bf16.msra.mxu0 0
        %1582 = vmatprep.subr.bf16.mxu0 0
        %1583 = vmatpush1.bf16.msra.mxu0 0
        %1584 = vmatprep.subr.bf16.mxu0 0
        %1585 = vmatpush1.bf16.msra.mxu0 0
        %1586 = vmatprep.subr.bf16.mxu0 0
        %1587 = vmatpush1.bf16.msra.mxu0 0
        %1588 = vmatprep.subr.bf16.mxu0 0
        %1589 = vmatpush1.bf16.msra.mxu0 0
        %1590 = vmatprep.subr.bf16.mxu0 0
        %1591 = vmatpush1.bf16.msra.mxu0 0
        %1592 = vmatprep.subr.bf16.mxu0 0
        %1593 = vmatpush1.bf16.msra.mxu0 0
        %1594 = vmatprep.subr.bf16.mxu0 0
        %1595 = vmatpush1.bf16.msra.mxu0 0
        %1596 = vmatprep.subr.bf16.mxu0 0
        %1597 = vmatpush1.bf16.msra.mxu0 0
        %1598 = vmatprep.subr.bf16.mxu0 0
        %1599 = vmatpush1.bf16.msra.mxu0 0
        %1600 = vmatprep.subr.bf16.mxu0 0
        %1601 = vmatpush1.bf16.msra.mxu0 0
        %1602 = vmatprep.subr.bf16.mxu0 0
        %1603 = vmatpush1.bf16.msra.mxu0 0
        %1604 = vmatprep.mubr.bf16.mxu0 0
        %1605 = vmatmul.mubr.bf16.gmra.mrb[0].mxu0 %v1552
        %v1606 = vpop.f32.mrb[0].mxu0
        %v1607 = vadd.f32 0.0, %v1606
        %v1608 = vpop.f32.mrb[0].mxu0
        %v1609 = vadd.f32 0.0, %v1608
        %v1610 = vpop.f32.mrb[0].mxu0
        %v1611 = vpop.f32.mrb[0].mxu0
        %1612 = vdwg.mxu0
        %1613 = vmatprep.subr.bf16.mxu0 %v1564
        %1614 = vmatpush1.bf16.msra.mxu0 %v1561
        %1615 = vmatprep.subr.bf16.mxu0 0
        %1616 = vmatpush1.bf16.msra.mxu0 0
        %1617 = vmatprep.subr.bf16.mxu0 0
        %1618 = vmatpush1.bf16.msra.mxu0 0
        %1619 = vmatprep.subr.bf16.mxu0 0
        %1620 = vmatpush1.bf16.msra.mxu0 0
        %1621 = vmatprep.subr.bf16.mxu0 0
        %1622 = vmatpush1.bf16.msra.mxu0 0
        %1623 = vmatprep.subr.bf16.mxu0 0
        %1624 = vmatpush1.bf16.msra.mxu0 0
        %1625 = vmatprep.subr.bf16.mxu0 0
        %1626 = vmatpush1.bf16.msra.mxu0 0
        %1627 = vmatprep.subr.bf16.mxu0 0
        %1628 = vmatpush1.bf16.msra.mxu0 0
        %1629 = vmatprep.subr.bf16.mxu0 0
        %1630 = vmatpush1.bf16.msra.mxu0 0
        %1631 = vmatprep.subr.bf16.mxu0 0
        %1632 = vmatpush1.bf16.msra.mxu0 0
        %1633 = vmatprep.subr.bf16.mxu0 0
        %1634 = vmatpush1.bf16.msra.mxu0 0
        %1635 = vmatprep.subr.bf16.mxu0 0
        %1636 = vmatpush1.bf16.msra.mxu0 0
        %1637 = vmatprep.subr.bf16.mxu0 0
        %1638 = vmatpush1.bf16.msra.mxu0 0
        %1639 = vmatprep.subr.bf16.mxu0 0
        %1640 = vmatpush1.bf16.msra.mxu0 0
        %1641 = vmatprep.subr.bf16.mxu0 0
        %1642 = vmatpush1.bf16.msra.mxu0 0
        %1643 = vmatprep.subr.bf16.mxu0 0
        %1644 = vmatpush1.bf16.msra.mxu0 0
        %1645 = vmatprep.mubr.bf16.mxu0 0
        %1646 = vmatmul.mubr.bf16.gmra.mrb[0].mxu0 %v1552
        %v1647 = vpop.f32.mrb[0].mxu0
        %v1648 = vadd.f32 0.0, %v1647
        %v1649 = vpop.f32.mrb[0].mxu0
        %v1650 = vadd.f32 0.0, %v1649
        %v1651 = vpop.f32.mrb[0].mxu0
        %v1652 = vpop.f32.mrb[0].mxu0
        %1653 = vdwg.mxu0
        %1654 = vmatprep.subr.bf16.mxu0 %v1570
        %1655 = vmatpush1.bf16.msra.mxu0 %v1567
        %1656 = vmatprep.subr.bf16.mxu0 0
        %1657 = vmatpush1.bf16.msra.mxu0 0
        %1658 = vmatprep.subr.bf16.mxu0 0
        %1659 = vmatpush1.bf16.msra.mxu0 0
        %1660 = vmatprep.subr.bf16.mxu0 0
        %1661 = vmatpush1.bf16.msra.mxu0 0
        %1662 = vmatprep.subr.bf16.mxu0 0
        %1663 = vmatpush1.bf16.msra.mxu0 0
        %1664 = vmatprep.subr.bf16.mxu0 0
        %1665 = vmatpush1.bf16.msra.mxu0 0
        %1666 = vmatprep.subr.bf16.mxu0 0
        %1667 = vmatpush1.bf16.msra.mxu0 0
        %1668 = vmatprep.subr.bf16.mxu0 0
        %1669 = vmatpush1.bf16.msra.mxu0 0
        %1670 = vmatprep.subr.bf16.mxu0 0
        %1671 = vmatpush1.bf16.msra.mxu0 0
        %1672 = vmatprep.subr.bf16.mxu0 0
        %1673 = vmatpush1.bf16.msra.mxu0 0
        %1674 = vmatprep.subr.bf16.mxu0 0
        %1675 = vmatpush1.bf16.msra.mxu0 0
        %1676 = vmatprep.subr.bf16.mxu0 0
        %1677 = vmatpush1.bf16.msra.mxu0 0
        %1678 = vmatprep.subr.bf16.mxu0 0
        %1679 = vmatpush1.bf16.msra.mxu0 0
        %1680 = vmatprep.subr.bf16.mxu0 0
        %1681 = vmatpush1.bf16.msra.mxu0 0
        %1682 = vmatprep.subr.bf16.mxu0 0
        %1683 = vmatpush1.bf16.msra.mxu0 0
        %1684 = vmatprep.subr.bf16.mxu0 0
        %1685 = vmatpush1.bf16.msra.mxu0 0
        %1686 = vmatprep.mubr.bf16.mxu0 0
        %1687 = vmatmul.mubr.bf16.gmra.mrb[0].mxu0 %v1552
        %v1688 = vpop.f32.mrb[0].mxu0
        %v1689 = vadd.f32 0.0, %v1688
        %v1690 = vpop.f32.mrb[0].mxu0
        %v1691 = vadd.f32 0.0, %v1690
        %v1692 = vpop.f32.mrb[0].mxu0
        %v1693 = vpop.f32.mrb[0].mxu0
        %1694 = vdwg.mxu0
        %v1695 = vadd.f32 %v1522, %v1607
        %v1696 = vadd.f32 %v1523, %v1609
        %v1697 = vadd.f32 %v1524, %v1648
        %v1698 = vadd.f32 %v1525, %v1650
        %v1699 = vadd.f32 %v1526, %v1689
        %v1700 = vadd.f32 %v1527, %v1691
        %s1701 = scalar_lea.vmem %s4, 14
        %v1702 = vld [vmem:[%s1701] sm:$0x3]
        %1703 = vrot.lane.b32.xlu0 %v496, 102
        %v1704 = vpop.permute.xlu0 %1703
        %1705 = vrot.lane.b32.xlu0 %v504, 102
        %v1706 = vpop.permute.xlu0 %1705
        %1707 = vrot.lane.b32.xlu0 %v503, 102
        %v1708 = vpop.permute.xlu0 %1707
        %1709 = vrot.lane.b32.xlu0 %v505, 102
        %v1710 = vpop.permute.xlu0 %1709
        %1711 = vrot.lane.b32.xlu0 %v512, 102
        %v1712 = vpop.permute.xlu0 %1711
        %1713 = vrot.lane.b32.xlu0 %v513, 102
        %v1714 = vpop.permute.xlu0 %1713
        %1715 = vrot.lane.b32.xlu0 %v521, 102
        %v1716 = vpop.permute.xlu0 %1715
        %vm1717 = vcmask 834560
        %v1718 = vsel %vm1717, %v1704, %v1706
        %v1719 = vsel %vm1717, %v1706, %v1708
        %v1720 = vsel %vm1717, %v1708, %v1710
        %v1721 = vsel %vm1717, %v1710, %v1712
        %v1722 = vsel %vm1717, %v1712, %v1714
        %v1723 = vsel %vm1717, %v1714, %v1716
        %v1725 = vsel %vm546, %v1702, 0
        %v1728 = vsel %vm550, %v1718, 0
        %v1731 = vsel %vm550, %v1719, 0
        %v1734 = vsel %vm550, %v1720, 0
        %v1737 = vsel %vm550, %v1721, 0
        %v1740 = vsel %vm550, %v1722, 0
        %v1743 = vsel %vm550, %v1723, 0
        %1745 = vmatprep.subr.bf16.mxu0 %v1731
        %1746 = vmatpush1.bf16.msra.mxu0 %v1728
        %1747 = vmatprep.subr.bf16.mxu0 0
        %1748 = vmatpush1.bf16.msra.mxu0 0
        %1749 = vmatprep.subr.bf16.mxu0 0
        %1750 = vmatpush1.bf16.msra.mxu0 0
        %1751 = vmatprep.subr.bf16.mxu0 0
        %1752 = vmatpush1.bf16.msra.mxu0 0
        %1753 = vmatprep.subr.bf16.mxu0 0
        %1754 = vmatpush1.bf16.msra.mxu0 0
        %1755 = vmatprep.subr.bf16.mxu0 0
        %1756 = vmatpush1.bf16.msra.mxu0 0
        %1757 = vmatprep.subr.bf16.mxu0 0
        %1758 = vmatpush1.bf16.msra.mxu0 0
        %1759 = vmatprep.subr.bf16.mxu0 0
        %1760 = vmatpush1.bf16.msra.mxu0 0
        %1761 = vmatprep.subr.bf16.mxu0 0
        %1762 = vmatpush1.bf16.msra.mxu0 0
        %1763 = vmatprep.subr.bf16.mxu0 0
        %1764 = vmatpush1.bf16.msra.mxu0 0
        %1765 = vmatprep.subr.bf16.mxu0 0
        %1766 = vmatpush1.bf16.msra.mxu0 0
        %1767 = vmatprep.subr.bf16.mxu0 0
        %1768 = vmatpush1.bf16.msra.mxu0 0
        %1769 = vmatprep.subr.bf16.mxu0 0
        %1770 = vmatpush1.bf16.msra.mxu0 0
        %1771 = vmatprep.subr.bf16.mxu0 0
        %1772 = vmatpush1.bf16.msra.mxu0 0
        %1773 = vmatprep.subr.bf16.mxu0 0
        %1774 = vmatpush1.bf16.msra.mxu0 0
        %1775 = vmatprep.subr.bf16.mxu0 0
        %1776 = vmatpush1.bf16.msra.mxu0 0
        %1777 = vmatprep.mubr.bf16.mxu0 0
        %1778 = vmatmul.mubr.bf16.gmra.mrb[0].mxu0 %v1725
        %v1779 = vpop.f32.mrb[0].mxu0
        %v1780 = vadd.f32 0.0, %v1779
        %v1781 = vpop.f32.mrb[0].mxu0
        %v1782 = vadd.f32 0.0, %v1781
        %v1783 = vpop.f32.mrb[0].mxu0
        %v1784 = vpop.f32.mrb[0].mxu0
        %1785 = vdwg.mxu0
        %1786 = vmatprep.subr.bf16.mxu0 %v1737
        %1787 = vmatpush1.bf16.msra.mxu0 %v1734
        %1788 = vmatprep.subr.bf16.mxu0 0
        %1789 = vmatpush1.bf16.msra.mxu0 0
        %1790 = vmatprep.subr.bf16.mxu0 0
        %1791 = vmatpush1.bf16.msra.mxu0 0
        %1792 = vmatprep.subr.bf16.mxu0 0
        %1793 = vmatpush1.bf16.msra.mxu0 0
        %1794 = vmatprep.subr.bf16.mxu0 0
        %1795 = vmatpush1.bf16.msra.mxu0 0
        %1796 = vmatprep.subr.bf16.mxu0 0
        %1797 = vmatpush1.bf16.msra.mxu0 0
        %1798 = vmatprep.subr.bf16.mxu0 0
        %1799 = vmatpush1.bf16.msra.mxu0 0
        %1800 = vmatprep.subr.bf16.mxu0 0
        %1801 = vmatpush1.bf16.msra.mxu0 0
        %1802 = vmatprep.subr.bf16.mxu0 0
        %1803 = vmatpush1.bf16.msra.mxu0 0
        %1804 = vmatprep.subr.bf16.mxu0 0
        %1805 = vmatpush1.bf16.msra.mxu0 0
        %1806 = vmatprep.subr.bf16.mxu0 0
        %1807 = vmatpush1.bf16.msra.mxu0 0
        %1808 = vmatprep.subr.bf16.mxu0 0
        %1809 = vmatpush1.bf16.msra.mxu0 0
        %1810 = vmatprep.subr.bf16.mxu0 0
        %1811 = vmatpush1.bf16.msra.mxu0 0
        %1812 = vmatprep.subr.bf16.mxu0 0
        %1813 = vmatpush1.bf16.msra.mxu0 0
        %1814 = vmatprep.subr.bf16.mxu0 0
        %1815 = vmatpush1.bf16.msra.mxu0 0
        %1816 = vmatprep.subr.bf16.mxu0 0
        %1817 = vmatpush1.bf16.msra.mxu0 0
        %1818 = vmatprep.mubr.bf16.mxu0 0
        %1819 = vmatmul.mubr.bf16.gmra.mrb[0].mxu0 %v1725
        %v1820 = vpop.f32.mrb[0].mxu0
        %v1821 = vadd.f32 0.0, %v1820
        %v1822 = vpop.f32.mrb[0].mxu0
        %v1823 = vadd.f32 0.0, %v1822
        %v1824 = vpop.f32.mrb[0].mxu0
        %v1825 = vpop.f32.mrb[0].mxu0
        %1826 = vdwg.mxu0
        %1827 = vmatprep.subr.bf16.mxu0 %v1743
        %1828 = vmatpush1.bf16.msra.mxu0 %v1740
        %1829 = vmatprep.subr.bf16.mxu0 0
        %1830 = vmatpush1.bf16.msra.mxu0 0
        %1831 = vmatprep.subr.bf16.mxu0 0
        %1832 = vmatpush1.bf16.msra.mxu0 0
        %1833 = vmatprep.subr.bf16.mxu0 0
        %1834 = vmatpush1.bf16.msra.mxu0 0
        %1835 = vmatprep.subr.bf16.mxu0 0
        %1836 = vmatpush1.bf16.msra.mxu0 0
        %1837 = vmatprep.subr.bf16.mxu0 0
        %1838 = vmatpush1.bf16.msra.mxu0 0
        %1839 = vmatprep.subr.bf16.mxu0 0
        %1840 = vmatpush1.bf16.msra.mxu0 0
        %1841 = vmatprep.subr.bf16.mxu0 0
        %1842 = vmatpush1.bf16.msra.mxu0 0
        %1843 = vmatprep.subr.bf16.mxu0 0
        %1844 = vmatpush1.bf16.msra.mxu0 0
        %1845 = vmatprep.subr.bf16.mxu0 0
        %1846 = vmatpush1.bf16.msra.mxu0 0
        %1847 = vmatprep.subr.bf16.mxu0 0
        %1848 = vmatpush1.bf16.msra.mxu0 0
        %1849 = vmatprep.subr.bf16.mxu0 0
        %1850 = vmatpush1.bf16.msra.mxu0 0
        %1851 = vmatprep.subr.bf16.mxu0 0
        %1852 = vmatpush1.bf16.msra.mxu0 0
        %1853 = vmatprep.subr.bf16.mxu0 0
        %1854 = vmatpush1.bf16.msra.mxu0 0
        %1855 = vmatprep.subr.bf16.mxu0 0
        %1856 = vmatpush1.bf16.msra.mxu0 0
        %1857 = vmatprep.subr.bf16.mxu0 0
        %1858 = vmatpush1.bf16.msra.mxu0 0
        %1859 = vmatprep.mubr.bf16.mxu0 0
        %1860 = vmatmul.mubr.bf16.gmra.mrb[0].mxu0 %v1725
        %v1861 = vpop.f32.mrb[0].mxu0
        %v1862 = vadd.f32 0.0, %v1861
        %v1863 = vpop.f32.mrb[0].mxu0
        %v1864 = vadd.f32 0.0, %v1863
        %v1865 = vpop.f32.mrb[0].mxu0
        %v1866 = vpop.f32.mrb[0].mxu0
        %1867 = vdwg.mxu0
        %v1868 = vadd.f32 %v1695, %v1780
        %v1869 = vadd.f32 %v1696, %v1782
        %v1870 = vadd.f32 %v1697, %v1821
        %v1871 = vadd.f32 %v1698, %v1823
        %v1872 = vadd.f32 %v1699, %v1862
        %v1873 = vadd.f32 %v1700, %v1864
        %s1874 = scalar_lea.vmem %s4, 16
        %v1875 = vld [vmem:[%s1874] sm:$0x3]
        %1876 = vrot.lane.b32.xlu0 %v496, 101
        %v1877 = vpop.permute.xlu0 %1876
        %1878 = vrot.lane.b32.xlu0 %v504, 101
        %v1879 = vpop.permute.xlu0 %1878
        %1880 = vrot.lane.b32.xlu0 %v503, 101
        %v1881 = vpop.permute.xlu0 %1880
        %1882 = vrot.lane.b32.xlu0 %v505, 101
        %v1883 = vpop.permute.xlu0 %1882
        %1884 = vrot.lane.b32.xlu0 %v512, 101
        %v1885 = vpop.permute.xlu0 %1884
        %1886 = vrot.lane.b32.xlu0 %v513, 101
        %v1887 = vpop.permute.xlu0 %1886
        %1888 = vrot.lane.b32.xlu0 %v521, 101
        %v1889 = vpop.permute.xlu0 %1888
        %vm1890 = vcmask 826368
        %v1891 = vsel %vm1890, %v1877, %v1879
        %v1892 = vsel %vm1890, %v1879, %v1881
        %v1893 = vsel %vm1890, %v1881, %v1883
        %v1894 = vsel %vm1890, %v1883, %v1885
        %v1895 = vsel %vm1890, %v1885, %v1887
        %v1896 = vsel %vm1890, %v1887, %v1889
        %v1898 = vsel %vm546, %v1875, 0
        %v1901 = vsel %vm550, %v1891, 0
        %v1904 = vsel %vm550, %v1892, 0
        %v1907 = vsel %vm550, %v1893, 0
        %v1910 = vsel %vm550, %v1894, 0
        %v1913 = vsel %vm550, %v1895, 0
        %v1916 = vsel %vm550, %v1896, 0
        %1918 = vmatprep.subr.bf16.mxu0 %v1904
        %1919 = vmatpush1.bf16.msra.mxu0 %v1901
        %1920 = vmatprep.subr.bf16.mxu0 0
        %1921 = vmatpush1.bf16.msra.mxu0 0
        %1922 = vmatprep.subr.bf16.mxu0 0
        %1923 = vmatpush1.bf16.msra.mxu0 0
        %1924 = vmatprep.subr.bf16.mxu0 0
        %1925 = vmatpush1.bf16.msra.mxu0 0
        %1926 = vmatprep.subr.bf16.mxu0 0
        %1927 = vmatpush1.bf16.msra.mxu0 0
        %1928 = vmatprep.subr.bf16.mxu0 0
        %1929 = vmatpush1.bf16.msra.mxu0 0
        %1930 = vmatprep.subr.bf16.mxu0 0
        %1931 = vmatpush1.bf16.msra.mxu0 0
        %1932 = vmatprep.subr.bf16.mxu0 0
        %1933 = vmatpush1.bf16.msra.mxu0 0
        %1934 = vmatprep.subr.bf16.mxu0 0
        %1935 = vmatpush1.bf16.msra.mxu0 0
        %1936 = vmatprep.subr.bf16.mxu0 0
        %1937 = vmatpush1.bf16.msra.mxu0 0
        %1938 = vmatprep.subr.bf16.mxu0 0
        %1939 = vmatpush1.bf16.msra.mxu0 0
        %1940 = vmatprep.subr.bf16.mxu0 0
        %1941 = vmatpush1.bf16.msra.mxu0 0
        %1942 = vmatprep.subr.bf16.mxu0 0
        %1943 = vmatpush1.bf16.msra.mxu0 0
        %1944 = vmatprep.subr.bf16.mxu0 0
        %1945 = vmatpush1.bf16.msra.mxu0 0
        %1946 = vmatprep.subr.bf16.mxu0 0
        %1947 = vmatpush1.bf16.msra.mxu0 0
        %1948 = vmatprep.subr.bf16.mxu0 0
        %1949 = vmatpush1.bf16.msra.mxu0 0
        %1950 = vmatprep.mubr.bf16.mxu0 0
        %1951 = vmatmul.mubr.bf16.gmra.mrb[0].mxu0 %v1898
        %v1952 = vpop.f32.mrb[0].mxu0
        %v1953 = vadd.f32 0.0, %v1952
        %v1954 = vpop.f32.mrb[0].mxu0
        %v1955 = vadd.f32 0.0, %v1954
        %v1956 = vpop.f32.mrb[0].mxu0
        %v1957 = vpop.f32.mrb[0].mxu0
        %1958 = vdwg.mxu0
        %1959 = vmatprep.subr.bf16.mxu0 %v1910
        %1960 = vmatpush1.bf16.msra.mxu0 %v1907
        %1961 = vmatprep.subr.bf16.mxu0 0
        %1962 = vmatpush1.bf16.msra.mxu0 0
        %1963 = vmatprep.subr.bf16.mxu0 0
        %1964 = vmatpush1.bf16.msra.mxu0 0
        %1965 = vmatprep.subr.bf16.mxu0 0
        %1966 = vmatpush1.bf16.msra.mxu0 0
        %1967 = vmatprep.subr.bf16.mxu0 0
        %1968 = vmatpush1.bf16.msra.mxu0 0
        %1969 = vmatprep.subr.bf16.mxu0 0
        %1970 = vmatpush1.bf16.msra.mxu0 0
        %1971 = vmatprep.subr.bf16.mxu0 0
        %1972 = vmatpush1.bf16.msra.mxu0 0
        %1973 = vmatprep.subr.bf16.mxu0 0
        %1974 = vmatpush1.bf16.msra.mxu0 0
        %1975 = vmatprep.subr.bf16.mxu0 0
        %1976 = vmatpush1.bf16.msra.mxu0 0
        %1977 = vmatprep.subr.bf16.mxu0 0
        %1978 = vmatpush1.bf16.msra.mxu0 0
        %1979 = vmatprep.subr.bf16.mxu0 0
        %1980 = vmatpush1.bf16.msra.mxu0 0
        %1981 = vmatprep.subr.bf16.mxu0 0
        %1982 = vmatpush1.bf16.msra.mxu0 0
        %1983 = vmatprep.subr.bf16.mxu0 0
        %1984 = vmatpush1.bf16.msra.mxu0 0
        %1985 = vmatprep.subr.bf16.mxu0 0
        %1986 = vmatpush1.bf16.msra.mxu0 0
        %1987 = vmatprep.subr.bf16.mxu0 0
        %1988 = vmatpush1.bf16.msra.mxu0 0
        %1989 = vmatprep.subr.bf16.mxu0 0
        %1990 = vmatpush1.bf16.msra.mxu0 0
        %1991 = vmatprep.mubr.bf16.mxu0 0
        %1992 = vmatmul.mubr.bf16.gmra.mrb[0].mxu0 %v1898
        %v1993 = vpop.f32.mrb[0].mxu0
        %v1994 = vadd.f32 0.0, %v1993
        %v1995 = vpop.f32.mrb[0].mxu0
        %v1996 = vadd.f32 0.0, %v1995
        %v1997 = vpop.f32.mrb[0].mxu0
        %v1998 = vpop.f32.mrb[0].mxu0
        %1999 = vdwg.mxu0
        %2000 = vmatprep.subr.bf16.mxu0 %v1916
        %2001 = vmatpush1.bf16.msra.mxu0 %v1913
        %2002 = vmatprep.subr.bf16.mxu0 0
        %2003 = vmatpush1.bf16.msra.mxu0 0
        %2004 = vmatprep.subr.bf16.mxu0 0
        %2005 = vmatpush1.bf16.msra.mxu0 0
        %2006 = vmatprep.subr.bf16.mxu0 0
        %2007 = vmatpush1.bf16.msra.mxu0 0
        %2008 = vmatprep.subr.bf16.mxu0 0
        %2009 = vmatpush1.bf16.msra.mxu0 0
        %2010 = vmatprep.subr.bf16.mxu0 0
        %2011 = vmatpush1.bf16.msra.mxu0 0
        %2012 = vmatprep.subr.bf16.mxu0 0
        %2013 = vmatpush1.bf16.msra.mxu0 0
        %2014 = vmatprep.subr.bf16.mxu0 0
        %2015 = vmatpush1.bf16.msra.mxu0 0
        %2016 = vmatprep.subr.bf16.mxu0 0
        %2017 = vmatpush1.bf16.msra.mxu0 0
        %2018 = vmatprep.subr.bf16.mxu0 0
        %2019 = vmatpush1.bf16.msra.mxu0 0
        %2020 = vmatprep.subr.bf16.mxu0 0
        %2021 = vmatpush1.bf16.msra.mxu0 0
        %2022 = vmatprep.subr.bf16.mxu0 0
        %2023 = vmatpush1.bf16.msra.mxu0 0
        %2024 = vmatprep.subr.bf16.mxu0 0
        %2025 = vmatpush1.bf16.msra.mxu0 0
        %2026 = vmatprep.subr.bf16.mxu0 0
        %2027 = vmatpush1.bf16.msra.mxu0 0
        %2028 = vmatprep.subr.bf16.mxu0 0
        %2029 = vmatpush1.bf16.msra.mxu0 0
        %2030 = vmatprep.subr.bf16.mxu0 0
        %2031 = vmatpush1.bf16.msra.mxu0 0
        %2032 = vmatprep.mubr.bf16.mxu0 0
        %2033 = vmatmul.mubr.bf16.gmra.mrb[0].mxu0 %v1898
        %v2034 = vpop.f32.mrb[0].mxu0
        %v2035 = vadd.f32 0.0, %v2034
        %v2036 = vpop.f32.mrb[0].mxu0
        %v2037 = vadd.f32 0.0, %v2036
        %v2038 = vpop.f32.mrb[0].mxu0
        %v2039 = vpop.f32.mrb[0].mxu0
        %2040 = vdwg.mxu0
        %v2041 = vadd.f32 %v1868, %v1953
        %v2042 = vadd.f32 %v1869, %v1955
        %v2043 = vadd.f32 %v1870, %v1994
        %v2044 = vadd.f32 %v1871, %v1996
        %v2045 = vadd.f32 %v1872, %v2035
        %v2046 = vadd.f32 %v1873, %v2037
        %v2047 = vld [vmem:[%s448] sm:$0x3f]
        %v2049 = vlaneseq
        %v2050 = vshrl.u32 %v2049, 7
        %v2051 = vsub.s32 0, %v2050
        %v2052 = vrot.slane %v2047, %v2051
        %v2053 = vlaneseq
        %v2054 = vshrl.u32 %v2053, 7
        %v2055 = vsub.s32 1, %v2054
        %v2056 = vrot.slane %v2047, %v2055
        %v2057 = vlaneseq
        %v2058 = vshrl.u32 %v2057, 7
        %v2059 = vsub.s32 2, %v2058
        %v2060 = vrot.slane %v2047, %v2059
        %v2061 = vlaneseq
        %v2062 = vshrl.u32 %v2061, 7
        %v2063 = vsub.s32 3, %v2062
        %v2064 = vrot.slane %v2047, %v2063
        %v2065 = vlaneseq
        %v2066 = vshrl.u32 %v2065, 7
        %v2067 = vsub.s32 4, %v2066
        %v2068 = vrot.slane %v2047, %v2067
        %v2069 = vlaneseq
        %v2070 = vshrl.u32 %v2069, 7
        %v2071 = vsub.s32 5, %v2070
        %v2072 = vrot.slane %v2047, %v2071
        %v2079 = vmul.f32 %v2041, %v2052
        %v2080 = vmul.f32 %v2042, %v2056
        %v2081 = vmul.f32 %v2043, %v2060
        %v2082 = vmul.f32 %v2044, %v2064
        %v2083 = vmul.f32 %v2045, %v2068
        %v2084 = vmul.f32 %v2046, %v2072
        %v2085 = vld [vmem:[#allocation3] sm:$0xf]
        %vm2086 = vcmask 1043456
        %v2087 = vsel %vm2086, %v2079, 0.0
        %v2088 = vsel %vm2086, %v2080, 0.0
        %v2089 = vadd.f32 %v2087, %v2088
        %v2090 = vsel %vm2086, %v2081, 0.0
        %v2091 = vadd.f32 %v2089, %v2090
        %v2092 = vsel %vm2086, %v2082, 0.0
        %v2093 = vadd.f32 %v2091, %v2092
        %v2094 = vsel %vm2086, %v2083, 0.0
        %v2095 = vadd.f32 %v2093, %v2094
        %v2096 = vsel %vm2086, %v2084, 0.0
        %v2097 = vadd.f32 %v2095, %v2096
        %2098 = vadd.xlane.f32.xlu0 %v2097
        %v2099 = vpop.xlane.xlu0 %2098
        %v2100 = vadd.f32 %v2085, %v2099
        %vm2101 = vcmask 3072
        %2102 = vst.msk [vmem:[#allocation3] sm:$0xf] %vm2101, %v2100
        %v2103 = vld [vmem:[#allocation4] sm:$0xf]
        %v2104 = vmul.f32 %v2079, %v2079
        %v2105 = vmul.f32 %v2080, %v2080
        %v2106 = vmul.f32 %v2081, %v2081
        %v2107 = vmul.f32 %v2082, %v2082
        %v2108 = vmul.f32 %v2083, %v2083
        %v2109 = vmul.f32 %v2084, %v2084
        %v2110 = vsel %vm2086, %v2104, 0.0
        %v2111 = vsel %vm2086, %v2105, 0.0
        %v2112 = vadd.f32 %v2110, %v2111
        %v2113 = vsel %vm2086, %v2106, 0.0
        %v2114 = vadd.f32 %v2112, %v2113
        %v2115 = vsel %vm2086, %v2107, 0.0
        %v2116 = vadd.f32 %v2114, %v2115
        %v2117 = vsel %vm2086, %v2108, 0.0
        %v2118 = vadd.f32 %v2116, %v2117
        %v2119 = vsel %vm2086, %v2109, 0.0
        %v2120 = vadd.f32 %v2118, %v2119
        %2121 = vadd.xlane.f32.xlu0 %v2120
        %v2122 = vpop.xlane.xlu0 %2121
        %v2123 = vadd.f32 %v2103, %v2122
        %2124 = vst.msk [vmem:[#allocation4] sm:$0xf] %vm2101, %v2123
        %v2131 = vcombine.low %v2041, %v2042
        %v2132 = vcombine.low %v2043, %v2044
        %v2133 = vcombine.low %v2045, %v2046
        %s2137 = sshra.s32 %s461, 7
        %s2138 = sand.u32 %s461, 127
        %s2139 = smul.addr %s2137, 4
        %s2140 = scalar_lea.vmem [#allocation2], %s2139
        %2141 = vst [vmem:[%s2140] sm:$0xff] %v2131
        %2142 = vst [vmem:[%s2140 + $0x8] sm:$0xff] %v2132
        %2143 = vst [vmem:[%s2140 + $0x10] sm:$0xff] %v2133
      $region56: #{_lambda_.3} parent=47 // pred_fallthru
        _
      %p2144 = scmp.eq.s32.totalorder %s22, 1
      // Predicated region
      $region57: #{_lambda_.3} parent=47 // pred_check
        %p2145 = pneg %p2144
      $region58: #{_lambda_.3} parent=47 // pred_check_branch
        %2147 = sbr.rel (%p2145) target = $region60
      $region59: #{_lambda_.3} parent=47 // pred_region
        %v2148 = vld [vmem:[#allocation3] sm:$0xf]
        %v2149 = vmul.f32 %v2148, 0.00086805556
        %v2150 = vld [vmem:[#allocation4] sm:$0xf]
        %v2151 = vmul.f32 %v2150, 0.00086805556
        %v2152 = vmul.f32 %v2149, %v2149
        %v2153 = vsub.f32 %v2151, %v2152
        %v2154 = vmax.f32 %v2153, 0.0
        %v2155 = vld [vmem:[%s5] sm:$0xf]
        %v2156 = vadd.f32 %v2154, 1e-05
        %v2157 = vrsqrt.pop %v2156
        %v2158 = vmul.f32 %v2155, %v2157
        %v2159 = vld [vmem:[%s6] sm:$0xf]
        %v2160 = vmul.f32 %v2158, %v2149
        %v2161 = vsub.f32 %v2159, %v2160
        %s2162 = sshra.s32 %s461, 7
        %s2163 = sand.u32 %s461, 127
        %s2164 = smul.addr %s2162, 4
        %s2165 = scalar_lea.vmem [#allocation2], %s2164
        %v2166 = vld [vmem:[%s2165] sm:$0xff]
        %v2167 = vld [vmem:[%s2165 + $0x8] sm:$0xff]
        %v2168 = vld [vmem:[%s2165 + $0x10] sm:$0xff]
        %2170 = vset.pattern.permute.xlu0 0
        %2171 = vperm.xlu0 %2170, %v2158
        %v2172 = vpop.permute.xlu0 %2171
        %v2174 = vunpack.c.l.s4 839922192
        %v2175 = vunpack.c.0.s8 %v2174
        %v2176 = vlaneseq
        %v2177 = vshrl.u32 %v2176, 7
        %v2178 = vsub.s32 %v2175, %v2177
        %v2179 = vrot.slane %v2172, %v2178
        %v2181 = vmul.f32 %v2166, %v2179
        %v2182 = vmul.f32 %v2167, %v2179
        %v2183 = vmul.f32 %v2168, %v2179
        %2185 = vset.pattern.permute.xlu0 0
        %2186 = vperm.xlu0 %2185, %v2161
        %v2187 = vpop.permute.xlu0 %2186
        %v2189 = vunpack.c.l.s4 839922192
        %v2190 = vunpack.c.0.s8 %v2189
        %v2191 = vlaneseq
        %v2192 = vshrl.u32 %v2191, 7
        %v2193 = vsub.s32 %v2190, %v2192
        %v2194 = vrot.slane %v2187, %v2193
        %v2196 = vadd.f32 %v2181, %v2194
        %v2197 = vadd.f32 %v2182, %v2194
        %v2198 = vadd.f32 %v2183, %v2194
        %vm2199 = vcmp.gt.f32.partialorder %v2196, 0.0
        %vm2200 = vcmp.gt.f32.partialorder %v2197, 0.0
        %vm2201 = vcmp.gt.f32.partialorder %v2198, 0.0
        %v2202 = vmul.f32 %v2196, 0.2
        %v2203 = vmul.f32 %v2197, 0.2
        %v2204 = vmul.f32 %v2198, 0.2
        %v2205 = vsel %vm2199, %v2196, %v2202
        %v2206 = vsel %vm2200, %v2197, %v2203
        %v2207 = vsel %vm2201, %v2198, %v2204
        %2208 = vst [vmem:[%s457] sm:$0xff] %v2205
        %2209 = vst [vmem:[%s457 + $0x8] sm:$0xff] %v2206
        %2210 = vst [vmem:[%s457 + $0x10] sm:$0xff] %v2207
      $region60: #{_lambda_.3} parent=47 // pred_fallthru
        _
      %s2211 = smul.u32 %s23, %s22
      %s2212 = smul.u32 6, %s2211
      %p2213 = scmp.lt.s32.totalorder %s2212, 11
      %s2214 = scalar_select %p2213, %s2212, 11
      %s2215 = smul.addr %s2214, 4
      %s2216 = scalar_lea.vmem %s7, %s2215
      // Predicated region
      $region61: #{_lambda_.3} parent=47 // pred_check
        %p2217 = pneg %p245
      $region62: #{_lambda_.3} parent=47 // pred_check_branch
        %2219 = sbr.rel (%p2217) target = $region64
      $region63: #{_lambda_.3} parent=47 // pred_region
        %s2220 = smul.u32 %s23, %s22
        %s2221 = smul.u32 6, %s2220
      $region64: #{_lambda_.3} parent=47 // pred_fallthru
        _
    $region48: #{_lambda_.3} parent=5 // pred_fallthru
      _
    %p2222 = scmp.le.s32.totalorder 2, %s13
    // Predicated region
    $region65: #{_lambda_.3} parent=5 // pred_check
      %p2223 = pneg %p2222
    $region66: #{_lambda_.3} parent=5 // pred_check_branch
      %2225 = sbr.rel (%p2223) target = $region68
    $region67: #{_lambda_.3} parent=5 // pred_region
      %s2226 = ssub.s32 %s13, 2
      // Predicated region
      $region69: #{_lambda_.3} parent=67 // pred_check
        %p2227 = pneg %p251
      $region70: #{_lambda_.3} parent=67 // pred_check_branch
        %2229 = sbr.rel (%p2227) target = $region72
      $region71: #{_lambda_.3} parent=67 // pred_region
        %s2230 = smul.u32 %s25, %s24
        %s2231 = smul.u32 6, %s2230
        %p2232 = scmp.lt.s32.totalorder %s2231, 11
        %s2233 = scalar_select %p2232, %s2231, 11
        %s2234 = smul.addr %s2233, 4
        %s2235 = scalar_lea.vmem %s7, %s2234
      $region72: #{_lambda_.3} parent=67 // pred_fallthru
        _
    $region68: #{_lambda_.3} parent=5 // pred_fallthru
      _
  $region6: #{_lambda_.3} parent=0 // loop_footer
    %s17 = sadd.s32 1, %s13
  $region7: #{_lambda_.3} parent=0 // loop_footer_branch
    %12 = sbr.rel target = $region3
  $region8: #{_lambda_.3} parent=0 // loop_exit
    _

// kernel: _lambda_.4
$region0: #{_lambda_.4}
  #allocation0 [shape = 'u32[]', space=smem, size = 0x4, offset = 0x4, fixed_abs, tag = 'smem constant byte address 0x4 - core index']
  #allocation1 [shape = 'u32[144,128]{1,0:T(1,128)}', space=vmem, size = 0x12000, scoped, tag = 'internal scratch']
  #allocation2 [shape = 'f32[4,512]{1,0:T(4,128)}', space=vmem, size = 0x2000, scoped, tag = 'scratch operand']
  #allocation3 [shape = 'f32[4,1]{1,0:T(4,128)}', space=vmem, size = 0x800, scoped, tag = 'scratch operand']
  #allocation4 [shape = 'f32[4,1]{1,0:T(4,128)}', space=vmem, size = 0x800, scoped, tag = 'scratch operand']
  %s0 = inlined_call_operand.vmem [shape: bf16[8,512], index: 0, kind: input, shape index: {}, may-alias: {0,1,2}]
  %s1 = inlined_call_operand.vmem [shape: bf16[8,512], index: 1, kind: input, shape index: {}, may-alias: {0,1,2}]
  %s2 = inlined_call_operand.vmem [shape: bf16[8,512], index: 2, kind: input, shape index: {}, may-alias: {0,1,2}]
  %s3 = inlined_call_operand.vmem [shape: f32[1,512], index: 3, kind: input, shape index: {}]
  %s4 = inlined_call_operand.vmem [shape: bf16[9,4,8], index: 4, kind: input, shape index: {}]
  %s5 = inlined_call_operand.vmem [shape: f32[4,1], index: 5, kind: input, shape index: {}]
  %s6 = inlined_call_operand.vmem [shape: f32[4,1], index: 6, kind: input, shape index: {}]
  %s7 = inlined_call_operand.vmem [shape: f32[4,512], index: 7, kind: output, shape index: {}]
  %s8 = sld [smem:[#allocation0]]
  $region73: #{_lambda_.4} parent=0
    _
  %s10 = ssub.s32 1, %s8
  %s11 = scalar_select 0, %s10, %s8
  loop: start=0, step=1, limit=6
  $region2: #{_lambda_.4} parent=0 // loop_pre_header
    _
  $region3: #{_lambda_.4} parent=0 // loop_header
    %s13 = sphi 0, %s17
    %p14 = scmp.ge.s32.totalorder %s13, 6
    %s20 = sphi 0, %s32
    %s21 = sphi 0, %s28
    %s22 = sphi 0, %s20
    %s23 = sphi 0, %s21
    %s24 = sphi 0, %s22
    %s25 = sphi 0, %s23
    %s45 = sphi 0, %s47
    %s48 = sphi 0, %s45
    %s49 = sphi 0, %s48
    %s65 = sphi 0, %s49
    %s75 = sphi 0, %s77
    %s78 = sphi 0, %s75
    %s79 = sphi 0, %s78
    %s95 = sphi 0, %s79
    %s111 = sphi 0, %s113
    %s114 = sphi 0, %s111
    %s115 = sphi 0, %s114
    %s131 = sphi 0, %s115
    %s141 = sphi 0, %s143
    %s144 = sphi 0, %s141
    %s145 = sphi 0, %s144
    %s161 = sphi 0, %s145
    %s165 = sphi 0, %s165
    %s167 = sphi 0, %s165
    %s168 = sphi 0, %s167
    %s182 = sphi 0, %s168
    %s186 = sphi 0, %s186
    %s188 = sphi 0, %s186
    %s189 = sphi 0, %s188
    %s203 = sphi 0, %s189
    %s207 = sphi 0, %s207
    %s209 = sphi 0, %s207
    %s210 = sphi 0, %s209
    %s224 = sphi 0, %s210
    %s232 = sphi 0, %s234
    %s235 = sphi 0, %s232
    %s236 = sphi 0, %s235
    %s252 = sphi 0, %s236
  $region4: #{_lambda_.4} parent=0 // loop_header_branch
    %16 = sbr.rel (%p14) target = $region8
  $region5: #{_lambda_.4} parent=0 // loop_body
    %s18 = ssub.s32 %s13, 1
    %s19 = ssub.s32 %s13, 2
    %s26 = sadd.s32 1, %s21
    %p27 = scmp.ge.s32.totalorder %s26, 2
    %s28 = scalar_select %p27, 0, %s26
    %s29 = sadd.s32 1, %s20
    %s30 = scalar_select %p27, %s29, %s20
    %p31 = scmp.ge.s32.totalorder %s30, 2
    %s32 = scalar_select %p31, 0, %s30
    %s33 = ssub.s32 %s21, 1
    %p34 = scmp.gt.s32.totalorder %s33, 0
    %s35 = scalar_select %p34, %s33, 0
    %s36 = ssub.s32 1, %s20
    %s37 = smul.u32 %s35, %s36
    %s38 = ssub.s32 %s28, 1
    %p39 = scmp.gt.s32.totalorder %s38, 0
    %s40 = scalar_select %p39, %s38, 0
    %s41 = ssub.s32 1, %s32
    %s42 = smul.u32 %s40, %s41
    %s43 = ssub.s32 %s37, %s42
    %p44 = scmp.eq.s32.totalorder %s43, 0
    %s46 = sadd.s32 %s45, 1
    %s47 = scalar_select %p44, %s45, %s46
    %p50 = pneg %p44
    %p51 = scmp.eq.s32.totalorder %s13, 3
    %p52 = por %p50, %p51
    %p53 = scmp.ne.s32.totalorder %s45, %s48
    %p54 = scmp.eq.s32.totalorder %s13, 0
    %p55 = por %p53, %p54
    %p56 = scmp.ne.s32.totalorder %s45, %s48
    %p57 = scmp.eq.s32.totalorder %s18, 3
    %p58 = por %p56, %p57
    %p59 = scmp.ne.s32.totalorder %s48, %s49
    %p60 = scmp.eq.s32.totalorder %s18, 0
    %p61 = por %p59, %p60
    %p62 = scmp.ne.s32.totalorder %s48, %s49
    %p63 = scmp.eq.s32.totalorder %s19, 3
    %p64 = por %p62, %p63
    %p66 = scmp.ne.s32.totalorder %s49, %s65
    %p67 = scmp.eq.s32.totalorder %s19, 0
    %p68 = por %p66, %p67
    %s69 = ssub.s32 1, %s20
    %s70 = smul.u32 %s21, %s69
    %s71 = ssub.s32 1, %s32
    %s72 = smul.u32 %s28, %s71
    %s73 = ssub.s32 %s70, %s72
    %p74 = scmp.eq.s32.totalorder %s73, 0
    %s76 = sadd.s32 %s75, 1
    %s77 = scalar_select %p74, %s75, %s76
    %p80 = pneg %p74
    %p81 = scmp.eq.s32.totalorder %s13, 3
    %p82 = por %p80, %p81
    %p83 = scmp.ne.s32.totalorder %s75, %s78
    %p84 = scmp.eq.s32.totalorder %s13, 0
    %p85 = por %p83, %p84
    %p86 = scmp.ne.s32.totalorder %s75, %s78
    %p87 = scmp.eq.s32.totalorder %s18, 3
    %p88 = por %p86, %p87
    %p89 = scmp.ne.s32.totalorder %s78, %s79
    %p90 = scmp.eq.s32.totalorder %s18, 0
    %p91 = por %p89, %p90
    %p92 = scmp.ne.s32.totalorder %s78, %s79
    %p93 = scmp.eq.s32.totalorder %s19, 3
    %p94 = por %p92, %p93
    %p96 = scmp.ne.s32.totalorder %s79, %s95
    %p97 = scmp.eq.s32.totalorder %s19, 0
    %p98 = por %p96, %p97
    %s99 = sadd.s32 %s21, 1
    %p100 = scmp.lt.s32.totalorder %s99, 1
    %s101 = scalar_select %p100, %s99, 1
    %s102 = ssub.s32 1, %s20
    %s103 = smul.u32 %s101, %s102
    %s104 = sadd.s32 %s28, 1
    %p105 = scmp.lt.s32.totalorder %s104, 1
    %s106 = scalar_select %p105, %s104, 1
    %s107 = ssub.s32 1, %s32
    %s108 = smul.u32 %s106, %s107
    %s109 = ssub.s32 %s103, %s108
    %p110 = scmp.eq.s32.totalorder %s109, 0
    %s112 = sadd.s32 %s111, 1
    %s113 = scalar_select %p110, %s111, %s112
    %p116 = pneg %p110
    %p117 = scmp.eq.s32.totalorder %s13, 3
    %p118 = por %p116, %p117
    %p119 = scmp.ne.s32.totalorder %s111, %s114
    %p120 = scmp.eq.s32.totalorder %s13, 0
    %p121 = por %p119, %p120
    %p122 = scmp.ne.s32.totalorder %s111, %s114
    %p123 = scmp.eq.s32.totalorder %s18, 3
    %p124 = por %p122, %p123
    %p125 = scmp.ne.s32.totalorder %s114, %s115
    %p126 = scmp.eq.s32.totalorder %s18, 0
    %p127 = por %p125, %p126
    %p128 = scmp.ne.s32.totalorder %s114, %s115
    %p129 = scmp.eq.s32.totalorder %s19, 3
    %p130 = por %p128, %p129
    %p132 = scmp.ne.s32.totalorder %s115, %s131
    %p133 = scmp.eq.s32.totalorder %s19, 0
    %p134 = por %p132, %p133
    %s135 = ssub.s32 1, %s20
    %s136 = smul.u32 %s21, %s135
    %s137 = ssub.s32 1, %s32
    %s138 = smul.u32 %s28, %s137
    %s139 = ssub.s32 %s136, %s138
    %p140 = scmp.eq.s32.totalorder %s139, 0
    %s142 = sadd.s32 %s141, 1
    %s143 = scalar_select %p140, %s141, %s142
    %p146 = pneg %p140
    %p147 = scmp.eq.s32.totalorder %s13, 3
    %p148 = por %p146, %p147
    %p149 = scmp.ne.s32.totalorder %s141, %s144
    %p150 = scmp.eq.s32.totalorder %s13, 0
    %p151 = por %p149, %p150
    %p152 = scmp.ne.s32.totalorder %s141, %s144
    %p153 = scmp.eq.s32.totalorder %s18, 3
    %p154 = por %p152, %p153
    %p155 = scmp.ne.s32.totalorder %s144, %s145
    %p156 = scmp.eq.s32.totalorder %s18, 0
    %p157 = por %p155, %p156
    %p158 = scmp.ne.s32.totalorder %s144, %s145
    %p159 = scmp.eq.s32.totalorder %s19, 3
    %p160 = por %p158, %p159
    %p162 = scmp.ne.s32.totalorder %s145, %s161
    %p163 = scmp.eq.s32.totalorder %s19, 0
    %p164 = por %p162, %p163
    %s166 = sadd.s32 %s165, 1
    %p169 = scmp.eq.s32.totalorder %s13, 3
    %p170 = scmp.ne.s32.totalorder %s165, %s167
    %p171 = scmp.eq.s32.totalorder %s13, 0
    %p172 = por %p170, %p171
    %p173 = scmp.ne.s32.totalorder %s165, %s167
    %p174 = scmp.eq.s32.totalorder %s18, 3
    %p175 = por %p173, %p174
    %p176 = scmp.ne.s32.totalorder %s167, %s168
    %p177 = scmp.eq.s32.totalorder %s18, 0
    %p178 = por %p176, %p177
    %p179 = scmp.ne.s32.totalorder %s167, %s168
    %p180 = scmp.eq.s32.totalorder %s19, 3
    %p181 = por %p179, %p180
    %p183 = scmp.ne.s32.totalorder %s168, %s182
    %p184 = scmp.eq.s32.totalorder %s19, 0
    %p185 = por %p183, %p184
    %s187 = sadd.s32 %s186, 1
    %p190 = scmp.eq.s32.totalorder %s13, 3
    %p191 = scmp.ne.s32.totalorder %s186, %s188
    %p192 = scmp.eq.s32.totalorder %s13, 0
    %p193 = por %p191, %p192
    %p194 = scmp.ne.s32.totalorder %s186, %s188
    %p195 = scmp.eq.s32.totalorder %s18, 3
    %p196 = por %p194, %p195
    %p197 = scmp.ne.s32.totalorder %s188, %s189
    %p198 = scmp.eq.s32.totalorder %s18, 0
    %p199 = por %p197, %p198
    %p200 = scmp.ne.s32.totalorder %s188, %s189
    %p201 = scmp.eq.s32.totalorder %s19, 3
    %p202 = por %p200, %p201
    %p204 = scmp.ne.s32.totalorder %s189, %s203
    %p205 = scmp.eq.s32.totalorder %s19, 0
    %p206 = por %p204, %p205
    %s208 = sadd.s32 %s207, 1
    %p211 = scmp.eq.s32.totalorder %s13, 3
    %p212 = scmp.ne.s32.totalorder %s207, %s209
    %p213 = scmp.eq.s32.totalorder %s13, 0
    %p214 = por %p212, %p213
    %p215 = scmp.ne.s32.totalorder %s207, %s209
    %p216 = scmp.eq.s32.totalorder %s18, 3
    %p217 = por %p215, %p216
    %p218 = scmp.ne.s32.totalorder %s209, %s210
    %p219 = scmp.eq.s32.totalorder %s18, 0
    %p220 = por %p218, %p219
    %p221 = scmp.ne.s32.totalorder %s209, %s210
    %p222 = scmp.eq.s32.totalorder %s19, 3
    %p223 = por %p221, %p222
    %p225 = scmp.ne.s32.totalorder %s210, %s224
    %p226 = scmp.eq.s32.totalorder %s19, 0
    %p227 = por %p225, %p226
    %s228 = smul.u32 %s21, %s20
    %s229 = smul.u32 %s28, %s32
    %s230 = ssub.s32 %s228, %s229
    %p231 = scmp.eq.s32.totalorder %s230, 0
    %s233 = sadd.s32 %s232, 1
    %s234 = scalar_select %p231, %s232, %s233
    %p237 = pneg %p231
    %p238 = scmp.eq.s32.totalorder %s13, 3
    %p239 = por %p237, %p238
    %p240 = scmp.ne.s32.totalorder %s232, %s235
    %p241 = scmp.eq.s32.totalorder %s13, 0
    %p242 = por %p240, %p241
    %p243 = scmp.ne.s32.totalorder %s232, %s235
    %p244 = scmp.eq.s32.totalorder %s18, 3
    %p245 = por %p243, %p244
    %p246 = scmp.ne.s32.totalorder %s235, %s236
    %p247 = scmp.eq.s32.totalorder %s18, 0
    %p248 = por %p246, %p247
    %p249 = scmp.ne.s32.totalorder %s235, %s236
    %p250 = scmp.eq.s32.totalorder %s19, 3
    %p251 = por %p249, %p250
    %p253 = scmp.ne.s32.totalorder %s236, %s252
    %p254 = scmp.eq.s32.totalorder %s19, 0
    %p255 = por %p253, %p254
    %p256 = scmp.le.s32.totalorder 1, %s13
    %p257 = scmp.lt.s32.totalorder %s13, 5
    %p258 = pnand %p256, %p257
    %p259 = pneg %p258
    // Predicated region
    $region9: #{_lambda_.4} parent=5 // pred_check
      _
    $region10: #{_lambda_.4} parent=5 // pred_check_branch
      %261 = sbr.rel (%p258) target = $region12
    $region11: #{_lambda_.4} parent=5 // pred_region
      %s262 = ssub.s32 %s13, 1
      // Predicated region
      $region13: #{_lambda_.4} parent=11 // pred_check
        %p263 = pneg %p178
      $region14: #{_lambda_.4} parent=11 // pred_check_branch
        %265 = sbr.rel (%p263) target = $region16
      $region15: #{_lambda_.4} parent=11 // pred_region
        _
      $region16: #{_lambda_.4} parent=11 // pred_fallthru
        _
      // Predicated region
      $region17: #{_lambda_.4} parent=11 // pred_check
        %p266 = pneg %p199
      $region18: #{_lambda_.4} parent=11 // pred_check_branch
        %268 = sbr.rel (%p266) target = $region20
      $region19: #{_lambda_.4} parent=11 // pred_region
        _
      $region20: #{_lambda_.4} parent=11 // pred_fallthru
        _
      // Predicated region
      $region21: #{_lambda_.4} parent=11 // pred_check
        %p269 = pneg %p220
      $region22: #{_lambda_.4} parent=11 // pred_check_branch
        %271 = sbr.rel (%p269) target = $region24
      $region23: #{_lambda_.4} parent=11 // pred_region
        _
      $region24: #{_lambda_.4} parent=11 // pred_fallthru
        _
    $region12: #{_lambda_.4} parent=5 // pred_fallthru
      _
    %p272 = scmp.lt.s32.totalorder %s13, 4
    // Predicated region
    $region25: #{_lambda_.4} parent=5 // pred_check
      %p273 = pneg %p272
    $region26: #{_lambda_.4} parent=5 // pred_check_branch
      %275 = sbr.rel (%p273) target = $region28
    $region27: #{_lambda_.4} parent=5 // pred_region
      // Predicated region
      $region29: #{_lambda_.4} parent=27 // pred_check
        %p276 = pneg %p55
      $region30: #{_lambda_.4} parent=27 // pred_check_branch
        %278 = sbr.rel (%p276) target = $region32
      $region31: #{_lambda_.4} parent=27 // pred_region
        %s279 = ssub.s32 %s21, 1
        %p280 = scmp.gt.s32.totalorder %s279, 0
        %s281 = scalar_select %p280, %s279, 0
        %s282 = ssub.s32 1, %s20
        %s283 = smul.u32 %s281, %s282
        %s284 = smul.u32 2, %s283
        %p285 = scmp.lt.s32.totalorder %s284, 3
        %s286 = scalar_select %p285, %s284, 3
        %s287 = smul.addr %s286, 4
        %s288 = scalar_lea.vmem %s0, %s287
        %s289 = ssub.s32 %s21, 1
        %p290 = scmp.gt.s32.totalorder %s289, 0
        %s291 = scalar_select %p290, %s289, 0
        %s292 = ssub.s32 1, %s20
        %s293 = smul.u32 %s291, %s292
        %s294 = smul.u32 2, %s293
      $region32: #{_lambda_.4} parent=27 // pred_fallthru
        _
      // Predicated region
      $region33: #{_lambda_.4} parent=27 // pred_check
        %p295 = pneg %p85
      $region34: #{_lambda_.4} parent=27 // pred_check_branch
        %297 = sbr.rel (%p295) target = $region36
      $region35: #{_lambda_.4} parent=27 // pred_region
        %s298 = ssub.s32 1, %s20
        %s299 = smul.u32 %s21, %s298
        %s300 = smul.u32 2, %s299
        %p301 = scmp.lt.s32.totalorder %s300, 3
        %s302 = scalar_select %p301, %s300, 3
        %s303 = smul.addr %s302, 4
        %s304 = scalar_lea.vmem %s1, %s303
        %s305 = ssub.s32 1, %s20
        %s306 = smul.u32 %s21, %s305
        %s307 = smul.u32 2, %s306
      $region36: #{_lambda_.4} parent=27 // pred_fallthru
        _
      // Predicated region
      $region37: #{_lambda_.4} parent=27 // pred_check
        %p308 = pneg %p121
      $region38: #{_lambda_.4} parent=27 // pred_check_branch
        %310 = sbr.rel (%p308) target = $region40
      $region39: #{_lambda_.4} parent=27 // pred_region
        %s311 = sadd.s32 %s21, 1
        %p312 = scmp.lt.s32.totalorder %s311, 1
        %s313 = scalar_select %p312, %s311, 1
        %s314 = ssub.s32 1, %s20
        %s315 = smul.u32 %s313, %s314
        %s316 = smul.u32 2, %s315
        %p317 = scmp.lt.s32.totalorder %s316, 3
        %s318 = scalar_select %p317, %s316, 3
        %s319 = smul.addr %s318, 4
        %s320 = scalar_lea.vmem %s2, %s319
        %s321 = sadd.s32 %s21, 1
        %p322 = scmp.lt.s32.totalorder %s321, 1
        %s323 = scalar_select %p322, %s321, 1
        %s324 = ssub.s32 1, %s20
        %s325 = smul.u32 %s323, %s324
        %s326 = smul.u32 2, %s325
      $region40: #{_lambda_.4} parent=27 // pred_fallthru
        _
      // Predicated region
      $region41: #{_lambda_.4} parent=27 // pred_check
        %p327 = pneg %p151
      $region42: #{_lambda_.4} parent=27 // pred_check_branch
        %329 = sbr.rel (%p327) target = $region44
      $region43: #{_lambda_.4} parent=27 // pred_region
        %s330 = ssub.s32 1, %s20
        %s331 = smul.u32 %s21, %s330
        %s332 = smul.u32 2, %s331
        %p333 = scmp.lt.s32.totalorder %s332, 3
        %s334 = scalar_select %p333, %s332, 3
        %s335 = scalar_lea.vmem %s3, %s334
        %s336 = ssub.s32 1, %s20
        %s337 = smul.u32 %s21, %s336
        %s338 = smul.u32 2, %s337
      $region44: #{_lambda_.4} parent=27 // pred_fallthru
        _
    $region28: #{_lambda_.4} parent=5 // pred_fallthru
      _
    %p339 = scmp.le.s32.totalorder 1, %s13
    %p340 = scmp.lt.s32.totalorder %s13, 5
    %p341 = pnand %p339, %p340
    %p342 = pneg %p341
    // Predicated region
    $region45: #{_lambda_.4} parent=5 // pred_check
      _
    $region46: #{_lambda_.4} parent=5 // pred_check_branch
      %344 = sbr.rel (%p341) target = $region48
    $region47: #{_lambda_.4} parent=5 // pred_region
      %s345 = ssub.s32 %s13, 1
      %s346 = ssub.s32 %s23, 1
      %p347 = scmp.gt.s32.totalorder %s346, 0
      %s348 = scalar_select %p347, %s346, 0
      %s349 = ssub.s32 1, %s22
      %s350 = smul.u32 %s348, %s349
      %s351 = smul.u32 2, %s350
      %p352 = scmp.lt.s32.totalorder %s351, 3
      %s353 = scalar_select %p352, %s351, 3
      %s354 = smul.addr %s353, 4
      %s355 = scalar_lea.vmem %s0, %s354
      %p356 = pneg %p61
      %p357 = pneg %p58
      %s358 = ssub.s32 1, %s22
      %s359 = smul.u32 %s23, %s358
      %s360 = smul.u32 2, %s359
      %p361 = scmp.lt.s32.totalorder %s360, 3
      %s362 = scalar_select %p361, %s360, 3
      %s363 = smul.addr %s362, 4
      %s364 = scalar_lea.vmem %s1, %s363
      %p365 = pneg %p91
      %p366 = pneg %p88
      %s367 = sadd.s32 %s23, 1
      %p368 = scmp.lt.s32.totalorder %s367, 1
      %s369 = scalar_select %p368, %s367, 1
      %s370 = ssub.s32 1, %s22
      %s371 = smul.u32 %s369, %s370
      %s372 = smul.u32 2, %s371
      %p373 = scmp.lt.s32.totalorder %s372, 3
      %s374 = scalar_select %p373, %s372, 3
      %s375 = smul.addr %s374, 4
      %s376 = scalar_lea.vmem %s2, %s375
      %p377 = pneg %p127
      %p378 = pneg %p124
      %s379 = ssub.s32 1, %s22
      %s380 = smul.u32 %s23, %s379
      %s381 = smul.u32 2, %s380
      %p382 = scmp.lt.s32.totalorder %s381, 3
      %s383 = scalar_select %p382, %s381, 3
      %s384 = scalar_lea.vmem %s3, %s383
      %p385 = pneg %p157
      %p386 = pneg %p154
      %p387 = pneg %p178
      %p388 = pneg %p175
      %p389 = pneg %p199
      %p390 = pneg %p196
      %p391 = pneg %p220
      %p392 = pneg %p217
      %p393 = pneg %p248
      %p394 = pneg %p245
      %s395 = smul.u32 %s23, %s22
      %s396 = smul.u32 2, %s395
      %p397 = scmp.lt.s32.totalorder %s396, 3
      %s398 = scalar_select %p397, %s396, 3
      %s399 = smul.addr %s398, 4
      %s400 = scalar_lea.vmem %s7, %s399
      %s401 = ssub.s32 %s23, 1
      %p402 = scmp.gt.s32.totalorder %s401, 0
      %s403 = scalar_select %p402, %s401, 0
      %s404 = ssub.s32 1, %s22
      %s405 = smul.u32 %s403, %s404
      %s406 = smul.u32 2, %s405
      %p407 = scmp.lt.s32.totalorder %s406, 3
      %s408 = scalar_select %p407, %s406, 3
      %s409 = smul.addr %s408, 4
      %s410 = scalar_lea.vmem %s0, %s409
      %s411 = ssub.s32 %s23, 1
      %p412 = scmp.gt.s32.totalorder %s411, 0
      %s413 = scalar_select %p412, %s411, 0
      %s414 = ssub.s32 1, %s22
      %s415 = smul.u32 %s413, %s414
      %s416 = smul.u32 2, %s415
      %s417 = ssub.s32 1, %s22
      %s418 = smul.u32 %s23, %s417
      %s419 = smul.u32 2, %s418
      %p420 = scmp.lt.s32.totalorder %s419, 3
      %s421 = scalar_select %p420, %s419, 3
      %s422 = smul.addr %s421, 4
      %s423 = scalar_lea.vmem %s1, %s422
      %s424 = ssub.s32 1, %s22
      %s425 = smul.u32 %s23, %s424
      %s426 = smul.u32 2, %s425
      %s427 = sadd.s32 %s23, 1
      %p428 = scmp.lt.s32.totalorder %s427, 1
      %s429 = scalar_select %p428, %s427, 1
      %s430 = ssub.s32 1, %s22
      %s431 = smul.u32 %s429, %s430
      %s432 = smul.u32 2, %s431
      %p433 = scmp.lt.s32.totalorder %s432, 3
      %s434 = scalar_select %p433, %s432, 3
      %s435 = smul.addr %s434, 4
      %s436 = scalar_lea.vmem %s2, %s435
      %s437 = sadd.s32 %s23, 1
      %p438 = scmp.lt.s32.totalorder %s437, 1
      %s439 = scalar_select %p438, %s437, 1
      %s440 = ssub.s32 1, %s22
      %s441 = smul.u32 %s439, %s440
      %s442 = smul.u32 2, %s441
      %s443 = ssub.s32 1, %s22
      %s444 = smul.u32 %s23, %s443
      %s445 = smul.u32 2, %s444
      %p446 = scmp.lt.s32.totalorder %s445, 3
      %s447 = scalar_select %p446, %s445, 3
      %s448 = scalar_lea.vmem %s3, %s447
      %s449 = ssub.s32 1, %s22
      %s450 = smul.u32 %s23, %s449
      %s451 = smul.u32 2, %s450
      %s452 = smul.u32 %s23, %s22
      %s453 = smul.u32 2, %s452
      %p454 = scmp.lt.s32.totalorder %s453, 3
      %s455 = scalar_select %p454, %s453, 3
      %s456 = smul.addr %s455, 4
      %s457 = scalar_lea.vmem %s7, %s456
      %s458 = smul.u32 %s23, %s22
      %s459 = smul.u32 2, %s458
      %s461 = smul.u32 %s23, 256
      %p462 = scmp.eq.s32.totalorder %s22, 0
      %p463 = scmp.eq.s32.totalorder %s23, 0
      %p464 = pnand %p462, %p463
      %p465 = pneg %p464
      // Predicated region
      $region49: #{_lambda_.4} parent=47 // pred_check
        _
      $region50: #{_lambda_.4} parent=47 // pred_check_branch
        %467 = sbr.rel (%p464) target = $region52
      $region51: #{_lambda_.4} parent=47 // pred_region
        %vm468 = vcmask 3072
        %469 = vst.msk [vmem:[#allocation3] sm:$0xf] %vm468, 0.0
        %470 = vst.msk [vmem:[#allocation4] sm:$0xf] %vm468, 0.0
      $region52: #{_lambda_.4} parent=47 // pred_fallthru
        _
      // Predicated region
      $region53: #{_lambda_.4} parent=47 // pred_check
        %p471 = pneg %p462
      $region54: #{_lambda_.4} parent=47 // pred_check_branch
        %473 = sbr.rel (%p471) target = $region56
      $region55: #{_lambda_.4} parent=47 // pred_region
        %v474 = vld [vmem:[%s410] sm:$0xff]
        %v475 = vld [vmem:[%s423] sm:$0xff]
        %v476 = vld [vmem:[%s436] sm:$0xff]
        %v478 = vunpack.c.h.b16 %v474
        %v479 = vpack.c.b16 %v478, %v478
        %v481 = vunpack.c.l.b16 %v475
        %v482 = vunpack.c.h.b16 %v475
        %v483 = vpack.c.b16 %v481, %v481
        %v484 = vpack.c.b16 %v482, %v482
        %v486 = vunpack.c.l.b16 %v476
        %v487 = vpack.c.b16 %v486, %v486
        %v488 = vld [vmem:[%s4] sm:$0x3]
        %s489 = scalar_lea.vmem %s4, 2
        %v490 = vld [vmem:[%s489] sm:$0x3]
        %491 = vrot.lane.b32.xlu0 %v479, 14
        %v492 = vpop.permute.xlu0 %491
        %493 = vrot.lane.b32.xlu0 %v483, 14
        %v494 = vpop.permute.xlu0 %493
        %495 = vrot.lane.b32.xlu0 %v484, 14
        %v496 = vpop.permute.xlu0 %495
        %vm497 = vcmask 113664
        %v498 = vsel %vm497, %v492, %v494
        %v499 = vsel %vm497, %v494, %v496
        %vm500 = vcmask 64512
        %v502 = vsel %vm500, %v490, 0
        %vm504 = vcmask 1043456
        %v506 = vsel %vm504, %v498, 0
        %v509 = vsel %vm504, %v499, 0
        %511 = vmatprep.subr.bf16.mxu0 %v509
        %512 = vmatpush1.bf16.msra.mxu0 %v506
        %513 = vmatprep.subr.bf16.mxu0 0
        %514 = vmatpush1.bf16.msra.mxu0 0
        %515 = vmatprep.subr.bf16.mxu0 0
        %516 = vmatpush1.bf16.msra.mxu0 0
        %517 = vmatprep.subr.bf16.mxu0 0
        %518 = vmatpush1.bf16.msra.mxu0 0
        %519 = vmatprep.subr.bf16.mxu0 0
        %520 = vmatpush1.bf16.msra.mxu0 0
        %521 = vmatprep.subr.bf16.mxu0 0
        %522 = vmatpush1.bf16.msra.mxu0 0
        %523 = vmatprep.subr.bf16.mxu0 0
        %524 = vmatpush1.bf16.msra.mxu0 0
        %525 = vmatprep.subr.bf16.mxu0 0
        %526 = vmatpush1.bf16.msra.mxu0 0
        %527 = vmatprep.subr.bf16.mxu0 0
        %528 = vmatpush1.bf16.msra.mxu0 0
        %529 = vmatprep.subr.bf16.mxu0 0
        %530 = vmatpush1.bf16.msra.mxu0 0
        %531 = vmatprep.subr.bf16.mxu0 0
        %532 = vmatpush1.bf16.msra.mxu0 0
        %533 = vmatprep.subr.bf16.mxu0 0
        %534 = vmatpush1.bf16.msra.mxu0 0
        %535 = vmatprep.subr.bf16.mxu0 0
        %536 = vmatpush1.bf16.msra.mxu0 0
        %537 = vmatprep.subr.bf16.mxu0 0
        %538 = vmatpush1.bf16.msra.mxu0 0
        %539 = vmatprep.subr.bf16.mxu0 0
        %540 = vmatpush1.bf16.msra.mxu0 0
        %541 = vmatprep.subr.bf16.mxu0 0
        %542 = vmatpush1.bf16.msra.mxu0 0
        %543 = vmatprep.mubr.bf16.mxu0 0
        %544 = vmatmul.mubr.bf16.gmra.mrb[0].mxu0 %v502
        %v545 = vpop.f32.mrb[0].mxu0
        %v546 = vadd.f32 0.0, %v545
        %v547 = vpop.f32.mrb[0].mxu0
        %v548 = vadd.f32 0.0, %v547
        %v549 = vpop.f32.mrb[0].mxu0
        %v550 = vpop.f32.mrb[0].mxu0
        %551 = vdwg.mxu0
        %552 = vrot.lane.b32.xlu0 %v479, 15
        %v553 = vpop.permute.xlu0 %552
        %554 = vrot.lane.b32.xlu0 %v483, 15
        %v555 = vpop.permute.xlu0 %554
        %556 = vrot.lane.b32.xlu0 %v484, 15
        %v557 = vpop.permute.xlu0 %556
        %vm558 = vcmask 121856
        %v559 = vsel %vm558, %v553, %v555
        %v560 = vsel %vm558, %v555, %v557
        %v562 = vsel %vm500, %v488, 0
        %v565 = vsel %vm504, %v559, 0
        %v568 = vsel %vm504, %v560, 0
        %570 = vmatprep.subr.bf16.mxu0 %v568
        %571 = vmatpush1.bf16.msra.mxu0 %v565
        %572 = vmatprep.subr.bf16.mxu0 0
        %573 = vmatpush1.bf16.msra.mxu0 0
        %574 = vmatprep.subr.bf16.mxu0 0
        %575 = vmatpush1.bf16.msra.mxu0 0
        %576 = vmatprep.subr.bf16.mxu0 0
        %577 = vmatpush1.bf16.msra.mxu0 0
        %578 = vmatprep.subr.bf16.mxu0 0
        %579 = vmatpush1.bf16.msra.mxu0 0
        %580 = vmatprep.subr.bf16.mxu0 0
        %581 = vmatpush1.bf16.msra.mxu0 0
        %582 = vmatprep.subr.bf16.mxu0 0
        %583 = vmatpush1.bf16.msra.mxu0 0
        %584 = vmatprep.subr.bf16.mxu0 0
        %585 = vmatpush1.bf16.msra.mxu0 0
        %586 = vmatprep.subr.bf16.mxu0 0
        %587 = vmatpush1.bf16.msra.mxu0 0
        %588 = vmatprep.subr.bf16.mxu0 0
        %589 = vmatpush1.bf16.msra.mxu0 0
        %590 = vmatprep.subr.bf16.mxu0 0
        %591 = vmatpush1.bf16.msra.mxu0 0
        %592 = vmatprep.subr.bf16.mxu0 0
        %593 = vmatpush1.bf16.msra.mxu0 0
        %594 = vmatprep.subr.bf16.mxu0 0
        %595 = vmatpush1.bf16.msra.mxu0 0
        %596 = vmatprep.subr.bf16.mxu0 0
        %597 = vmatpush1.bf16.msra.mxu0 0
        %598 = vmatprep.subr.bf16.mxu0 0
        %599 = vmatpush1.bf16.msra.mxu0 0
        %600 = vmatprep.subr.bf16.mxu0 0
        %601 = vmatpush1.bf16.msra.mxu0 0
        %602 = vmatprep.mubr.bf16.mxu0 0
        %603 = vmatmul.mubr.bf16.gmra.mrb[0].mxu0 %v562
        %v604 = vpop.f32.mrb[0].mxu0
        %v605 = vadd.f32 %v546, %v604
        %v606 = vpop.f32.mrb[0].mxu0
        %v607 = vadd.f32 %v548, %v606
        %v608 = vpop.f32.mrb[0].mxu0
        %v609 = vpop.f32.mrb[0].mxu0
        %610 = vdwg.mxu0
        %s611 = scalar_lea.vmem %s4, 4
        %v612 = vld [vmem:[%s611] sm:$0x3]
        %613 = vrot.lane.b32.xlu0 %v479, 13
        %v614 = vpop.permute.xlu0 %613
        %615 = vrot.lane.b32.xlu0 %v483, 13
        %v616 = vpop.permute.xlu0 %615
        %617 = vrot.lane.b32.xlu0 %v484, 13
        %v618 = vpop.permute.xlu0 %617
        %vm619 = vcmask 105472
        %v620 = vsel %vm619, %v614, %v616
        %v621 = vsel %vm619, %v616, %v618
        %v623 = vsel %vm500, %v612, 0
        %v626 = vsel %vm504, %v620, 0
        %v629 = vsel %vm504, %v621, 0
        %631 = vmatprep.subr.bf16.mxu0 %v629
        %632 = vmatpush1.bf16.msra.mxu0 %v626
        %633 = vmatprep.subr.bf16.mxu0 0
        %634 = vmatpush1.bf16.msra.mxu0 0
        %635 = vmatprep.subr.bf16.mxu0 0
        %636 = vmatpush1.bf16.msra.mxu0 0
        %637 = vmatprep.subr.bf16.mxu0 0
        %638 = vmatpush1.bf16.msra.mxu0 0
        %639 = vmatprep.subr.bf16.mxu0 0
        %640 = vmatpush1.bf16.msra.mxu0 0
        %641 = vmatprep.subr.bf16.mxu0 0
        %642 = vmatpush1.bf16.msra.mxu0 0
        %643 = vmatprep.subr.bf16.mxu0 0
        %644 = vmatpush1.bf16.msra.mxu0 0
        %645 = vmatprep.subr.bf16.mxu0 0
        %646 = vmatpush1.bf16.msra.mxu0 0
        %647 = vmatprep.subr.bf16.mxu0 0
        %648 = vmatpush1.bf16.msra.mxu0 0
        %649 = vmatprep.subr.bf16.mxu0 0
        %650 = vmatpush1.bf16.msra.mxu0 0
        %651 = vmatprep.subr.bf16.mxu0 0
        %652 = vmatpush1.bf16.msra.mxu0 0
        %653 = vmatprep.subr.bf16.mxu0 0
        %654 = vmatpush1.bf16.msra.mxu0 0
        %655 = vmatprep.subr.bf16.mxu0 0
        %656 = vmatpush1.bf16.msra.mxu0 0
        %657 = vmatprep.subr.bf16.mxu0 0
        %658 = vmatpush1.bf16.msra.mxu0 0
        %659 = vmatprep.subr.bf16.mxu0 0
        %660 = vmatpush1.bf16.msra.mxu0 0
        %661 = vmatprep.subr.bf16.mxu0 0
        %662 = vmatpush1.bf16.msra.mxu0 0
        %663 = vmatprep.mubr.bf16.mxu0 0
        %664 = vmatmul.mubr.bf16.gmra.mrb[0].mxu0 %v623
        %v665 = vpop.f32.mrb[0].mxu0
        %v666 = vadd.f32 0.0, %v665
        %v667 = vpop.f32.mrb[0].mxu0
        %v668 = vadd.f32 0.0, %v667
        %v669 = vpop.f32.mrb[0].mxu0
        %v670 = vpop.f32.mrb[0].mxu0
        %671 = vdwg.mxu0
        %v672 = vadd.f32 %v605, %v666
        %v673 = vadd.f32 %v607, %v668
        %s674 = scalar_lea.vmem %s4, 6
        %v675 = vld [vmem:[%s674] sm:$0x3]
        %676 = vrot.lane.b32.xlu0 %v479, 1
        %v677 = vpop.permute.xlu0 %676
        %678 = vrot.lane.b32.xlu0 %v483, 1
        %v679 = vpop.permute.xlu0 %678
        %680 = vrot.lane.b32.xlu0 %v484, 1
        %v681 = vpop.permute.xlu0 %680
        %vm682 = vcmask 7168
        %v683 = vsel %vm682, %v677, %v679
        %v684 = vsel %vm682, %v679, %v681
        %v686 = vsel %vm500, %v675, 0
        %v689 = vsel %vm504, %v683, 0
        %v692 = vsel %vm504, %v684, 0
        %694 = vmatprep.subr.bf16.mxu0 %v692
        %695 = vmatpush1.bf16.msra.mxu0 %v689
        %696 = vmatprep.subr.bf16.mxu0 0
        %697 = vmatpush1.bf16.msra.mxu0 0
        %698 = vmatprep.subr.bf16.mxu0 0
        %699 = vmatpush1.bf16.msra.mxu0 0
        %700 = vmatprep.subr.bf16.mxu0 0
        %701 = vmatpush1.bf16.msra.mxu0 0
        %702 = vmatprep.subr.bf16.mxu0 0
        %703 = vmatpush1.bf16.msra.mxu0 0
        %704 = vmatprep.subr.bf16.mxu0 0
        %705 = vmatpush1.bf16.msra.mxu0 0
        %706 = vmatprep.subr.bf16.mxu0 0
        %707 = vmatpush1.bf16.msra.mxu0 0
        %708 = vmatprep.subr.bf16.mxu0 0
        %709 = vmatpush1.bf16.msra.mxu0 0
        %710 = vmatprep.subr.bf16.mxu0 0
        %711 = vmatpush1.bf16.msra.mxu0 0
        %712 = vmatprep.subr.bf16.mxu0 0
        %713 = vmatpush1.bf16.msra.mxu0 0
        %714 = vmatprep.subr.bf16.mxu0 0
        %715 = vmatpush1.bf16.msra.mxu0 0
        %716 = vmatprep.subr.bf16.mxu0 0
        %717 = vmatpush1.bf16.msra.mxu0 0
        %718 = vmatprep.subr.bf16.mxu0 0
        %719 = vmatpush1.bf16.msra.mxu0 0
        %720 = vmatprep.subr.bf16.mxu0 0
        %721 = vmatpush1.bf16.msra.mxu0 0
        %722 = vmatprep.subr.bf16.mxu0 0
        %723 = vmatpush1.bf16.msra.mxu0 0
        %724 = vmatprep.subr.bf16.mxu0 0
        %725 = vmatpush1.bf16.msra.mxu0 0
        %726 = vmatprep.mubr.bf16.mxu0 0
        %727 = vmatmul.mubr.bf16.gmra.mrb[0].mxu0 %v686
        %v728 = vpop.f32.mrb[0].mxu0
        %v729 = vadd.f32 0.0, %v728
        %v730 = vpop.f32.mrb[0].mxu0
        %v731 = vadd.f32 0.0, %v730
        %v732 = vpop.f32.mrb[0].mxu0
        %v733 = vpop.f32.mrb[0].mxu0
        %734 = vdwg.mxu0
        %v735 = vadd.f32 %v672, %v729
        %v736 = vadd.f32 %v673, %v731
        %s737 = scalar_lea.vmem %s4, 8
        %v738 = vld [vmem:[%s737] sm:$0x3]
        %v740 = vsel %vm500, %v738, 0
        %v743 = vsel %vm504, %v483, 0
        %v746 = vsel %vm504, %v484, 0
        %748 = vmatprep.subr.bf16.mxu0 %v746
        %749 = vmatpush1.bf16.msra.mxu0 %v743
        %750 = vmatprep.subr.bf16.mxu0 0
        %751 = vmatpush1.bf16.msra.mxu0 0
        %752 = vmatprep.subr.bf16.mxu0 0
        %753 = vmatpush1.bf16.msra.mxu0 0
        %754 = vmatprep.subr.bf16.mxu0 0
        %755 = vmatpush1.bf16.msra.mxu0 0
        %756 = vmatprep.subr.bf16.mxu0 0
        %757 = vmatpush1.bf16.msra.mxu0 0
        %758 = vmatprep.subr.bf16.mxu0 0
        %759 = vmatpush1.bf16.msra.mxu0 0
        %760 = vmatprep.subr.bf16.mxu0 0
        %761 = vmatpush1.bf16.msra.mxu0 0
        %762 = vmatprep.subr.bf16.mxu0 0
        %763 = vmatpush1.bf16.msra.mxu0 0
        %764 = vmatprep.subr.bf16.mxu0 0
        %765 = vmatpush1.bf16.msra.mxu0 0
        %766 = vmatprep.subr.bf16.mxu0 0
        %767 = vmatpush1.bf16.msra.mxu0 0
        %768 = vmatprep.subr.bf16.mxu0 0
        %769 = vmatpush1.bf16.msra.mxu0 0
        %770 = vmatprep.subr.bf16.mxu0 0
        %771 = vmatpush1.bf16.msra.mxu0 0
        %772 = vmatprep.subr.bf16.mxu0 0
        %773 = vmatpush1.bf16.msra.mxu0 0
        %774 = vmatprep.subr.bf16.mxu0 0
        %775 = vmatpush1.bf16.msra.mxu0 0
        %776 = vmatprep.subr.bf16.mxu0 0
        %777 = vmatpush1.bf16.msra.mxu0 0
        %778 = vmatprep.subr.bf16.mxu0 0
        %779 = vmatpush1.bf16.msra.mxu0 0
        %780 = vmatprep.mubr.bf16.mxu0 0
        %781 = vmatmul.mubr.bf16.gmra.mrb[0].mxu0 %v740
        %v782 = vpop.f32.mrb[0].mxu0
        %v783 = vadd.f32 0.0, %v782
        %v784 = vpop.f32.mrb[0].mxu0
        %v785 = vadd.f32 0.0, %v784
        %v786 = vpop.f32.mrb[0].mxu0
        %v787 = vpop.f32.mrb[0].mxu0
        %788 = vdwg.mxu0
        %v789 = vadd.f32 %v735, %v783
        %v790 = vadd.f32 %v736, %v785
        %s791 = scalar_lea.vmem %s4, 10
        %v792 = vld [vmem:[%s791] sm:$0x3]
        %793 = vrot.lane.b32.xlu0 %v483, 127
        %v794 = vpop.permute.xlu0 %793
        %795 = vrot.lane.b32.xlu0 %v484, 127
        %v796 = vpop.permute.xlu0 %795
        %797 = vrot.lane.b32.xlu0 %v487, 127
        %v798 = vpop.permute.xlu0 %797
        %vm799 = vcmask 1039360
        %v800 = vsel %vm799, %v794, %v796
        %v801 = vsel %vm799, %v796, %v798
        %v803 = vsel %vm500, %v792, 0
        %v806 = vsel %vm504, %v800, 0
        %v809 = vsel %vm504, %v801, 0
        %811 = vmatprep.subr.bf16.mxu0 %v809
        %812 = vmatpush1.bf16.msra.mxu0 %v806
        %813 = vmatprep.subr.bf16.mxu0 0
        %814 = vmatpush1.bf16.msra.mxu0 0
        %815 = vmatprep.subr.bf16.mxu0 0
        %816 = vmatpush1.bf16.msra.mxu0 0
        %817 = vmatprep.subr.bf16.mxu0 0
        %818 = vmatpush1.bf16.msra.mxu0 0
        %819 = vmatprep.subr.bf16.mxu0 0
        %820 = vmatpush1.bf16.msra.mxu0 0
        %821 = vmatprep.subr.bf16.mxu0 0
        %822 = vmatpush1.bf16.msra.mxu0 0
        %823 = vmatprep.subr.bf16.mxu0 0
        %824 = vmatpush1.bf16.msra.mxu0 0
        %825 = vmatprep.subr.bf16.mxu0 0
        %826 = vmatpush1.bf16.msra.mxu0 0
        %827 = vmatprep.subr.bf16.mxu0 0
        %828 = vmatpush1.bf16.msra.mxu0 0
        %829 = vmatprep.subr.bf16.mxu0 0
        %830 = vmatpush1.bf16.msra.mxu0 0
        %831 = vmatprep.subr.bf16.mxu0 0
        %832 = vmatpush1.bf16.msra.mxu0 0
        %833 = vmatprep.subr.bf16.mxu0 0
        %834 = vmatpush1.bf16.msra.mxu0 0
        %835 = vmatprep.subr.bf16.mxu0 0
        %836 = vmatpush1.bf16.msra.mxu0 0
        %837 = vmatprep.subr.bf16.mxu0 0
        %838 = vmatpush1.bf16.msra.mxu0 0
        %839 = vmatprep.subr.bf16.mxu0 0
        %840 = vmatpush1.bf16.msra.mxu0 0
        %841 = vmatprep.subr.bf16.mxu0 0
        %842 = vmatpush1.bf16.msra.mxu0 0
        %843 = vmatprep.mubr.bf16.mxu0 0
        %844 = vmatmul.mubr.bf16.gmra.mrb[0].mxu0 %v803
        %v845 = vpop.f32.mrb[0].mxu0
        %v846 = vadd.f32 0.0, %v845
        %v847 = vpop.f32.mrb[0].mxu0
        %v848 = vadd.f32 0.0, %v847
        %v849 = vpop.f32.mrb[0].mxu0
        %v850 = vpop.f32.mrb[0].mxu0
        %851 = vdwg.mxu0
        %v852 = vadd.f32 %v789, %v846
        %v853 = vadd.f32 %v790, %v848
        %s854 = scalar_lea.vmem %s4, 12
        %v855 = vld [vmem:[%s854] sm:$0x3]
        %856 = vrot.lane.b32.xlu0 %v483, 115
        %v857 = vpop.permute.xlu0 %856
        %858 = vrot.lane.b32.xlu0 %v484, 115
        %v859 = vpop.permute.xlu0 %858
        %860 = vrot.lane.b32.xlu0 %v487, 115
        %v861 = vpop.permute.xlu0 %860
        %vm862 = vcmask 941056
        %v863 = vsel %vm862, %v857, %v859
        %v864 = vsel %vm862, %v859, %v861
        %v866 = vsel %vm500, %v855, 0
        %v869 = vsel %vm504, %v863, 0
        %v872 = vsel %vm504, %v864, 0
        %874 = vmatprep.subr.bf16.mxu0 %v872
        %875 = vmatpush1.bf16.msra.mxu0 %v869
        %876 = vmatprep.subr.bf16.mxu0 0
        %877 = vmatpush1.bf16.msra.mxu0 0
        %878 = vmatprep.subr.bf16.mxu0 0
        %879 = vmatpush1.bf16.msra.mxu0 0
        %880 = vmatprep.subr.bf16.mxu0 0
        %881 = vmatpush1.bf16.msra.mxu0 0
        %882 = vmatprep.subr.bf16.mxu0 0
        %883 = vmatpush1.bf16.msra.mxu0 0
        %884 = vmatprep.subr.bf16.mxu0 0
        %885 = vmatpush1.bf16.msra.mxu0 0
        %886 = vmatprep.subr.bf16.mxu0 0
        %887 = vmatpush1.bf16.msra.mxu0 0
        %888 = vmatprep.subr.bf16.mxu0 0
        %889 = vmatpush1.bf16.msra.mxu0 0
        %890 = vmatprep.subr.bf16.mxu0 0
        %891 = vmatpush1.bf16.msra.mxu0 0
        %892 = vmatprep.subr.bf16.mxu0 0
        %893 = vmatpush1.bf16.msra.mxu0 0
        %894 = vmatprep.subr.bf16.mxu0 0
        %895 = vmatpush1.bf16.msra.mxu0 0
        %896 = vmatprep.subr.bf16.mxu0 0
        %897 = vmatpush1.bf16.msra.mxu0 0
        %898 = vmatprep.subr.bf16.mxu0 0
        %899 = vmatpush1.bf16.msra.mxu0 0
        %900 = vmatprep.subr.bf16.mxu0 0
        %901 = vmatpush1.bf16.msra.mxu0 0
        %902 = vmatprep.subr.bf16.mxu0 0
        %903 = vmatpush1.bf16.msra.mxu0 0
        %904 = vmatprep.subr.bf16.mxu0 0
        %905 = vmatpush1.bf16.msra.mxu0 0
        %906 = vmatprep.mubr.bf16.mxu0 0
        %907 = vmatmul.mubr.bf16.gmra.mrb[0].mxu0 %v866
        %v908 = vpop.f32.mrb[0].mxu0
        %v909 = vadd.f32 0.0, %v908
        %v910 = vpop.f32.mrb[0].mxu0
        %v911 = vadd.f32 0.0, %v910
        %v912 = vpop.f32.mrb[0].mxu0
        %v913 = vpop.f32.mrb[0].mxu0
        %914 = vdwg.mxu0
        %v915 = vadd.f32 %v852, %v909
        %v916 = vadd.f32 %v853, %v911
        %s917 = scalar_lea.vmem %s4, 14
        %v918 = vld [vmem:[%s917] sm:$0x3]
        %919 = vrot.lane.b32.xlu0 %v483, 114
        %v920 = vpop.permute.xlu0 %919
        %921 = vrot.lane.b32.xlu0 %v484, 114
        %v922 = vpop.permute.xlu0 %921
        %923 = vrot.lane.b32.xlu0 %v487, 114
        %v924 = vpop.permute.xlu0 %923
        %vm925 = vcmask 932864
        %v926 = vsel %vm925, %v920, %v922
        %v927 = vsel %vm925, %v922, %v924
        %v929 = vsel %vm500, %v918, 0
        %v932 = vsel %vm504, %v926, 0
        %v935 = vsel %vm504, %v927, 0
        %937 = vmatprep.subr.bf16.mxu0 %v935
        %938 = vmatpush1.bf16.msra.mxu0 %v932
        %939 = vmatprep.subr.bf16.mxu0 0
        %940 = vmatpush1.bf16.msra.mxu0 0
        %941 = vmatprep.subr.bf16.mxu0 0
        %942 = vmatpush1.bf16.msra.mxu0 0
        %943 = vmatprep.subr.bf16.mxu0 0
        %944 = vmatpush1.bf16.msra.mxu0 0
        %945 = vmatprep.subr.bf16.mxu0 0
        %946 = vmatpush1.bf16.msra.mxu0 0
        %947 = vmatprep.subr.bf16.mxu0 0
        %948 = vmatpush1.bf16.msra.mxu0 0
        %949 = vmatprep.subr.bf16.mxu0 0
        %950 = vmatpush1.bf16.msra.mxu0 0
        %951 = vmatprep.subr.bf16.mxu0 0
        %952 = vmatpush1.bf16.msra.mxu0 0
        %953 = vmatprep.subr.bf16.mxu0 0
        %954 = vmatpush1.bf16.msra.mxu0 0
        %955 = vmatprep.subr.bf16.mxu0 0
        %956 = vmatpush1.bf16.msra.mxu0 0
        %957 = vmatprep.subr.bf16.mxu0 0
        %958 = vmatpush1.bf16.msra.mxu0 0
        %959 = vmatprep.subr.bf16.mxu0 0
        %960 = vmatpush1.bf16.msra.mxu0 0
        %961 = vmatprep.subr.bf16.mxu0 0
        %962 = vmatpush1.bf16.msra.mxu0 0
        %963 = vmatprep.subr.bf16.mxu0 0
        %964 = vmatpush1.bf16.msra.mxu0 0
        %965 = vmatprep.subr.bf16.mxu0 0
        %966 = vmatpush1.bf16.msra.mxu0 0
        %967 = vmatprep.subr.bf16.mxu0 0
        %968 = vmatpush1.bf16.msra.mxu0 0
        %969 = vmatprep.mubr.bf16.mxu0 0
        %970 = vmatmul.mubr.bf16.gmra.mrb[0].mxu0 %v929
        %v971 = vpop.f32.mrb[0].mxu0
        %v972 = vadd.f32 0.0, %v971
        %v973 = vpop.f32.mrb[0].mxu0
        %v974 = vadd.f32 0.0, %v973
        %v975 = vpop.f32.mrb[0].mxu0
        %v976 = vpop.f32.mrb[0].mxu0
        %977 = vdwg.mxu0
        %v978 = vadd.f32 %v915, %v972
        %v979 = vadd.f32 %v916, %v974
        %s980 = scalar_lea.vmem %s4, 16
        %v981 = vld [vmem:[%s980] sm:$0x3]
        %982 = vrot.lane.b32.xlu0 %v483, 113
        %v983 = vpop.permute.xlu0 %982
        %984 = vrot.lane.b32.xlu0 %v484, 113
        %v985 = vpop.permute.xlu0 %984
        %986 = vrot.lane.b32.xlu0 %v487, 113
        %v987 = vpop.permute.xlu0 %986
        %vm988 = vcmask 924672
        %v989 = vsel %vm988, %v983, %v985
        %v990 = vsel %vm988, %v985, %v987
        %v992 = vsel %vm500, %v981, 0
        %v995 = vsel %vm504, %v989, 0
        %v998 = vsel %vm504, %v990, 0
        %1000 = vmatprep.subr.bf16.mxu0 %v998
        %1001 = vmatpush1.bf16.msra.mxu0 %v995
        %1002 = vmatprep.subr.bf16.mxu0 0
        %1003 = vmatpush1.bf16.msra.mxu0 0
        %1004 = vmatprep.subr.bf16.mxu0 0
        %1005 = vmatpush1.bf16.msra.mxu0 0
        %1006 = vmatprep.subr.bf16.mxu0 0
        %1007 = vmatpush1.bf16.msra.mxu0 0
        %1008 = vmatprep.subr.bf16.mxu0 0
        %1009 = vmatpush1.bf16.msra.mxu0 0
        %1010 = vmatprep.subr.bf16.mxu0 0
        %1011 = vmatpush1.bf16.msra.mxu0 0
        %1012 = vmatprep.subr.bf16.mxu0 0
        %1013 = vmatpush1.bf16.msra.mxu0 0
        %1014 = vmatprep.subr.bf16.mxu0 0
        %1015 = vmatpush1.bf16.msra.mxu0 0
        %1016 = vmatprep.subr.bf16.mxu0 0
        %1017 = vmatpush1.bf16.msra.mxu0 0
        %1018 = vmatprep.subr.bf16.mxu0 0
        %1019 = vmatpush1.bf16.msra.mxu0 0
        %1020 = vmatprep.subr.bf16.mxu0 0
        %1021 = vmatpush1.bf16.msra.mxu0 0
        %1022 = vmatprep.subr.bf16.mxu0 0
        %1023 = vmatpush1.bf16.msra.mxu0 0
        %1024 = vmatprep.subr.bf16.mxu0 0
        %1025 = vmatpush1.bf16.msra.mxu0 0
        %1026 = vmatprep.subr.bf16.mxu0 0
        %1027 = vmatpush1.bf16.msra.mxu0 0
        %1028 = vmatprep.subr.bf16.mxu0 0
        %1029 = vmatpush1.bf16.msra.mxu0 0
        %1030 = vmatprep.subr.bf16.mxu0 0
        %1031 = vmatpush1.bf16.msra.mxu0 0
        %1032 = vmatprep.mubr.bf16.mxu0 0
        %1033 = vmatmul.mubr.bf16.gmra.mrb[0].mxu0 %v992
        %v1034 = vpop.f32.mrb[0].mxu0
        %v1035 = vadd.f32 0.0, %v1034
        %v1036 = vpop.f32.mrb[0].mxu0
        %v1037 = vadd.f32 0.0, %v1036
        %v1038 = vpop.f32.mrb[0].mxu0
        %v1039 = vpop.f32.mrb[0].mxu0
        %1040 = vdwg.mxu0
        %v1041 = vadd.f32 %v978, %v1035
        %v1042 = vadd.f32 %v979, %v1037
        %v1043 = vld [vmem:[%s448] sm:$0x3]
        %v1045 = vlaneseq
        %v1046 = vshrl.u32 %v1045, 7
        %v1047 = vsub.s32 0, %v1046
        %v1048 = vrot.slane %v1043, %v1047
        %v1049 = vlaneseq
        %v1050 = vshrl.u32 %v1049, 7
        %v1051 = vsub.s32 1, %v1050
        %v1052 = vrot.slane %v1043, %v1051
        %v1055 = vmul.f32 %v1041, %v1048
        %v1056 = vmul.f32 %v1042, %v1052
        %v1057 = vld [vmem:[#allocation3] sm:$0xf]
        %v1058 = vsel %vm504, %v1055, 0.0
        %v1059 = vsel %vm504, %v1056, 0.0
        %v1060 = vadd.f32 %v1058, %v1059
        %1061 = vadd.xlane.f32.xlu0 %v1060
        %v1062 = vpop.xlane.xlu0 %1061
        %v1063 = vadd.f32 %v1057, %v1062
        %vm1064 = vcmask 3072
        %1065 = vst.msk [vmem:[#allocation3] sm:$0xf] %vm1064, %v1063
        %v1066 = vld [vmem:[#allocation4] sm:$0xf]
        %v1067 = vmul.f32 %v1055, %v1055
        %v1068 = vmul.f32 %v1056, %v1056
        %v1069 = vsel %vm504, %v1067, 0.0
        %v1070 = vsel %vm504, %v1068, 0.0
        %v1071 = vadd.f32 %v1069, %v1070
        %1072 = vadd.xlane.f32.xlu0 %v1071
        %v1073 = vpop.xlane.xlu0 %1072
        %v1074 = vadd.f32 %v1066, %v1073
        %1075 = vst.msk [vmem:[#allocation4] sm:$0xf] %vm1064, %v1074
        %v1078 = vcombine.low %v1041, %v1042
        %s1080 = sshra.s32 %s461, 7
        %s1081 = sand.u32 %s461, 127
        %s1082 = smul.addr %s1080, 4
        %s1083 = scalar_lea.vmem [#allocation2], %s1082
        %1084 = vst [vmem:[%s1083] sm:$0xff] %v1078
      $region56: #{_lambda_.4} parent=47 // pred_fallthru
        _
      %p1085 = scmp.eq.s32.totalorder %s22, 1
      // Predicated region
      $region57: #{_lambda_.4} parent=47 // pred_check
        %p1086 = pneg %p1085
      $region58: #{_lambda_.4} parent=47 // pred_check_branch
        %1088 = sbr.rel (%p1086) target = $region60
      $region59: #{_lambda_.4} parent=47 // pred_region
        %v1089 = vld [vmem:[#allocation3] sm:$0xf]
        %v1090 = vmul.f32 %v1089, 0.0034722222
        %v1091 = vld [vmem:[#allocation4] sm:$0xf]
        %v1092 = vmul.f32 %v1091, 0.0034722222
        %v1093 = vmul.f32 %v1090, %v1090
        %v1094 = vsub.f32 %v1092, %v1093
        %v1095 = vmax.f32 %v1094, 0.0
        %v1096 = vld [vmem:[%s5] sm:$0xf]
        %v1097 = vadd.f32 %v1095, 1e-05
        %v1098 = vrsqrt.pop %v1097
        %v1099 = vmul.f32 %v1096, %v1098
        %v1100 = vld [vmem:[%s6] sm:$0xf]
        %v1101 = vmul.f32 %v1099, %v1090
        %v1102 = vsub.f32 %v1100, %v1101
        %s1103 = sshra.s32 %s461, 7
        %s1104 = sand.u32 %s461, 127
        %s1105 = smul.addr %s1103, 4
        %s1106 = scalar_lea.vmem [#allocation2], %s1105
        %v1107 = vld [vmem:[%s1106] sm:$0xff]
        %1109 = vset.pattern.permute.xlu0 0
        %1110 = vperm.xlu0 %1109, %v1099
        %v1111 = vpop.permute.xlu0 %1110
        %v1113 = vunpack.c.l.s4 839922192
        %v1114 = vunpack.c.0.s8 %v1113
        %v1115 = vlaneseq
        %v1116 = vshrl.u32 %v1115, 7
        %v1117 = vsub.s32 %v1114, %v1116
        %v1118 = vrot.slane %v1111, %v1117
        %v1120 = vmul.f32 %v1107, %v1118
        %1122 = vset.pattern.permute.xlu0 0
        %1123 = vperm.xlu0 %1122, %v1102
        %v1124 = vpop.permute.xlu0 %1123
        %v1126 = vunpack.c.l.s4 839922192
        %v1127 = vunpack.c.0.s8 %v1126
        %v1128 = vlaneseq
        %v1129 = vshrl.u32 %v1128, 7
        %v1130 = vsub.s32 %v1127, %v1129
        %v1131 = vrot.slane %v1124, %v1130
        %v1133 = vadd.f32 %v1120, %v1131
        %vm1134 = vcmp.gt.f32.partialorder %v1133, 0.0
        %v1135 = vmul.f32 %v1133, 0.2
        %v1136 = vsel %vm1134, %v1133, %v1135
        %1137 = vst [vmem:[%s457] sm:$0xff] %v1136
      $region60: #{_lambda_.4} parent=47 // pred_fallthru
        _
      %s1138 = smul.u32 %s23, %s22
      %s1139 = smul.u32 2, %s1138
      %p1140 = scmp.lt.s32.totalorder %s1139, 3
      %s1141 = scalar_select %p1140, %s1139, 3
      %s1142 = smul.addr %s1141, 4
      %s1143 = scalar_lea.vmem %s7, %s1142
      // Predicated region
      $region61: #{_lambda_.4} parent=47 // pred_check
        %p1144 = pneg %p245
      $region62: #{_lambda_.4} parent=47 // pred_check_branch
        %1146 = sbr.rel (%p1144) target = $region64
      $region63: #{_lambda_.4} parent=47 // pred_region
        %s1147 = smul.u32 %s23, %s22
        %s1148 = smul.u32 2, %s1147
      $region64: #{_lambda_.4} parent=47 // pred_fallthru
        _
    $region48: #{_lambda_.4} parent=5 // pred_fallthru
      _
    %p1149 = scmp.le.s32.totalorder 2, %s13
    // Predicated region
    $region65: #{_lambda_.4} parent=5 // pred_check
      %p1150 = pneg %p1149
    $region66: #{_lambda_.4} parent=5 // pred_check_branch
      %1152 = sbr.rel (%p1150) target = $region68
    $region67: #{_lambda_.4} parent=5 // pred_region
      %s1153 = ssub.s32 %s13, 2
      // Predicated region
      $region69: #{_lambda_.4} parent=67 // pred_check
        %p1154 = pneg %p251
      $region70: #{_lambda_.4} parent=67 // pred_check_branch
        %1156 = sbr.rel (%p1154) target = $region72
      $region71: #{_lambda_.4} parent=67 // pred_region
        %s1157 = smul.u32 %s25, %s24
        %s1158 = smul.u32 2, %s1157
        %p1159 = scmp.lt.s32.totalorder %s1158, 3
        %s1160 = scalar_select %p1159, %s1158, 3
        %s1161 = smul.addr %s1160, 4
        %s1162 = scalar_lea.vmem %s7, %s1161
      $region72: #{_lambda_.4} parent=67 // pred_fallthru
        _
    $region68: #{_lambda_.4} parent=5 // pred_fallthru
      _
  $region6: #{_lambda_.4} parent=0 // loop_footer
    %s17 = sadd.s32 1, %s13
  $region7: #{_lambda_.4} parent=0 // loop_footer_branch
    %12 = sbr.rel target = $region3
  $region8: #{_lambda_.4} parent=0 // loop_exit
    _

// kernel: _lambda_.5
$region0: #{_lambda_.5}
  #allocation0 [shape = 'u32[]', space=smem, size = 0x4, offset = 0x4, fixed_abs, tag = 'smem constant byte address 0x4 - core index']
  #allocation1 [shape = 'u32[144,128]{1,0:T(1,128)}', space=vmem, size = 0x12000, scoped, tag = 'internal scratch']
  #allocation2 [shape = 'f32[1,1]{1,0:T(1,128)S(1)}', space=vmem, size = 0x200, scoped, tag = 'scoped memory for _lambda_.5']
  %s0 = inlined_call_operand.vmem [shape: bf16[16,512], index: 0, kind: input, shape index: {}]
  %s1 = inlined_call_operand.vmem [shape: bf16[1,16], index: 1, kind: input, shape index: {}]
  %s2 = inlined_call_operand.<no memory space> [shape: f32[1,1], index: 2, kind: input, shape index: {}]
  %s3 = inlined_call_operand.vmem [shape: f32[1,512], index: 3, kind: output, shape index: {}]
  %s4 = sld [smem:[#allocation0]]
  $region83: #{_lambda_.5} parent=0
    _
  %s6 = ssub.s32 1, %s4
  %s7 = scalar_select 0, %s6, %s4
  %v8 = vstv %s2
  %9 = vst [vmem:[#allocation2] sm:$0x1] %v8
  $region1: #{_lambda_.5} parent=0
    #allocation3 [shape = 'u8[16384]{0}', space=vmem, size = 0x4000, scoped, tag = 'input window, operand 0']
    loop: start=0, step=1, limit=4
    $region2: #{_lambda_.5} parent=1 // loop_pre_header
      _
    $region3: #{_lambda_.5} parent=1 // loop_header
      %s11 = sphi 0, %s15
      %p12 = scmp.ge.s32.totalorder %s11, 4
      %s21 = sphi 0, %s23
      %s24 = sphi 0, %s21
      %s25 = sphi 0, %s24
      %s41 = sphi 0, %s25
      %s45 = sphi 0, %s45
      %s47 = sphi 0, %s45
      %s48 = sphi 0, %s47
      %s62 = sphi 0, %s48
      %s66 = sphi 0, %s66
      %s68 = sphi 0, %s66
      %s69 = sphi 0, %s68
      %s83 = sphi 0, %s69
      %s89 = sphi 0, %s91
      %s92 = sphi 0, %s89
      %s93 = sphi 0, %s92
      %s109 = sphi 0, %s93
    $region4: #{_lambda_.5} parent=1 // loop_header_branch
      %14 = sbr.rel (%p12) target = $region8
    $region5: #{_lambda_.5} parent=1 // loop_body
      %s16 = ssub.s32 %s11, 1
      %s17 = ssub.s32 %s11, 2
      %s18 = sadd.s32 %s11, 1
      %s19 = ssub.s32 %s11, %s18
      %p20 = scmp.eq.s32.totalorder %s19, 0
      %s22 = sadd.s32 %s21, 1
      %s23 = scalar_select %p20, %s21, %s22
      %p26 = pneg %p20
      %p27 = scmp.eq.s32.totalorder %s11, 1
      %p28 = por %p26, %p27
      %p29 = scmp.ne.s32.totalorder %s21, %s24
      %p30 = scmp.eq.s32.totalorder %s11, 0
      %p31 = por %p29, %p30
      %p32 = scmp.ne.s32.totalorder %s21, %s24
      %p33 = scmp.eq.s32.totalorder %s16, 1
      %p34 = por %p32, %p33
      %p35 = scmp.ne.s32.totalorder %s24, %s25
      %p36 = scmp.eq.s32.totalorder %s16, 0
      %p37 = por %p35, %p36
      %p38 = scmp.ne.s32.totalorder %s24, %s25
      %p39 = scmp.eq.s32.totalorder %s17, 1
      %p40 = por %p38, %p39
      %p42 = scmp.ne.s32.totalorder %s25, %s41
      %p43 = scmp.eq.s32.totalorder %s17, 0
      %p44 = por %p42, %p43
      %s46 = sadd.s32 %s45, 1
      %p49 = scmp.eq.s32.totalorder %s11, 1
      %p50 = scmp.ne.s32.totalorder %s45, %s47
      %p51 = scmp.eq.s32.totalorder %s11, 0
      %p52 = por %p50, %p51
      %p53 = scmp.ne.s32.totalorder %s45, %s47
      %p54 = scmp.eq.s32.totalorder %s16, 1
      %p55 = por %p53, %p54
      %p56 = scmp.ne.s32.totalorder %s47, %s48
      %p57 = scmp.eq.s32.totalorder %s16, 0
      %p58 = por %p56, %p57
      %p59 = scmp.ne.s32.totalorder %s47, %s48
      %p60 = scmp.eq.s32.totalorder %s17, 1
      %p61 = por %p59, %p60
      %p63 = scmp.ne.s32.totalorder %s48, %s62
      %p64 = scmp.eq.s32.totalorder %s17, 0
      %p65 = por %p63, %p64
      %s67 = sadd.s32 %s66, 1
      %p70 = scmp.eq.s32.totalorder %s11, 1
      %p71 = scmp.ne.s32.totalorder %s66, %s68
      %p72 = scmp.eq.s32.totalorder %s11, 0
      %p73 = por %p71, %p72
      %p74 = scmp.ne.s32.totalorder %s66, %s68
      %p75 = scmp.eq.s32.totalorder %s16, 1
      %p76 = por %p74, %p75
      %p77 = scmp.ne.s32.totalorder %s68, %s69
      %p78 = scmp.eq.s32.totalorder %s16, 0
      %p79 = por %p77, %p78
      %p80 = scmp.ne.s32.totalorder %s68, %s69
      %p81 = scmp.eq.s32.totalorder %s17, 1
      %p82 = por %p80, %p81
      %p84 = scmp.ne.s32.totalorder %s69, %s83
      %p85 = scmp.eq.s32.totalorder %s17, 0
      %p86 = por %p84, %p85
      %s87 = ssub.s32 %s11, %s18
      %p88 = scmp.eq.s32.totalorder %s87, 0
      %s90 = sadd.s32 %s89, 1
      %s91 = scalar_select %p88, %s89, %s90
      %p94 = pneg %p88
      %p95 = scmp.eq.s32.totalorder %s11, 1
      %p96 = por %p94, %p95
      %p97 = scmp.ne.s32.totalorder %s89, %s92
      %p98 = scmp.eq.s32.totalorder %s11, 0
      %p99 = por %p97, %p98
      %p100 = scmp.ne.s32.totalorder %s89, %s92
      %p101 = scmp.eq.s32.totalorder %s16, 1
      %p102 = por %p100, %p101
      %p103 = scmp.ne.s32.totalorder %s92, %s93
      %p104 = scmp.eq.s32.totalorder %s16, 0
      %p105 = por %p103, %p104
      %p106 = scmp.ne.s32.totalorder %s92, %s93
      %p107 = scmp.eq.s32.totalorder %s17, 1
      %p108 = por %p106, %p107
      %p110 = scmp.ne.s32.totalorder %s93, %s109
      %p111 = scmp.eq.s32.totalorder %s17, 0
      %p112 = por %p110, %p111
      %p113 = scmp.le.s32.totalorder 1, %s11
      %p114 = scmp.lt.s32.totalorder %s11, 3
      %p115 = pnand %p113, %p114
      %p116 = pneg %p115
      // Predicated region
      $region9: #{_lambda_.5} parent=5 // pred_check
        _
      $region10: #{_lambda_.5} parent=5 // pred_check_branch
        %118 = sbr.rel (%p115) target = $region12
      $region11: #{_lambda_.5} parent=5 // pred_region
        %s119 = ssub.s32 %s11, 1
        // Predicated region
        $region13: #{_lambda_.5} parent=11 // pred_check
          %p120 = pneg %p58
        $region14: #{_lambda_.5} parent=11 // pred_check_branch
          %122 = sbr.rel (%p120) target = $region16
        $region15: #{_lambda_.5} parent=11 // pred_region
          _
        $region16: #{_lambda_.5} parent=11 // pred_fallthru
          _
        // Predicated region
        $region17: #{_lambda_.5} parent=11 // pred_check
          %p123 = pneg %p79
        $region18: #{_lambda_.5} parent=11 // pred_check_branch
          %125 = sbr.rel (%p123) target = $region20
        $region19: #{_lambda_.5} parent=11 // pred_region
          _
        $region20: #{_lambda_.5} parent=11 // pred_fallthru
          _
      $region12: #{_lambda_.5} parent=5 // pred_fallthru
        _
      %p126 = scmp.lt.s32.totalorder %s11, 2
      // Predicated region
      $region21: #{_lambda_.5} parent=5 // pred_check
        %p127 = pneg %p126
      $region22: #{_lambda_.5} parent=5 // pred_check_branch
        %129 = sbr.rel (%p127) target = $region24
      $region23: #{_lambda_.5} parent=5 // pred_region
        // Predicated region
        $region25: #{_lambda_.5} parent=23 // pred_check
          %p130 = pneg %p31
        $region26: #{_lambda_.5} parent=23 // pred_check_branch
          %132 = sbr.rel (%p130) target = $region28
        $region27: #{_lambda_.5} parent=23 // pred_region
          %s133 = sand.u32 %s21, 1
          %s134 = sand.u32 %s21, 1
          %s135 = smul.addr %s134, 16
          %s136 = scalar_lea.vmem [#allocation3], %s135
          %s137 = smul.u32 2, %s11
          %s138 = smul.addr %s137, 4
          %s139 = scalar_lea.vmem %s0, %s138
          // Predicated region
          $region29: #{_lambda_.5} parent=27 // pred_check
            _
          $region30: #{_lambda_.5} parent=27 // pred_check_branch
            %141 = sbr.rel (0) target = $region32
          $region31: #{_lambda_.5} parent=27 // pred_region
            // Predicated region
            $region33: #{_lambda_.5} parent=31 // pred_check
              _
            $region34: #{_lambda_.5} parent=31 // pred_check_branch
              %143 = sbr.rel (0) target = $region36
            $region35: #{_lambda_.5} parent=31 // pred_region
              // Predicated region
              $region48: #{_lambda_.5} parent=35 // pred_check
                _
              $region49: #{_lambda_.5} parent=35 // pred_check_branch
                %160 = sbr.rel (0) target = $region51
              $region50: #{_lambda_.5} parent=35 // pred_region
                loop: start=0, step=1, limit=1
                $region52: #{_lambda_.5} parent=50 // loop_pre_header
                  _
                $region53: #{_lambda_.5} parent=50 // loop_header
                  %s162 = sphi 0, %s166
                  %p163 = scmp.ge.s32.totalorder %s162, 1
                  %s167 = sphi %s139, %s139
                  %s168 = sphi %s136, %s136
                $region54: #{_lambda_.5} parent=50 // loop_header_branch
                  %165 = sbr.rel (%p163) target = $region58
                $region55: #{_lambda_.5} parent=50 // loop_body
                  %v169 = vld [vmem:[%s167] sm:$0xff]
                  %170 = vst [vmem:[%s168] sm:$0xff] %v169
                  %v171 = vld [vmem:[%s167 + $0x10] sm:$0xff]
                  %172 = vst [vmem:[%s168 + $0x8] sm:$0xff] %v171
                $region56: #{_lambda_.5} parent=50 // loop_footer
                  %s166 = sadd.s32 1, %s162
                $region57: #{_lambda_.5} parent=50 // loop_footer_branch
                  %161 = sbr.rel target = $region53
                $region58: #{_lambda_.5} parent=50 // loop_exit
                  _
              $region51: #{_lambda_.5} parent=35 // pred_fallthru
                _
              // Predicated region
              $region59: #{_lambda_.5} parent=35 // pred_check
                _
              $region60: #{_lambda_.5} parent=35 // pred_check_branch
                %174 = sbr.rel target = $region62
              $region61: #{_lambda_.5} parent=35 // pred_region
                _
              $region62: #{_lambda_.5} parent=35 // pred_fallthru
                _
            $region36: #{_lambda_.5} parent=31 // pred_fallthru
              _
            // Predicated region
            $region37: #{_lambda_.5} parent=31 // pred_check
              _
            $region38: #{_lambda_.5} parent=31 // pred_check_branch
              %145 = sbr.rel target = $region40
            $region39: #{_lambda_.5} parent=31 // pred_region
              loop: start=0, step=1, limit=1
              $region41: #{_lambda_.5} parent=39 // loop_pre_header
                _
              $region42: #{_lambda_.5} parent=39 // loop_header
                %s148 = sphi 0, %s152
                %p149 = scmp.ge.s32.totalorder %s148, 1
                %s153 = sphi %s139, %s139
                %s154 = sphi %s136, %s136
              $region43: #{_lambda_.5} parent=39 // loop_header_branch
                %151 = sbr.rel (%p149) target = $region47
              $region44: #{_lambda_.5} parent=39 // loop_body
                %v155 = vld [vmem:[%s153] sm:$0xff]
                %156 = vst [vmem:[%s154] sm:$0xff] %v155
                %v157 = vld [vmem:[%s153 + $0x10] sm:$0xff]
                %158 = vst [vmem:[%s154 + $0x8] sm:$0xff] %v157
              $region45: #{_lambda_.5} parent=39 // loop_footer
                %s152 = sadd.s32 1, %s148
              $region46: #{_lambda_.5} parent=39 // loop_footer_branch
                %147 = sbr.rel target = $region42
              $region47: #{_lambda_.5} parent=39 // loop_exit
                _
            $region40: #{_lambda_.5} parent=31 // pred_fallthru
              _
          $region32: #{_lambda_.5} parent=27 // pred_fallthru
            _
          %175 = vnop
        $region28: #{_lambda_.5} parent=23 // pred_fallthru
          _
      $region24: #{_lambda_.5} parent=5 // pred_fallthru
        _
      %p176 = scmp.le.s32.totalorder 1, %s11
      %p177 = scmp.lt.s32.totalorder %s11, 3
      %p178 = pnand %p176, %p177
      %p179 = pneg %p178
      // Predicated region
      $region63: #{_lambda_.5} parent=5 // pred_check
        _
      $region64: #{_lambda_.5} parent=5 // pred_check_branch
        %181 = sbr.rel (%p178) target = $region66
      $region65: #{_lambda_.5} parent=5 // pred_region
        %s182 = ssub.s32 %s11, 1
        %s183 = sand.u32 %s24, 1
        %s184 = sand.u32 %s24, 1
        %s185 = smul.addr %s184, 16
        %s186 = scalar_lea.vmem [#allocation3], %s185
        // Predicated region
        $region67: #{_lambda_.5} parent=65 // pred_check
          %p187 = pneg %p37
        $region68: #{_lambda_.5} parent=65 // pred_check_branch
          %189 = sbr.rel (%p187) target = $region70
        $region69: #{_lambda_.5} parent=65 // pred_region
          _
        $region70: #{_lambda_.5} parent=65 // pred_fallthru
          _
        %s190 = sand.u32 %s24, 1
        %s191 = sand.u32 %s24, 1
        %s192 = smul.addr %s191, 16
        %s193 = scalar_lea.vmem [#allocation3], %s192
        %p194 = pneg %p37
        %p195 = pneg %p34
        %p196 = pneg %p58
        %p197 = pneg %p55
        %p198 = pneg %p79
        %p199 = pneg %p76
        %p200 = pneg %p105
        %p201 = pneg %p102
        %s202 = smul.u32 2, %s16
        %p203 = scmp.lt.s32.totalorder %s202, 3
        %s204 = scalar_select %p203, %s202, 3
        %s205 = scalar_lea.vmem %s3, %s204
        %s206 = smul.u32 2, %s16
        %s207 = smul.u32 2, %s16
        %p208 = scmp.lt.s32.totalorder %s207, 3
        %s209 = scalar_select %p208, %s207, 3
        %s210 = scalar_lea.vmem %s3, %s209
        %s211 = smul.u32 2, %s16
        %v213 = vld [vmem:[%s1] sm:$0x1]
        %v214 = vld [vmem:[%s186] sm:$0xff]
        %v215 = vld [vmem:[%s186 + $0x8] sm:$0xff]
        %v216 = vld [vmem:[#allocation2] sm:$0x1]
        %218 = vset.pattern.permute.xlu0 0
        %219 = vperm.xlu0 %218, %v216
        %v220 = vpop.permute.xlu0 %219
        %v222 = vlaneseq
        %v223 = vshrl.u32 %v222, 7
        %v224 = vsub.s32 0, %v223
        %v225 = vrot.slane %v220, %v224
        %v228 = vunpack.c.l.b16 %v214
        %v229 = vunpack.c.h.b16 %v214
        %v230 = vunpack.c.l.b16 %v215
        %v231 = vunpack.c.h.b16 %v215
        %v232 = vpack.c.b16 %v230, %v228
        %v233 = vpack.c.b16 %v231, %v229
        %vm236 = vcmask 130048
        %v238 = vsel %vm236, %v213, 0
        %240 = vmatprep.subr.bf16.mxu0 %v233
        %241 = vmatpush1.bf16.msra.mxu0 %v232
        %242 = vmatprep.subr.bf16.mxu0 0
        %243 = vmatpush1.bf16.msra.mxu0 0
        %244 = vmatprep.subr.bf16.mxu0 0
        %245 = vmatpush1.bf16.msra.mxu0 0
        %246 = vmatprep.subr.bf16.mxu0 0
        %247 = vmatpush1.bf16.msra.mxu0 0
        %248 = vmatprep.subr.bf16.mxu0 0
        %249 = vmatpush1.bf16.msra.mxu0 0
        %250 = vmatprep.subr.bf16.mxu0 0
        %251 = vmatpush1.bf16.msra.mxu0 0
        %252 = vmatprep.subr.bf16.mxu0 0
        %253 = vmatpush1.bf16.msra.mxu0 0
        %254 = vmatprep.subr.bf16.mxu0 0
        %255 = vmatpush1.bf16.msra.mxu0 0
        %256 = vmatprep.subr.bf16.mxu0 0
        %257 = vmatpush1.bf16.msra.mxu0 0
        %258 = vmatprep.subr.bf16.mxu0 0
        %259 = vmatpush1.bf16.msra.mxu0 0
        %260 = vmatprep.subr.bf16.mxu0 0
        %261 = vmatpush1.bf16.msra.mxu0 0
        %262 = vmatprep.subr.bf16.mxu0 0
        %263 = vmatpush1.bf16.msra.mxu0 0
        %264 = vmatprep.subr.bf16.mxu0 0
        %265 = vmatpush1.bf16.msra.mxu0 0
        %266 = vmatprep.subr.bf16.mxu0 0
        %267 = vmatpush1.bf16.msra.mxu0 0
        %268 = vmatprep.subr.bf16.mxu0 0
        %269 = vmatpush1.bf16.msra.mxu0 0
        %270 = vmatprep.subr.bf16.mxu0 0
        %271 = vmatpush1.bf16.msra.mxu0 0
        %272 = vmatprep.mubr.bf16.mxu0 0
        %273 = vmatmul.mubr.bf16.gmra.mrb[0].mxu0 %v238
        %v274 = vpop.f32.mrb[0].mxu0
        %v275 = vadd.f32 %v225, %v274
        %v276 = vpop.f32.mrb[0].mxu0
        %v277 = vadd.f32 %v225, %v276
        %v278 = vpop.f32.mrb[0].mxu0
        %v279 = vpop.f32.mrb[0].mxu0
        %280 = vdwg.mxu0
        %v283 = vcombine.low %v275, %v277
        %v285 = vunpack.c.l.s4 1966171168
        %v286 = vunpack.c.0.s8 %v285
        %v287 = vlaneseq
        %v288 = vshrl.u32 %v287, 7
        %v289 = vsub.s32 %v286, %v288
        %v290 = vrot.slane %v283, %v289
        %v292 = vunpack.c.l.s4 1966171168
        %v293 = vunpack.c.0.s8 %v292
        %v294 = vlaneseq
        %v295 = vshrl.u32 %v294, 7
        %v296 = vsub.s32 %v293, %v295
        %v297 = vrot.slane %v290, %v296
        %v299 = vlaneseq
        %vm300 = vcmp.ge.s32.totalorder %v299, 0
        %vm301 = vcmp.lt.s32.totalorder %v299, 256
        %vm302 = vmand %vm300, %vm301
        %303 = vst.msk [vmem:[%s210] sm:$0x3] %vm302, %v297
        %s304 = smul.u32 2, %s16
        %p305 = scmp.lt.s32.totalorder %s304, 3
        %s306 = scalar_select %p305, %s304, 3
        %s307 = scalar_lea.vmem %s3, %s306
        // Predicated region
        $region71: #{_lambda_.5} parent=65 // pred_check
          %p308 = pneg %p102
        $region72: #{_lambda_.5} parent=65 // pred_check_branch
          %310 = sbr.rel (%p308) target = $region74
        $region73: #{_lambda_.5} parent=65 // pred_region
          %s311 = smul.u32 2, %s16
        $region74: #{_lambda_.5} parent=65 // pred_fallthru
          _
      $region66: #{_lambda_.5} parent=5 // pred_fallthru
        _
      %p312 = scmp.le.s32.totalorder 2, %s11
      // Predicated region
      $region75: #{_lambda_.5} parent=5 // pred_check
        %p313 = pneg %p312
      $region76: #{_lambda_.5} parent=5 // pred_check_branch
        %315 = sbr.rel (%p313) target = $region78
      $region77: #{_lambda_.5} parent=5 // pred_region
        %s316 = ssub.s32 %s11, 2
        // Predicated region
        $region79: #{_lambda_.5} parent=77 // pred_check
          %p317 = pneg %p108
        $region80: #{_lambda_.5} parent=77 // pred_check_branch
          %319 = sbr.rel (%p317) target = $region82
        $region81: #{_lambda_.5} parent=77 // pred_region
          %s320 = smul.u32 2, %s17
          %p321 = scmp.lt.s32.totalorder %s320, 3
          %s322 = scalar_select %p321, %s320, 3
          %s323 = scalar_lea.vmem %s3, %s322
        $region82: #{_lambda_.5} parent=77 // pred_fallthru
          _
      $region78: #{_lambda_.5} parent=5 // pred_fallthru
        _
    $region6: #{_lambda_.5} parent=1 // loop_footer
      %s15 = sadd.s32 1, %s11
    $region7: #{_lambda_.5} parent=1 // loop_footer_branch
      %10 = sbr.rel target = $region3
    $region8: #{_lambda_.5} parent=1 // loop_exit
      _

</llo_original>
